<compile_context>
chip_gen: v5e
topology: v5e:2x2
jax: 0.10.0
libtpu: 0.0.40
codegen_flags: <defaults>
</compile_context>

<pallas_src>
import functools

import jax
import jax.numpy as jnp
from jax.experimental import pallas as pl
from jax.experimental.pallas import tpu as pltpu

_EPS = 1e-5
_VMEM_LIMIT = 64 * 1024 * 1024  # > scoped defaults (16 MiB v5e / 32 MiB v6e)


def _compiler_params():
    return pltpu.CompilerParams(
        dimension_semantics=("parallel",),
        vmem_limit_bytes=_VMEM_LIMIT,
    )


# ----------------------------------------------------------------------------
# In-kernel helpers
# ----------------------------------------------------------------------------
def _instance_norm(y, eps):
    """InstanceNorm (affine=False) over the last axis of a (C, L) f32 tile."""
    inv_l = 1.0 / float(y.shape[1])
    mean = jnp.sum(y, axis=1, keepdims=True) * inv_l
    d = y - mean
    var = jnp.sum(d * d, axis=1, keepdims=True) * inv_l
    return d * jax.lax.rsqrt(var + eps)


def _act(y, slope):
    if slope == 0.0:
        return jnp.maximum(y, 0.0)
    return jnp.where(y >= 0, y, slope * y)


def _slab_max(y, k):
    """Max over the k lane-aligned slices of a (C, k*N) slab -> (C, N)."""
    n = y.shape[1] // k
    m = y[:, :n]
    for j in range(1, k):
        m = jnp.maximum(m, y[:, j * n:(j + 1) * n])
    return m


# ----------------------------------------------------------------------------
# Pallas kernels
# ----------------------------------------------------------------------------
def _graph_conv_in_act_max_kernel(neigh_ref, feat_ref, wc_ref, wn_ref, o_ref,
                                  *, k, slope, eps):
    """Fused GCN conv stage.

    Computes LeakyReLU(IN(W @ [f ; neigh - f])) followed by max over k neighbors,
    with W = [Wa | Wb] folded as (Wa - Wb) @ f + Wb @ neigh (wc = Wa-Wb, wn = Wb).

    neigh_ref: (1, C, k*N) bf16   feat_ref: (1, C, N) bf16
    wc_ref, wn_ref: (Cout, C) bf16   o_ref: (1, Cout, N) bf16
    """
    yc = jnp.dot(wc_ref[...], feat_ref[0], preferred_element_type=jnp.float32)   # (Cout, N)
    y = jnp.dot(wn_ref[...], neigh_ref[0], preferred_element_type=jnp.float32)   # (Cout, k*N)
    y = y + jnp.concatenate([yc] * k, axis=1)
    y = _act(_instance_norm(y, eps), slope)
    o_ref[0] = _slab_max(y, k).astype(o_ref.dtype)


def _ppf_fused_slab_kernel(x_ref, w1_ref, w2_ref, w3_ref, o_ref, *, k, eps):
    """Fused PPF LocalFeatureFused: 3 x (1x1 conv + IN + ReLU) + max over K.

    x_ref: (1, 10, K*N) bf16   w1: (C1, 10)  w2: (C2, C1)  w3: (C3, C2)  (bf16)
    o_ref: (1, C3, N) bf16.  All intermediates stay in VMEM/vregs.
    """
    x = x_ref[0]
    y1 = _act(_instance_norm(
        jnp.dot(w1_ref[...], x, preferred_element_type=jnp.float32), eps), 0.0)
    y2 = _act(_instance_norm(
        jnp.dot(w2_ref[...], y1.astype(jnp.bfloat16),
                preferred_element_type=jnp.float32), eps), 0.0)
    y3 = _act(_instance_norm(
        jnp.dot(w3_ref[...], y2.astype(jnp.bfloat16),
                preferred_element_type=jnp.float32), eps), 0.0)
    o_ref[0] = _slab_max(y3, k).astype(o_ref.dtype)


def _multi_conv_in_act_kernel(*refs, n_in, slope, eps):
    """1x1 conv over a channel-concat expressed as a sum of column-split dots,
    then InstanceNorm + LeakyReLU.  No concat is ever materialized in HBM.

    refs = (x_0..x_{n-1}, w_0..w_{n-1}, o); x_i: (1, Ci, N) bf16, w_i: (Cout, Ci) bf16.
    """
    x_refs = refs[:n_in]
    w_refs = refs[n_in:2 * n_in]
    o_ref = refs[2 * n_in]
    y = None
    for xr, wr in zip(x_refs, w_refs):
        d = jnp.dot(wr[...], xr[0], preferred_element_type=jnp.float32)
        y = d if y is None else y + d
    o_ref[0] = _act(_instance_norm(y, eps), slope).astype(o_ref.dtype)


# ----------------------------------------------------------------------------
# Pallas wrappers
# ----------------------------------------------------------------------------
def graph_conv_in_act_max(neigh_slab, feats, w, slope, k):
    """neigh_slab: (B, C, k*N), feats: (B, C, N), w: (Cout, 2C) -> (B, Cout, N) bf16."""
    B, C, kn = neigh_slab.shape
    N = kn // k
    Cout = w.shape[0]
    wc = (w[:, :C] - w[:, C:]).astype(jnp.bfloat16)   # Wa - Wb (fold center term)
    wn = w[:, C:].astype(jnp.bfloat16)                # Wb
    kernel = functools.partial(_graph_conv_in_act_max_kernel, k=k, slope=slope, eps=_EPS)
    return pl.pallas_call(
        kernel,
        out_shape=jax.ShapeDtypeStruct((B, Cout, N), jnp.bfloat16),
        grid=(B,),
        in_specs=[
            pl.BlockSpec((1, C, kn), lambda bb: (bb, 0, 0)),
            pl.BlockSpec((1, C, N), lambda bb: (bb, 0, 0)),
            pl.BlockSpec((Cout, C), lambda bb: (0, 0)),
            pl.BlockSpec((Cout, C), lambda bb: (0, 0)),
        ],
        out_specs=pl.BlockSpec((1, Cout, N), lambda bb: (bb, 0, 0)),
        compiler_params=_compiler_params(),
    )(neigh_slab.astype(jnp.bfloat16), feats.astype(jnp.bfloat16), wc, wn)


def ppf_fused(x_slab, w1, w2, w3, K):
    """x_slab: (B, 10, K*N) -> (B, C3, N) bf16; three conv+IN+ReLU layers + max over K."""
    B, Ci, kn = x_slab.shape
    N = kn // K
    C3 = w3.shape[0]
    kernel = functools.partial(_ppf_fused_slab_kernel, k=K, eps=_EPS)
    return pl.pallas_call(
        kernel,
        out_shape=jax.ShapeDtypeStruct((B, C3, N), jnp.bfloat16),
        grid=(B,),
        in_specs=[
            pl.BlockSpec((1, Ci, kn), lambda bb: (bb, 0, 0)),
            pl.BlockSpec(w1.shape, lambda bb: (0, 0)),
            pl.BlockSpec(w2.shape, lambda bb: (0, 0)),
            pl.BlockSpec(w3.shape, lambda bb: (0, 0)),
        ],
        out_specs=pl.BlockSpec((1, C3, N), lambda bb: (bb, 0, 0)),
        compiler_params=_compiler_params(),
    )(x_slab.astype(jnp.bfloat16), w1.astype(jnp.bfloat16),
      w2.astype(jnp.bfloat16), w3.astype(jnp.bfloat16))


def multi_pointwise_conv_in_act(xs, ws, slope, out_dtype=jnp.bfloat16):
    """xs: list of (B, Ci, N); ws: list of (Cout, Ci) column blocks of the full weight.
    Computes LeakyReLU(IN(sum_i w_i @ x_i)) -> (B, Cout, N)."""
    n_in = len(xs)
    B, _, N = xs[0].shape
    Cout = ws[0].shape[0]
    kernel = functools.partial(_multi_conv_in_act_kernel, n_in=n_in, slope=slope, eps=_EPS)
    in_specs = (
        [pl.BlockSpec((1, x.shape[1], N), lambda bb: (bb, 0, 0)) for x in xs]
        + [pl.BlockSpec(w.shape, lambda bb: (0, 0)) for w in ws]
    )
    return pl.pallas_call(
        kernel,
        out_shape=jax.ShapeDtypeStruct((B, Cout, N), out_dtype),
        grid=(B,),
        in_specs=in_specs,
        out_specs=pl.BlockSpec((1, Cout, N), lambda bb: (bb, 0, 0)),
        compiler_params=_compiler_params(),
    )(*[x.astype(jnp.bfloat16) for x in xs], *[w.astype(jnp.bfloat16) for w in ws])


# ----------------------------------------------------------------------------
# Plain-JAX geometry glue (data-dependent gathers / top-k / sort)
# ----------------------------------------------------------------------------
def square_dists(p1, p2):
    # p1: (B,N,C), p2: (B,M,C) -> (B,N,M)
    return (jnp.sum(p1 * p1, -1)[:, :, None]
            + jnp.sum(p2 * p2, -1)[:, None, :]
            - 2.0 * jnp.einsum("bnc,bmc->bnm", p1, p2))


def gather_points(points, inds):
    # points: (B,N,C), inds: (B,M,K) -> (B,M,K,C)
    B = points.shape[0]
    bidx = jnp.arange(B).reshape((B,) + (1,) * (inds.ndim - 1))
    return points[bidx, inds]


def gather_neighbors_slab(feats_cf, inds):
    """feats_cf: (B,C,N), inds: (B,N,k) -> (B, C, k*N) with
    out[b, c, j*N + n] = feats_cf[b, c, inds[b, n, j]] (kernel-ready slab layout)."""
    B, C, N = feats_cf.shape
    k = inds.shape[-1]
    idx = jnp.transpose(inds, (0, 2, 1)).reshape(B, 1, k * N)
    idx = jnp.broadcast_to(idx, (B, C, k * N))
    return jnp.take_along_axis(feats_cf, idx, axis=2)


def ball_query(xyz, new_xyz, radius, K):
    # xyz: (B,N,3), new_xyz: (B,M,3) -> (B,M,K) int32
    # new_xyz == xyz here, so each query always contains itself (dist 0),
    # hence grouped_min is always a valid in-range index.
    B, N, _ = xyz.shape
    M = new_xyz.shape[1]
    dists = square_dists(new_xyz, xyz)
    base = jnp.broadcast_to(jnp.arange(N, dtype=jnp.int32)[None, None, :], (B, M, N))
    grouped = jnp.where(dists > radius ** 2, N, base)
    grouped = jnp.sort(grouped, axis=-1)[:, :, :K]
    grouped_min = jnp.broadcast_to(grouped[:, :, 0:1], (B, M, K))
    grouped = jnp.where(grouped == N, grouped_min, grouped)
    return grouped


def angle(v1, v2):
    cross = jnp.stack(
        [v1[..., 1] * v2[..., 2] - v1[..., 2] * v2[..., 1],
         v1[..., 2] * v2[..., 0] - v1[..., 0] * v2[..., 2],
         v1[..., 0] * v2[..., 1] - v1[..., 1] * v2[..., 0]], axis=-1)
    cn = jnp.sqrt(jnp.sum(cross * cross, axis=-1))
    dp = jnp.sum(v1 * v2, axis=-1)
    return jnp.arctan2(cn, dp)


# ----------------------------------------------------------------------------
# GGE sub-modules
# ----------------------------------------------------------------------------
def gcn_forward(coords, feats, params, k):
    # coords: (B,3,N), feats: (B,C,N) -> (B,C,N) bf16
    B, C, N = feats.shape
    coords_t = jnp.transpose(coords, (0, 2, 1))                 # (B,N,3)

    # kNN (same for both graph stages since coords are unchanged).
    sq = square_dists(coords_t, coords_t)
    kk = min(N, k + 1)
    _, inds = jax.lax.top_k(-sq, kk)      # smallest distances (self first, sorted)
    inds = inds[:, :, 1:]                 # drop self
    kp = inds.shape[-1]

    feats_bf = feats.astype(jnp.bfloat16)

    n1 = gather_neighbors_slab(feats_bf, inds)                          # (B, C, k*N) bf16
    f1 = graph_conv_in_act_max(n1, feats_bf, params["gcn_w1"], 0.2, kp)  # (B, C, N) bf16

    n2 = gather_neighbors_slab(f1, inds)                                 # (B, C, k*N) bf16
    f2 = graph_conv_in_act_max(n2, f1, params["gcn_w2"], 0.2, kp)        # (B, 2C, N) bf16

    # conv3 over concat([feats, f1, f2]) folded into one kernel (column-split weight).
    w3 = params["gcn_w3"]
    return multi_pointwise_conv_in_act(
        [feats_bf, f1, f2],
        [w3[:, :C], w3[:, C:2 * C], w3[:, 2 * C:]],
        0.2)


def ppf_forward(coords, normals, params, K, radius):
    # coords, normals: (B,3,N) -> (B, feats_dim//2, N) bf16
    xyz = jnp.transpose(coords, (0, 2, 1))                      # (B,N,3)
    nrm = jnp.transpose(normals, (0, 2, 1))                     # (B,N,3)
    B, N, _ = xyz.shape

    grouped_inds = ball_query(xyz, xyz, radius, K)              # (B,N,K)
    grouped_xyz = gather_points(xyz, grouped_inds) - xyz[:, :, None, :]   # (B,N,K,3)
    grouped_nrm = gather_points(nrm, grouped_inds)                        # (B,N,K,3)

    nr_d = angle(nrm[:, :, None, :], grouped_xyz)
    ni_d = angle(grouped_nrm, grouped_xyz)
    nr_ni = angle(nrm[:, :, None, :], grouped_nrm)
    d_norm = jnp.sqrt(jnp.sum(grouped_xyz * grouped_xyz, axis=-1))
    ppf_feat = jnp.stack([nr_d, ni_d, nr_ni, d_norm], axis=-1)            # (B,N,K,4)

    coords_rep = jnp.broadcast_to(xyz[:, :, None, :], (B, N, K, 3))
    new_points = jnp.concatenate([coords_rep, grouped_xyz, ppf_feat], axis=-1)  # (B,N,K,10)

    # bf16 before the transpose; slab layout (B, 10, K*N) with column j*N + n.
    slab = jnp.transpose(new_points.astype(jnp.bfloat16), (0, 3, 2, 1)).reshape(B, 10, K * N)
    return ppf_fused(slab, params["ppf_w1"], params["ppf_w2"], params["ppf_w3"], K)


def gge_forward(coords, feats, normals, params, gcn_k, ppf_k, radius):
    C = feats.shape[1]
    feats_ppf = ppf_forward(coords, normals, params, ppf_k, radius)   # (B, C//2, N) bf16
    feats_gcn = gcn_forward(coords, feats, params, gcn_k)             # (B, C, N) bf16

    # fused layer 1: conv over concat([ppf, gcn]) folded (bias is a no-op under IN).
    w1 = params["fused_w1"]
    x = multi_pointwise_conv_in_act(
        [feats_ppf, feats_gcn], [w1[:, :C // 2], w1[:, C // 2:]], 0.2)
    # fused layer 2 -> model output in f32.
    x = multi_pointwise_conv_in_act([x], [params["fused_w2"]], 0.2, out_dtype=jnp.float32)
    return x                                                          # (B, C, N)


# ----------------------------------------------------------------------------
# Deterministic parameter init (bottleneck=True).  Conv biases before
# InstanceNorm(affine=False) cancel exactly, so no bias params are kept.
# ----------------------------------------------------------------------------
def make_params(feats_dim):
    def rnd(i, shape, scale=0.1):
        return (scale * jax.random.normal(jax.random.PRNGKey(i), shape)).astype(jnp.float32)

    C = feats_dim
    half = C // 2
    return {
        # GCN (Conv2d/Conv1d, bias=False)
        "gcn_w1": rnd(1, (C, 2 * C)),
        "gcn_w2": rnd(2, (2 * C, 2 * C)),
        "gcn_w3": rnd(3, (C, 4 * C)),
        # PPF LocalFeatureFused (bias=False), out_dims = [C//2, C, C//2]
        "ppf_w1": rnd(4, (half, 10)),
        "ppf_w2": rnd(5, (C, half)),
        "ppf_w3": rnd(6, (half, C)),
        # fused (Conv1d; bias dropped — exact no-op under InstanceNorm)
        "fused_w1": rnd(7, (C + half, C + half)),
        "fused_w2": rnd(9, (C, C + half)),
    }


# ----------------------------------------------------------------------------
# Main
# ----------------------------------------------------------------------------
if __name__ == "__main__":
    B = 2
    N = 128          # multiple of 128 -> lane-dense kernel inputs/outputs
    feats_dim = 32
    gcn_k = 6
    ppf_k = 8
    radius = 2.0

    key = jax.random.PRNGKey(0)
    k1, k2, k3 = jax.random.split(key, 3)
    coords = jax.random.normal(k1, (B, 3, N), dtype=jnp.float32)
    feats = jax.random.normal(k2, (B, feats_dim, N), dtype=jnp.float32)
    normals_raw = jax.random.normal(k3, (B, 3, N), dtype=jnp.float32)
    normals = normals_raw / jnp.linalg.norm(normals_raw, axis=1, keepdims=True)

    params = make_params(feats_dim)

    fwd = jax.jit(functools.partial(gge_forward, gcn_k=gcn_k, ppf_k=ppf_k, radius=radius))
    out = fwd(coords, feats, normals, params)
    out = jax.block_until_ready(out)

    assert out.shape == (B, feats_dim, N), out.shape
    assert bool(jnp.all(jnp.isfinite(out)))
    print("KERNEL_OK")
</pallas_src>

<mosaic_0001>
module attributes {stable_mosaic.version = 11 : i64} {
  func.func @_graph_conv_in_act_max_kernel(%arg0: i32, %arg1: memref<1x32x768xbf16, #tpu.memory_space<vmem>>, %arg2: memref<1x32x128xbf16, #tpu.memory_space<vmem>>, %arg3: memref<32x32xbf16, #tpu.memory_space<vmem>>, %arg4: memref<32x32xbf16, #tpu.memory_space<vmem>>, %arg5: memref<1x32x128xbf16, #tpu.memory_space<vmem>>) attributes {dimension_semantics = [#tpu.dimension_semantics<parallel>], iteration_bounds = array<i64: 2>, scalar_prefetch = 0 : i64, scratch_operands = 0 : i64, tpu.core_type = #tpu.core_type<tc>, window_params = [{transform_indices = @transform_0, window_bounds = array<i64: 1, 32, 768>}, {transform_indices = @transform_1, window_bounds = array<i64: 1, 32, 128>}, {pipeline_mode = #tpu.pipeline_mode<synchronous>, transform_indices = @transform_2, window_bounds = array<i64: 32, 32>}, {pipeline_mode = #tpu.pipeline_mode<synchronous>, transform_indices = @transform_3, window_bounds = array<i64: 32, 32>}, {transform_indices = @transform_4, window_bounds = array<i64: 1, 32, 128>}]} {
    %c0 = arith.constant 0 : index
    %c0_0 = arith.constant 0 : index
    %0 = vector.load %arg3[%c0, %c0_0] : memref<32x32xbf16, #tpu.memory_space<vmem>>, vector<32x32xbf16>
    %c0_1 = arith.constant 0 : index
    %c0_2 = arith.constant 0 : index
    %c0_3 = arith.constant 0 : index
    %1 = vector.load %arg2[%c0_1, %c0_2, %c0_3] : memref<1x32x128xbf16, #tpu.memory_space<vmem>>, vector<1x32x128xbf16>
    %2 = vector.shape_cast %1 : vector<1x32x128xbf16> to vector<32x128xbf16>
    %cst = arith.constant dense<0.000000e+00> : vector<32x128xf32>
    %3 = tpu.matmul %0, %2, %cst {dimension_numbers = #tpu.dot_dimension_numbers<[1], [0], [0], [1], [0, 0, 1, 1], [], []>} : vector<32x32xbf16>, vector<32x128xbf16>, vector<32x128xf32> -> vector<32x128xf32>
    %c0_4 = arith.constant 0 : index
    %c0_5 = arith.constant 0 : index
    %4 = vector.load %arg4[%c0_4, %c0_5] : memref<32x32xbf16, #tpu.memory_space<vmem>>, vector<32x32xbf16>
    %c0_6 = arith.constant 0 : index
    %c0_7 = arith.constant 0 : index
    %c0_8 = arith.constant 0 : index
    %5 = vector.load %arg1[%c0_6, %c0_7, %c0_8] : memref<1x32x768xbf16, #tpu.memory_space<vmem>>, vector<1x32x768xbf16>
    %6 = vector.shape_cast %5 : vector<1x32x768xbf16> to vector<32x768xbf16>
    %cst_9 = arith.constant dense<0.000000e+00> : vector<32x768xf32>
    %7 = tpu.matmul %4, %6, %cst_9 {dimension_numbers = #tpu.dot_dimension_numbers<[1], [0], [0], [1], [0, 0, 1, 1], [], []>} : vector<32x32xbf16>, vector<32x768xbf16>, vector<32x768xf32> -> vector<32x768xf32>
    %8 = tpu.concatenate %3, %3, %3, %3, %3, %3 in 1 : vector<32x128xf32>, vector<32x128xf32>, vector<32x128xf32>, vector<32x128xf32>, vector<32x128xf32>, vector<32x128xf32> -> vector<32x768xf32>
    %9 = arith.addf %7, %8 : vector<32x768xf32>
    %cst_10 = arith.constant dense<0.000000e+00> : vector<32xf32>
    %10 = vector.multi_reduction <add>, %9, %cst_10 [1] : vector<32x768xf32> to vector<32xf32>
    %11 = vector.shape_cast %10 : vector<32xf32> to vector<32x1xf32>
    %cst_11 = arith.constant 0.00130208337 : f32
    %12 = vector.broadcast %cst_11 : f32 to vector<32x1xf32>
    %13 = arith.mulf %11, %12 : vector<32x1xf32>
    %14 = vector.broadcast %13 : vector<32x1xf32> to vector<32x768xf32>
    %15 = arith.subf %9, %14 : vector<32x768xf32>
    %16 = arith.mulf %15, %15 : vector<32x768xf32>
    %cst_12 = arith.constant dense<0.000000e+00> : vector<32xf32>
    %17 = vector.multi_reduction <add>, %16, %cst_12 [1] : vector<32x768xf32> to vector<32xf32>
    %18 = vector.shape_cast %17 : vector<32xf32> to vector<32x1xf32>
    %cst_13 = arith.constant 0.00130208337 : f32
    %19 = vector.broadcast %cst_13 : f32 to vector<32x1xf32>
    %20 = arith.mulf %18, %19 : vector<32x1xf32>
    %cst_14 = arith.constant 9.99999974E-6 : f32
    %21 = vector.broadcast %cst_14 : f32 to vector<32x1xf32>
    %22 = arith.addf %20, %21 : vector<32x1xf32>
    %23 = math.rsqrt %22 : vector<32x1xf32>
    %24 = vector.broadcast %23 : vector<32x1xf32> to vector<32x768xf32>
    %25 = arith.mulf %15, %24 : vector<32x768xf32>
    %cst_15 = arith.constant 0.000000e+00 : f32
    %26 = vector.broadcast %cst_15 : f32 to vector<32x768xf32>
    %27 = arith.cmpf oge, %25, %26 : vector<32x768xf32>
    %cst_16 = arith.constant 2.000000e-01 : f32
    %28 = vector.broadcast %cst_16 : f32 to vector<32x768xf32>
    %29 = arith.mulf %28, %25 : vector<32x768xf32>
    %30 = arith.select %27, %25, %29 : vector<32x768xi1>, vector<32x768xf32>
    %31 = vector.extract_strided_slice %30 {offsets = [0, 0], sizes = [32, 128], strides = [1, 1]} : vector<32x768xf32> to vector<32x128xf32>
    %32 = vector.extract_strided_slice %30 {offsets = [0, 128], sizes = [32, 128], strides = [1, 1]} : vector<32x768xf32> to vector<32x128xf32>
    %33 = arith.maximumf %31, %32 : vector<32x128xf32>
    %34 = vector.extract_strided_slice %30 {offsets = [0, 256], sizes = [32, 128], strides = [1, 1]} : vector<32x768xf32> to vector<32x128xf32>
    %35 = arith.maximumf %33, %34 : vector<32x128xf32>
    %36 = vector.extract_strided_slice %30 {offsets = [0, 384], sizes = [32, 128], strides = [1, 1]} : vector<32x768xf32> to vector<32x128xf32>
    %37 = arith.maximumf %35, %36 : vector<32x128xf32>
    %38 = vector.extract_strided_slice %30 {offsets = [0, 512], sizes = [32, 128], strides = [1, 1]} : vector<32x768xf32> to vector<32x128xf32>
    %39 = arith.maximumf %37, %38 : vector<32x128xf32>
    %40 = vector.extract_strided_slice %30 {offsets = [0, 640], sizes = [32, 128], strides = [1, 1]} : vector<32x768xf32> to vector<32x128xf32>
    %41 = arith.maximumf %39, %40 : vector<32x128xf32>
    %42 = arith.truncf %41 : vector<32x128xf32> to vector<32x128xbf16>
    %c0_17 = arith.constant 0 : index
    %c0_18 = arith.constant 0 : index
    %c0_19 = arith.constant 0 : index
    %43 = vector.load %arg5[%c0_17, %c0_18, %c0_19] : memref<1x32x128xbf16, #tpu.memory_space<vmem>>, vector<1x32x128xbf16>
    %44 = vector.shape_cast %43 : vector<1x32x128xbf16> to vector<32x128xbf16>
    %45 = vector.shape_cast %42 : vector<32x128xbf16> to vector<1x32x128xbf16>
    tpu.vector_store %arg5[%c0_17, %c0_18, %c0_19], %45 {strides = array<i32>} : memref<1x32x128xbf16, #tpu.memory_space<vmem>>, vector<1x32x128xbf16>,
    return
  }
  func.func @transform_0(%arg0: i32) -> (i32, i32, i32) {
    %c0_i32 = arith.constant 0 : i32
    %c0_i32_0 = arith.constant 0 : i32
    %c0_i32_1 = arith.constant 0 : i32
    return %arg0, %c0_i32, %c0_i32_0 : i32, i32, i32
  }
  func.func @transform_1(%arg0: i32) -> (i32, i32, i32) {
    %c0_i32 = arith.constant 0 : i32
    %c0_i32_0 = arith.constant 0 : i32
    %c0_i32_1 = arith.constant 0 : i32
    return %arg0, %c0_i32, %c0_i32_0 : i32, i32, i32
  }
  func.func @transform_2(%arg0: i32) -> (i32, i32) {
    %c0_i32 = arith.constant 0 : i32
    %c0_i32_0 = arith.constant 0 : i32
    %c0_i32_1 = arith.constant 0 : i32
    return %c0_i32, %c0_i32_0 : i32, i32
  }
  func.func @transform_3(%arg0: i32) -> (i32, i32) {
    %c0_i32 = arith.constant 0 : i32
    %c0_i32_0 = arith.constant 0 : i32
    %c0_i32_1 = arith.constant 0 : i32
    return %c0_i32, %c0_i32_0 : i32, i32
  }
  func.func @transform_4(%arg0: i32) -> (i32, i32, i32) {
    %c0_i32 = arith.constant 0 : i32
    %c0_i32_0 = arith.constant 0 : i32
    %c0_i32_1 = arith.constant 0 : i32
    return %arg0, %c0_i32, %c0_i32_0 : i32, i32, i32
  }
}

module attributes {stable_mosaic.version = 11 : i64} {
  func.func @_graph_conv_in_act_max_kernel(%arg0: i32, %arg1: memref<1x32x768xbf16, #tpu.memory_space<vmem>>, %arg2: memref<1x32x128xbf16, #tpu.memory_space<vmem>>, %arg3: memref<64x32xbf16, #tpu.memory_space<vmem>>, %arg4: memref<64x32xbf16, #tpu.memory_space<vmem>>, %arg5: memref<1x64x128xbf16, #tpu.memory_space<vmem>>) attributes {dimension_semantics = [#tpu.dimension_semantics<parallel>], iteration_bounds = array<i64: 2>, scalar_prefetch = 0 : i64, scratch_operands = 0 : i64, tpu.core_type = #tpu.core_type<tc>, window_params = [{transform_indices = @transform_0, window_bounds = array<i64: 1, 32, 768>}, {transform_indices = @transform_1, window_bounds = array<i64: 1, 32, 128>}, {pipeline_mode = #tpu.pipeline_mode<synchronous>, transform_indices = @transform_2, window_bounds = array<i64: 64, 32>}, {pipeline_mode = #tpu.pipeline_mode<synchronous>, transform_indices = @transform_3, window_bounds = array<i64: 64, 32>}, {transform_indices = @transform_4, window_bounds = array<i64: 1, 64, 128>}]} {
    %c0 = arith.constant 0 : index
    %c0_0 = arith.constant 0 : index
    %0 = vector.load %arg3[%c0, %c0_0] : memref<64x32xbf16, #tpu.memory_space<vmem>>, vector<64x32xbf16>
    %c0_1 = arith.constant 0 : index
    %c0_2 = arith.constant 0 : index
    %c0_3 = arith.constant 0 : index
    %1 = vector.load %arg2[%c0_1, %c0_2, %c0_3] : memref<1x32x128xbf16, #tpu.memory_space<vmem>>, vector<1x32x128xbf16>
    %2 = vector.shape_cast %1 : vector<1x32x128xbf16> to vector<32x128xbf16>
    %cst = arith.constant dense<0.000000e+00> : vector<64x128xf32>
    %3 = tpu.matmul %0, %2, %cst {dimension_numbers = #tpu.dot_dimension_numbers<[1], [0], [0], [1], [0, 0, 1, 1], [], []>} : vector<64x32xbf16>, vector<32x128xbf16>, vector<64x128xf32> -> vector<64x128xf32>
    %c0_4 = arith.constant 0 : index
    %c0_5 = arith.constant 0 : index
    %4 = vector.load %arg4[%c0_4, %c0_5] : memref<64x32xbf16, #tpu.memory_space<vmem>>, vector<64x32xbf16>
    %c0_6 = arith.constant 0 : index
    %c0_7 = arith.constant 0 : index
    %c0_8 = arith.constant 0 : index
    %5 = vector.load %arg1[%c0_6, %c0_7, %c0_8] : memref<1x32x768xbf16, #tpu.memory_space<vmem>>, vector<1x32x768xbf16>
    %6 = vector.shape_cast %5 : vector<1x32x768xbf16> to vector<32x768xbf16>
    %cst_9 = arith.constant dense<0.000000e+00> : vector<64x768xf32>
    %7 = tpu.matmul %4, %6, %cst_9 {dimension_numbers = #tpu.dot_dimension_numbers<[1], [0], [0], [1], [0, 0, 1, 1], [], []>} : vector<64x32xbf16>, vector<32x768xbf16>, vector<64x768xf32> -> vector<64x768xf32>
    %8 = tpu.concatenate %3, %3, %3, %3, %3, %3 in 1 : vector<64x128xf32>, vector<64x128xf32>, vector<64x128xf32>, vector<64x128xf32>, vector<64x128xf32>, vector<64x128xf32> -> vector<64x768xf32>
    %9 = arith.addf %7, %8 : vector<64x768xf32>
    %cst_10 = arith.constant dense<0.000000e+00> : vector<64xf32>
    %10 = vector.multi_reduction <add>, %9, %cst_10 [1] : vector<64x768xf32> to vector<64xf32>
    %11 = vector.shape_cast %10 : vector<64xf32> to vector<64x1xf32>
    %cst_11 = arith.constant 0.00130208337 : f32
    %12 = vector.broadcast %cst_11 : f32 to vector<64x1xf32>
    %13 = arith.mulf %11, %12 : vector<64x1xf32>
    %14 = vector.broadcast %13 : vector<64x1xf32> to vector<64x768xf32>
    %15 = arith.subf %9, %14 : vector<64x768xf32>
    %16 = arith.mulf %15, %15 : vector<64x768xf32>
    %cst_12 = arith.constant dense<0.000000e+00> : vector<64xf32>
    %17 = vector.multi_reduction <add>, %16, %cst_12 [1] : vector<64x768xf32> to vector<64xf32>
    %18 = vector.shape_cast %17 : vector<64xf32> to vector<64x1xf32>
    %cst_13 = arith.constant 0.00130208337 : f32
    %19 = vector.broadcast %cst_13 : f32 to vector<64x1xf32>
    %20 = arith.mulf %18, %19 : vector<64x1xf32>
    %cst_14 = arith.constant 9.99999974E-6 : f32
    %21 = vector.broadcast %cst_14 : f32 to vector<64x1xf32>
    %22 = arith.addf %20, %21 : vector<64x1xf32>
    %23 = math.rsqrt %22 : vector<64x1xf32>
    %24 = vector.broadcast %23 : vector<64x1xf32> to vector<64x768xf32>
    %25 = arith.mulf %15, %24 : vector<64x768xf32>
    %cst_15 = arith.constant 0.000000e+00 : f32
    %26 = vector.broadcast %cst_15 : f32 to vector<64x768xf32>
    %27 = arith.cmpf oge, %25, %26 : vector<64x768xf32>
    %cst_16 = arith.constant 2.000000e-01 : f32
    %28 = vector.broadcast %cst_16 : f32 to vector<64x768xf32>
    %29 = arith.mulf %28, %25 : vector<64x768xf32>
    %30 = arith.select %27, %25, %29 : vector<64x768xi1>, vector<64x768xf32>
    %31 = vector.extract_strided_slice %30 {offsets = [0, 0], sizes = [64, 128], strides = [1, 1]} : vector<64x768xf32> to vector<64x128xf32>
    %32 = vector.extract_strided_slice %30 {offsets = [0, 128], sizes = [64, 128], strides = [1, 1]} : vector<64x768xf32> to vector<64x128xf32>
    %33 = arith.maximumf %31, %32 : vector<64x128xf32>
    %34 = vector.extract_strided_slice %30 {offsets = [0, 256], sizes = [64, 128], strides = [1, 1]} : vector<64x768xf32> to vector<64x128xf32>
    %35 = arith.maximumf %33, %34 : vector<64x128xf32>
    %36 = vector.extract_strided_slice %30 {offsets = [0, 384], sizes = [64, 128], strides = [1, 1]} : vector<64x768xf32> to vector<64x128xf32>
    %37 = arith.maximumf %35, %36 : vector<64x128xf32>
    %38 = vector.extract_strided_slice %30 {offsets = [0, 512], sizes = [64, 128], strides = [1, 1]} : vector<64x768xf32> to vector<64x128xf32>
    %39 = arith.maximumf %37, %38 : vector<64x128xf32>
    %40 = vector.extract_strided_slice %30 {offsets = [0, 640], sizes = [64, 128], strides = [1, 1]} : vector<64x768xf32> to vector<64x128xf32>
    %41 = arith.maximumf %39, %40 : vector<64x128xf32>
    %42 = arith.truncf %41 : vector<64x128xf32> to vector<64x128xbf16>
    %c0_17 = arith.constant 0 : index
    %c0_18 = arith.constant 0 : index
    %c0_19 = arith.constant 0 : index
    %43 = vector.load %arg5[%c0_17, %c0_18, %c0_19] : memref<1x64x128xbf16, #tpu.memory_space<vmem>>, vector<1x64x128xbf16>
    %44 = vector.shape_cast %43 : vector<1x64x128xbf16> to vector<64x128xbf16>
    %45 = vector.shape_cast %42 : vector<64x128xbf16> to vector<1x64x128xbf16>
    tpu.vector_store %arg5[%c0_17, %c0_18, %c0_19], %45 {strides = array<i32>} : memref<1x64x128xbf16, #tpu.memory_space<vmem>>, vector<1x64x128xbf16>,
    return
  }
  func.func @transform_0(%arg0: i32) -> (i32, i32, i32) {
    %c0_i32 = arith.constant 0 : i32
    %c0_i32_0 = arith.constant 0 : i32
    %c0_i32_1 = arith.constant 0 : i32
    return %arg0, %c0_i32, %c0_i32_0 : i32, i32, i32
  }
  func.func @transform_1(%arg0: i32) -> (i32, i32, i32) {
    %c0_i32 = arith.constant 0 : i32
    %c0_i32_0 = arith.constant 0 : i32
    %c0_i32_1 = arith.constant 0 : i32
    return %arg0, %c0_i32, %c0_i32_0 : i32, i32, i32
  }
  func.func @transform_2(%arg0: i32) -> (i32, i32) {
    %c0_i32 = arith.constant 0 : i32
    %c0_i32_0 = arith.constant 0 : i32
    %c0_i32_1 = arith.constant 0 : i32
    return %c0_i32, %c0_i32_0 : i32, i32
  }
  func.func @transform_3(%arg0: i32) -> (i32, i32) {
    %c0_i32 = arith.constant 0 : i32
    %c0_i32_0 = arith.constant 0 : i32
    %c0_i32_1 = arith.constant 0 : i32
    return %c0_i32, %c0_i32_0 : i32, i32
  }
  func.func @transform_4(%arg0: i32) -> (i32, i32, i32) {
    %c0_i32 = arith.constant 0 : i32
    %c0_i32_0 = arith.constant 0 : i32
    %c0_i32_1 = arith.constant 0 : i32
    return %arg0, %c0_i32, %c0_i32_0 : i32, i32, i32
  }
}

module attributes {stable_mosaic.version = 11 : i64} {
  func.func @_multi_conv_in_act_kernel(%arg0: i32, %arg1: memref<1x32x128xbf16, #tpu.memory_space<vmem>>, %arg2: memref<1x32x128xbf16, #tpu.memory_space<vmem>>, %arg3: memref<1x64x128xbf16, #tpu.memory_space<vmem>>, %arg4: memref<32x32xbf16, #tpu.memory_space<vmem>>, %arg5: memref<32x32xbf16, #tpu.memory_space<vmem>>, %arg6: memref<32x64xbf16, #tpu.memory_space<vmem>>, %arg7: memref<1x32x128xbf16, #tpu.memory_space<vmem>>) attributes {dimension_semantics = [#tpu.dimension_semantics<parallel>], iteration_bounds = array<i64: 2>, scalar_prefetch = 0 : i64, scratch_operands = 0 : i64, tpu.core_type = #tpu.core_type<tc>, window_params = [{transform_indices = @transform_0, window_bounds = array<i64: 1, 32, 128>}, {transform_indices = @transform_1, window_bounds = array<i64: 1, 32, 128>}, {transform_indices = @transform_2, window_bounds = array<i64: 1, 64, 128>}, {pipeline_mode = #tpu.pipeline_mode<synchronous>, transform_indices = @transform_3, window_bounds = array<i64: 32, 32>}, {pipeline_mode = #tpu.pipeline_mode<synchronous>, transform_indices = @transform_4, window_bounds = array<i64: 32, 32>}, {pipeline_mode = #tpu.pipeline_mode<synchronous>, transform_indices = @transform_5, window_bounds = array<i64: 32, 64>}, {transform_indices = @transform_6, window_bounds = array<i64: 1, 32, 128>}]} {
    %c0 = arith.constant 0 : index
    %c0_0 = arith.constant 0 : index
    %0 = vector.load %arg4[%c0, %c0_0] : memref<32x32xbf16, #tpu.memory_space<vmem>>, vector<32x32xbf16>
    %c0_1 = arith.constant 0 : index
    %c0_2 = arith.constant 0 : index
    %c0_3 = arith.constant 0 : index
    %1 = vector.load %arg1[%c0_1, %c0_2, %c0_3] : memref<1x32x128xbf16, #tpu.memory_space<vmem>>, vector<1x32x128xbf16>
    %2 = vector.shape_cast %1 : vector<1x32x128xbf16> to vector<32x128xbf16>
    %cst = arith.constant dense<0.000000e+00> : vector<32x128xf32>
    %3 = tpu.matmul %0, %2, %cst {dimension_numbers = #tpu.dot_dimension_numbers<[1], [0], [0], [1], [0, 0, 1, 1], [], []>} : vector<32x32xbf16>, vector<32x128xbf16>, vector<32x128xf32> -> vector<32x128xf32>
    %c0_4 = arith.constant 0 : index
    %c0_5 = arith.constant 0 : index
    %4 = vector.load %arg5[%c0_4, %c0_5] : memref<32x32xbf16, #tpu.memory_space<vmem>>, vector<32x32xbf16>
    %c0_6 = arith.constant 0 : index
    %c0_7 = arith.constant 0 : index
    %c0_8 = arith.constant 0 : index
    %5 = vector.load %arg2[%c0_6, %c0_7, %c0_8] : memref<1x32x128xbf16, #tpu.memory_space<vmem>>, vector<1x32x128xbf16>
    %6 = vector.shape_cast %5 : vector<1x32x128xbf16> to vector<32x128xbf16>
    %cst_9 = arith.constant dense<0.000000e+00> : vector<32x128xf32>
    %7 = tpu.matmul %4, %6, %cst_9 {dimension_numbers = #tpu.dot_dimension_numbers<[1], [0], [0], [1], [0, 0, 1, 1], [], []>} : vector<32x32xbf16>, vector<32x128xbf16>, vector<32x128xf32> -> vector<32x128xf32>
    %8 = arith.addf %3, %7 : vector<32x128xf32>
    %c0_10 = arith.constant 0 : index
    %c0_11 = arith.constant 0 : index
    %9 = vector.load %arg6[%c0_10, %c0_11] : memref<32x64xbf16, #tpu.memory_space<vmem>>, vector<32x64xbf16>
    %c0_12 = arith.constant 0 : index
    %c0_13 = arith.constant 0 : index
    %c0_14 = arith.constant 0 : index
    %10 = vector.load %arg3[%c0_12, %c0_13, %c0_14] : memref<1x64x128xbf16, #tpu.memory_space<vmem>>, vector<1x64x128xbf16>
    %11 = vector.shape_cast %10 : vector<1x64x128xbf16> to vector<64x128xbf16>
    %cst_15 = arith.constant dense<0.000000e+00> : vector<32x128xf32>
    %12 = tpu.matmul %9, %11, %cst_15 {dimension_numbers = #tpu.dot_dimension_numbers<[1], [0], [0], [1], [0, 0, 1, 1], [], []>} : vector<32x64xbf16>, vector<64x128xbf16>, vector<32x128xf32> -> vector<32x128xf32>
    %13 = arith.addf %8, %12 : vector<32x128xf32>
    %cst_16 = arith.constant dense<0.000000e+00> : vector<32xf32>
    %14 = vector.multi_reduction <add>, %13, %cst_16 [1] : vector<32x128xf32> to vector<32xf32>
    %15 = vector.shape_cast %14 : vector<32xf32> to vector<32x1xf32>
    %cst_17 = arith.constant 7.812500e-03 : f32
    %16 = vector.broadcast %cst_17 : f32 to vector<32x1xf32>
    %17 = arith.mulf %15, %16 : vector<32x1xf32>
    %18 = vector.broadcast %17 : vector<32x1xf32> to vector<32x128xf32>
    %19 = arith.subf %13, %18 : vector<32x128xf32>
    %20 = arith.mulf %19, %19 : vector<32x128xf32>
    %cst_18 = arith.constant dense<0.000000e+00> : vector<32xf32>
    %21 = vector.multi_reduction <add>, %20, %cst_18 [1] : vector<32x128xf32> to vector<32xf32>
    %22 = vector.shape_cast %21 : vector<32xf32> to vector<32x1xf32>
    %cst_19 = arith.constant 7.812500e-03 : f32
    %23 = vector.broadcast %cst_19 : f32 to vector<32x1xf32>
    %24 = arith.mulf %22, %23 : vector<32x1xf32>
    %cst_20 = arith.constant 9.99999974E-6 : f32
    %25 = vector.broadcast %cst_20 : f32 to vector<32x1xf32>
    %26 = arith.addf %24, %25 : vector<32x1xf32>
    %27 = math.rsqrt %26 : vector<32x1xf32>
    %28 = vector.broadcast %27 : vector<32x1xf32> to vector<32x128xf32>
    %29 = arith.mulf %19, %28 : vector<32x128xf32>
    %cst_21 = arith.constant 0.000000e+00 : f32
    %30 = vector.broadcast %cst_21 : f32 to vector<32x128xf32>
    %31 = arith.cmpf oge, %29, %30 : vector<32x128xf32>
    %cst_22 = arith.constant 2.000000e-01 : f32
    %32 = vector.broadcast %cst_22 : f32 to vector<32x128xf32>
    %33 = arith.mulf %32, %29 : vector<32x128xf32>
    %34 = arith.select %31, %29, %33 : vector<32x128xi1>, vector<32x128xf32>
    %35 = arith.truncf %34 : vector<32x128xf32> to vector<32x128xbf16>
    %c0_23 = arith.constant 0 : index
    %c0_24 = arith.constant 0 : index
    %c0_25 = arith.constant 0 : index
    %36 = vector.load %arg7[%c0_23, %c0_24, %c0_25] : memref<1x32x128xbf16, #tpu.memory_space<vmem>>, vector<1x32x128xbf16>
    %37 = vector.shape_cast %36 : vector<1x32x128xbf16> to vector<32x128xbf16>
    %38 = vector.shape_cast %35 : vector<32x128xbf16> to vector<1x32x128xbf16>
    tpu.vector_store %arg7[%c0_23, %c0_24, %c0_25], %38 {strides = array<i32>} : memref<1x32x128xbf16, #tpu.memory_space<vmem>>, vector<1x32x128xbf16>,
    return
  }
  func.func @transform_0(%arg0: i32) -> (i32, i32, i32) {
    %c0_i32 = arith.constant 0 : i32
    %c0_i32_0 = arith.constant 0 : i32
    %c0_i32_1 = arith.constant 0 : i32
    return %arg0, %c0_i32, %c0_i32_0 : i32, i32, i32
  }
  func.func @transform_1(%arg0: i32) -> (i32, i32, i32) {
    %c0_i32 = arith.constant 0 : i32
    %c0_i32_0 = arith.constant 0 : i32
    %c0_i32_1 = arith.constant 0 : i32
    return %arg0, %c0_i32, %c0_i32_0 : i32, i32, i32
  }
  func.func @transform_2(%arg0: i32) -> (i32, i32, i32) {
    %c0_i32 = arith.constant 0 : i32
    %c0_i32_0 = arith.constant 0 : i32
    %c0_i32_1 = arith.constant 0 : i32
    return %arg0, %c0_i32, %c0_i32_0 : i32, i32, i32
  }
  func.func @transform_3(%arg0: i32) -> (i32, i32) {
    %c0_i32 = arith.constant 0 : i32
    %c0_i32_0 = arith.constant 0 : i32
    %c0_i32_1 = arith.constant 0 : i32
    return %c0_i32, %c0_i32_0 : i32, i32
  }
  func.func @transform_4(%arg0: i32) -> (i32, i32) {
    %c0_i32 = arith.constant 0 : i32
    %c0_i32_0 = arith.constant 0 : i32
    %c0_i32_1 = arith.constant 0 : i32
    return %c0_i32, %c0_i32_0 : i32, i32
  }
  func.func @transform_5(%arg0: i32) -> (i32, i32) {
    %c0_i32 = arith.constant 0 : i32
    %c0_i32_0 = arith.constant 0 : i32
    %c0_i32_1 = arith.constant 0 : i32
    return %c0_i32, %c0_i32_0 : i32, i32
  }
  func.func @transform_6(%arg0: i32) -> (i32, i32, i32) {
    %c0_i32 = arith.constant 0 : i32
    %c0_i32_0 = arith.constant 0 : i32
    %c0_i32_1 = arith.constant 0 : i32
    return %arg0, %c0_i32, %c0_i32_0 : i32, i32, i32
  }
}

module attributes {stable_mosaic.version = 11 : i64} {
  func.func @_ppf_fused_slab_kernel(%arg0: i32, %arg1: memref<1x10x1024xbf16, #tpu.memory_space<vmem>>, %arg2: memref<16x10xbf16, #tpu.memory_space<vmem>>, %arg3: memref<32x16xbf16, #tpu.memory_space<vmem>>, %arg4: memref<16x32xbf16, #tpu.memory_space<vmem>>, %arg5: memref<1x16x128xbf16, #tpu.memory_space<vmem>>) attributes {dimension_semantics = [#tpu.dimension_semantics<parallel>], iteration_bounds = array<i64: 2>, scalar_prefetch = 0 : i64, scratch_operands = 0 : i64, tpu.core_type = #tpu.core_type<tc>, window_params = [{transform_indices = @transform_0, window_bounds = array<i64: 1, 10, 1024>}, {pipeline_mode = #tpu.pipeline_mode<synchronous>, transform_indices = @transform_1, window_bounds = array<i64: 16, 10>}, {pipeline_mode = #tpu.pipeline_mode<synchronous>, transform_indices = @transform_2, window_bounds = array<i64: 32, 16>}, {pipeline_mode = #tpu.pipeline_mode<synchronous>, transform_indices = @transform_3, window_bounds = array<i64: 16, 32>}, {transform_indices = @transform_4, window_bounds = array<i64: 1, 16, 128>}]} {
    %c0 = arith.constant 0 : index
    %c0_0 = arith.constant 0 : index
    %c0_1 = arith.constant 0 : index
    %0 = vector.load %arg1[%c0, %c0_0, %c0_1] : memref<1x10x1024xbf16, #tpu.memory_space<vmem>>, vector<1x10x1024xbf16>
    %1 = vector.shape_cast %0 : vector<1x10x1024xbf16> to vector<10x1024xbf16>
    %c0_2 = arith.constant 0 : index
    %c0_3 = arith.constant 0 : index
    %2 = vector.load %arg2[%c0_2, %c0_3] : memref<16x10xbf16, #tpu.memory_space<vmem>>, vector<16x10xbf16>
    %cst = arith.constant dense<0.000000e+00> : vector<16x1024xf32>
    %3 = tpu.matmul %2, %1, %cst {dimension_numbers = #tpu.dot_dimension_numbers<[1], [0], [0], [1], [0, 0, 1, 1], [], []>} : vector<16x10xbf16>, vector<10x1024xbf16>, vector<16x1024xf32> -> vector<16x1024xf32>
    %cst_4 = arith.constant dense<0.000000e+00> : vector<16xf32>
    %4 = vector.multi_reduction <add>, %3, %cst_4 [1] : vector<16x1024xf32> to vector<16xf32>
    %5 = vector.shape_cast %4 : vector<16xf32> to vector<16x1xf32>
    %cst_5 = arith.constant 9.765625E-4 : f32
    %6 = vector.broadcast %cst_5 : f32 to vector<16x1xf32>
    %7 = arith.mulf %5, %6 : vector<16x1xf32>
    %8 = vector.broadcast %7 : vector<16x1xf32> to vector<16x1024xf32>
    %9 = arith.subf %3, %8 : vector<16x1024xf32>
    %10 = arith.mulf %9, %9 : vector<16x1024xf32>
    %cst_6 = arith.constant dense<0.000000e+00> : vector<16xf32>
    %11 = vector.multi_reduction <add>, %10, %cst_6 [1] : vector<16x1024xf32> to vector<16xf32>
    %12 = vector.shape_cast %11 : vector<16xf32> to vector<16x1xf32>
    %cst_7 = arith.constant 9.765625E-4 : f32
    %13 = vector.broadcast %cst_7 : f32 to vector<16x1xf32>
    %14 = arith.mulf %12, %13 : vector<16x1xf32>
    %cst_8 = arith.constant 9.99999974E-6 : f32
    %15 = vector.broadcast %cst_8 : f32 to vector<16x1xf32>
    %16 = arith.addf %14, %15 : vector<16x1xf32>
    %17 = math.rsqrt %16 : vector<16x1xf32>
    %18 = vector.broadcast %17 : vector<16x1xf32> to vector<16x1024xf32>
    %19 = arith.mulf %9, %18 : vector<16x1024xf32>
    %cst_9 = arith.constant 0.000000e+00 : f32
    %20 = vector.broadcast %cst_9 : f32 to vector<16x1024xf32>
    %21 = arith.maximumf %19, %20 : vector<16x1024xf32>
    %c0_10 = arith.constant 0 : index
    %c0_11 = arith.constant 0 : index
    %22 = vector.load %arg3[%c0_10, %c0_11] : memref<32x16xbf16, #tpu.memory_space<vmem>>, vector<32x16xbf16>
    %23 = arith.truncf %21 : vector<16x1024xf32> to vector<16x1024xbf16>
    %cst_12 = arith.constant dense<0.000000e+00> : vector<32x1024xf32>
    %24 = tpu.matmul %22, %23, %cst_12 {dimension_numbers = #tpu.dot_dimension_numbers<[1], [0], [0], [1], [0, 0, 1, 1], [], []>} : vector<32x16xbf16>, vector<16x1024xbf16>, vector<32x1024xf32> -> vector<32x1024xf32>
    %cst_13 = arith.constant dense<0.000000e+00> : vector<32xf32>
    %25 = vector.multi_reduction <add>, %24, %cst_13 [1] : vector<32x1024xf32> to vector<32xf32>
    %26 = vector.shape_cast %25 : vector<32xf32> to vector<32x1xf32>
    %cst_14 = arith.constant 9.765625E-4 : f32
    %27 = vector.broadcast %cst_14 : f32 to vector<32x1xf32>
    %28 = arith.mulf %26, %27 : vector<32x1xf32>
    %29 = vector.broadcast %28 : vector<32x1xf32> to vector<32x1024xf32>
    %30 = arith.subf %24, %29 : vector<32x1024xf32>
    %31 = arith.mulf %30, %30 : vector<32x1024xf32>
    %cst_15 = arith.constant dense<0.000000e+00> : vector<32xf32>
    %32 = vector.multi_reduction <add>, %31, %cst_15 [1] : vector<32x1024xf32> to vector<32xf32>
    %33 = vector.shape_cast %32 : vector<32xf32> to vector<32x1xf32>
    %cst_16 = arith.constant 9.765625E-4 : f32
    %34 = vector.broadcast %cst_16 : f32 to vector<32x1xf32>
    %35 = arith.mulf %33, %34 : vector<32x1xf32>
    %cst_17 = arith.constant 9.99999974E-6 : f32
    %36 = vector.broadcast %cst_17 : f32 to vector<32x1xf32>
    %37 = arith.addf %35, %36 : vector<32x1xf32>
    %38 = math.rsqrt %37 : vector<32x1xf32>
    %39 = vector.broadcast %38 : vector<32x1xf32> to vector<32x1024xf32>
    %40 = arith.mulf %30, %39 : vector<32x1024xf32>
    %cst_18 = arith.constant 0.000000e+00 : f32
    %41 = vector.broadcast %cst_18 : f32 to vector<32x1024xf32>
    %42 = arith.maximumf %40, %41 : vector<32x1024xf32>
    %c0_19 = arith.constant 0 : index
    %c0_20 = arith.constant 0 : index
    %43 = vector.load %arg4[%c0_19, %c0_20] : memref<16x32xbf16, #tpu.memory_space<vmem>>, vector<16x32xbf16>
    %44 = arith.truncf %42 : vector<32x1024xf32> to vector<32x1024xbf16>
    %cst_21 = arith.constant dense<0.000000e+00> : vector<16x1024xf32>
    %45 = tpu.matmul %43, %44, %cst_21 {dimension_numbers = #tpu.dot_dimension_numbers<[1], [0], [0], [1], [0, 0, 1, 1], [], []>} : vector<16x32xbf16>, vector<32x1024xbf16>, vector<16x1024xf32> -> vector<16x1024xf32>
    %cst_22 = arith.constant dense<0.000000e+00> : vector<16xf32>
    %46 = vector.multi_reduction <add>, %45, %cst_22 [1] : vector<16x1024xf32> to vector<16xf32>
    %47 = vector.shape_cast %46 : vector<16xf32> to vector<16x1xf32>
    %cst_23 = arith.constant 9.765625E-4 : f32
    %48 = vector.broadcast %cst_23 : f32 to vector<16x1xf32>
    %49 = arith.mulf %47, %48 : vector<16x1xf32>
    %50 = vector.broadcast %49 : vector<16x1xf32> to vector<16x1024xf32>
    %51 = arith.subf %45, %50 : vector<16x1024xf32>
    %52 = arith.mulf %51, %51 : vector<16x1024xf32>
    %cst_24 = arith.constant dense<0.000000e+00> : vector<16xf32>
    %53 = vector.multi_reduction <add>, %52, %cst_24 [1] : vector<16x1024xf32> to vector<16xf32>
    %54 = vector.shape_cast %53 : vector<16xf32> to vector<16x1xf32>
    %cst_25 = arith.constant 9.765625E-4 : f32
    %55 = vector.broadcast %cst_25 : f32 to vector<16x1xf32>
    %56 = arith.mulf %54, %55 : vector<16x1xf32>
    %cst_26 = arith.constant 9.99999974E-6 : f32
    %57 = vector.broadcast %cst_26 : f32 to vector<16x1xf32>
    %58 = arith.addf %56, %57 : vector<16x1xf32>
    %59 = math.rsqrt %58 : vector<16x1xf32>
    %60 = vector.broadcast %59 : vector<16x1xf32> to vector<16x1024xf32>
    %61 = arith.mulf %51, %60 : vector<16x1024xf32>
    %cst_27 = arith.constant 0.000000e+00 : f32
    %62 = vector.broadcast %cst_27 : f32 to vector<16x1024xf32>
    %63 = arith.maximumf %61, %62 : vector<16x1024xf32>
    %64 = vector.extract_strided_slice %63 {offsets = [0, 0], sizes = [16, 128], strides = [1, 1]} : vector<16x1024xf32> to vector<16x128xf32>
    %65 = vector.extract_strided_slice %63 {offsets = [0, 128], sizes = [16, 128], strides = [1, 1]} : vector<16x1024xf32> to vector<16x128xf32>
    %66 = arith.maximumf %64, %65 : vector<16x128xf32>
    %67 = vector.extract_strided_slice %63 {offsets = [0, 256], sizes = [16, 128], strides = [1, 1]} : vector<16x1024xf32> to vector<16x128xf32>
    %68 = arith.maximumf %66, %67 : vector<16x128xf32>
    %69 = vector.extract_strided_slice %63 {offsets = [0, 384], sizes = [16, 128], strides = [1, 1]} : vector<16x1024xf32> to vector<16x128xf32>
    %70 = arith.maximumf %68, %69 : vector<16x128xf32>
    %71 = vector.extract_strided_slice %63 {offsets = [0, 512], sizes = [16, 128], strides = [1, 1]} : vector<16x1024xf32> to vector<16x128xf32>
    %72 = arith.maximumf %70, %71 : vector<16x128xf32>
    %73 = vector.extract_strided_slice %63 {offsets = [0, 640], sizes = [16, 128], strides = [1, 1]} : vector<16x1024xf32> to vector<16x128xf32>
    %74 = arith.maximumf %72, %73 : vector<16x128xf32>
    %75 = vector.extract_strided_slice %63 {offsets = [0, 768], sizes = [16, 128], strides = [1, 1]} : vector<16x1024xf32> to vector<16x128xf32>
    %76 = arith.maximumf %74, %75 : vector<16x128xf32>
    %77 = vector.extract_strided_slice %63 {offsets = [0, 896], sizes = [16, 128], strides = [1, 1]} : vector<16x1024xf32> to vector<16x128xf32>
    %78 = arith.maximumf %76, %77 : vector<16x128xf32>
    %79 = arith.truncf %78 : vector<16x128xf32> to vector<16x128xbf16>
    %c0_28 = arith.constant 0 : index
    %c0_29 = arith.constant 0 : index
    %c0_30 = arith.constant 0 : index
    %80 = vector.load %arg5[%c0_28, %c0_29, %c0_30] : memref<1x16x128xbf16, #tpu.memory_space<vmem>>, vector<1x16x128xbf16>
    %81 = vector.shape_cast %80 : vector<1x16x128xbf16> to vector<16x128xbf16>
    %82 = vector.shape_cast %79 : vector<16x128xbf16> to vector<1x16x128xbf16>
    tpu.vector_store %arg5[%c0_28, %c0_29, %c0_30], %82 {strides = array<i32>} : memref<1x16x128xbf16, #tpu.memory_space<vmem>>, vector<1x16x128xbf16>,
    return
  }
  func.func @transform_0(%arg0: i32) -> (i32, i32, i32) {
    %c0_i32 = arith.constant 0 : i32
    %c0_i32_0 = arith.constant 0 : i32
    %c0_i32_1 = arith.constant 0 : i32
    return %arg0, %c0_i32, %c0_i32_0 : i32, i32, i32
  }
  func.func @transform_1(%arg0: i32) -> (i32, i32) {
    %c0_i32 = arith.constant 0 : i32
    %c0_i32_0 = arith.constant 0 : i32
    %c0_i32_1 = arith.constant 0 : i32
    return %c0_i32, %c0_i32_0 : i32, i32
  }
  func.func @transform_2(%arg0: i32) -> (i32, i32) {
    %c0_i32 = arith.constant 0 : i32
    %c0_i32_0 = arith.constant 0 : i32
    %c0_i32_1 = arith.constant 0 : i32
    return %c0_i32, %c0_i32_0 : i32, i32
  }
  func.func @transform_3(%arg0: i32) -> (i32, i32) {
    %c0_i32 = arith.constant 0 : i32
    %c0_i32_0 = arith.constant 0 : i32
    %c0_i32_1 = arith.constant 0 : i32
    return %c0_i32, %c0_i32_0 : i32, i32
  }
  func.func @transform_4(%arg0: i32) -> (i32, i32, i32) {
    %c0_i32 = arith.constant 0 : i32
    %c0_i32_0 = arith.constant 0 : i32
    %c0_i32_1 = arith.constant 0 : i32
    return %arg0, %c0_i32, %c0_i32_0 : i32, i32, i32
  }
}

module attributes {stable_mosaic.version = 11 : i64} {
  func.func @_multi_conv_in_act_kernel(%arg0: i32, %arg1: memref<1x16x128xbf16, #tpu.memory_space<vmem>>, %arg2: memref<1x32x128xbf16, #tpu.memory_space<vmem>>, %arg3: memref<48x16xbf16, #tpu.memory_space<vmem>>, %arg4: memref<48x32xbf16, #tpu.memory_space<vmem>>, %arg5: memref<1x48x128xbf16, #tpu.memory_space<vmem>>) attributes {dimension_semantics = [#tpu.dimension_semantics<parallel>], iteration_bounds = array<i64: 2>, scalar_prefetch = 0 : i64, scratch_operands = 0 : i64, tpu.core_type = #tpu.core_type<tc>, window_params = [{transform_indices = @transform_0, window_bounds = array<i64: 1, 16, 128>}, {transform_indices = @transform_1, window_bounds = array<i64: 1, 32, 128>}, {pipeline_mode = #tpu.pipeline_mode<synchronous>, transform_indices = @transform_2, window_bounds = array<i64: 48, 16>}, {pipeline_mode = #tpu.pipeline_mode<synchronous>, transform_indices = @transform_3, window_bounds = array<i64: 48, 32>}, {transform_indices = @transform_4, window_bounds = array<i64: 1, 48, 128>}]} {
    %c0 = arith.constant 0 : index
    %c0_0 = arith.constant 0 : index
    %0 = vector.load %arg3[%c0, %c0_0] : memref<48x16xbf16, #tpu.memory_space<vmem>>, vector<48x16xbf16>
    %c0_1 = arith.constant 0 : index
    %c0_2 = arith.constant 0 : index
    %c0_3 = arith.constant 0 : index
    %1 = vector.load %arg1[%c0_1, %c0_2, %c0_3] : memref<1x16x128xbf16, #tpu.memory_space<vmem>>, vector<1x16x128xbf16>
    %2 = vector.shape_cast %1 : vector<1x16x128xbf16> to vector<16x128xbf16>
    %cst = arith.constant dense<0.000000e+00> : vector<48x128xf32>
    %3 = tpu.matmul %0, %2, %cst {dimension_numbers = #tpu.dot_dimension_numbers<[1], [0], [0], [1], [0, 0, 1, 1], [], []>} : vector<48x16xbf16>, vector<16x128xbf16>, vector<48x128xf32> -> vector<48x128xf32>
    %c0_4 = arith.constant 0 : index
    %c0_5 = arith.constant 0 : index
    %4 = vector.load %arg4[%c0_4, %c0_5] : memref<48x32xbf16, #tpu.memory_space<vmem>>, vector<48x32xbf16>
    %c0_6 = arith.constant 0 : index
    %c0_7 = arith.constant 0 : index
    %c0_8 = arith.constant 0 : index
    %5 = vector.load %arg2[%c0_6, %c0_7, %c0_8] : memref<1x32x128xbf16, #tpu.memory_space<vmem>>, vector<1x32x128xbf16>
    %6 = vector.shape_cast %5 : vector<1x32x128xbf16> to vector<32x128xbf16>
    %cst_9 = arith.constant dense<0.000000e+00> : vector<48x128xf32>
    %7 = tpu.matmul %4, %6, %cst_9 {dimension_numbers = #tpu.dot_dimension_numbers<[1], [0], [0], [1], [0, 0, 1, 1], [], []>} : vector<48x32xbf16>, vector<32x128xbf16>, vector<48x128xf32> -> vector<48x128xf32>
    %8 = arith.addf %3, %7 : vector<48x128xf32>
    %cst_10 = arith.constant dense<0.000000e+00> : vector<48xf32>
    %9 = vector.multi_reduction <add>, %8, %cst_10 [1] : vector<48x128xf32> to vector<48xf32>
    %10 = vector.shape_cast %9 : vector<48xf32> to vector<48x1xf32>
    %cst_11 = arith.constant 7.812500e-03 : f32
    %11 = vector.broadcast %cst_11 : f32 to vector<48x1xf32>
    %12 = arith.mulf %10, %11 : vector<48x1xf32>
    %13 = vector.broadcast %12 : vector<48x1xf32> to vector<48x128xf32>
    %14 = arith.subf %8, %13 : vector<48x128xf32>
    %15 = arith.mulf %14, %14 : vector<48x128xf32>
    %cst_12 = arith.constant dense<0.000000e+00> : vector<48xf32>
    %16 = vector.multi_reduction <add>, %15, %cst_12 [1] : vector<48x128xf32> to vector<48xf32>
    %17 = vector.shape_cast %16 : vector<48xf32> to vector<48x1xf32>
    %cst_13 = arith.constant 7.812500e-03 : f32
    %18 = vector.broadcast %cst_13 : f32 to vector<48x1xf32>
    %19 = arith.mulf %17, %18 : vector<48x1xf32>
    %cst_14 = arith.constant 9.99999974E-6 : f32
    %20 = vector.broadcast %cst_14 : f32 to vector<48x1xf32>
    %21 = arith.addf %19, %20 : vector<48x1xf32>
    %22 = math.rsqrt %21 : vector<48x1xf32>
    %23 = vector.broadcast %22 : vector<48x1xf32> to vector<48x128xf32>
    %24 = arith.mulf %14, %23 : vector<48x128xf32>
    %cst_15 = arith.constant 0.000000e+00 : f32
    %25 = vector.broadcast %cst_15 : f32 to vector<48x128xf32>
    %26 = arith.cmpf oge, %24, %25 : vector<48x128xf32>
    %cst_16 = arith.constant 2.000000e-01 : f32
    %27 = vector.broadcast %cst_16 : f32 to vector<48x128xf32>
    %28 = arith.mulf %27, %24 : vector<48x128xf32>
    %29 = arith.select %26, %24, %28 : vector<48x128xi1>, vector<48x128xf32>
    %30 = arith.truncf %29 : vector<48x128xf32> to vector<48x128xbf16>
    %c0_17 = arith.constant 0 : index
    %c0_18 = arith.constant 0 : index
    %c0_19 = arith.constant 0 : index
    %31 = vector.load %arg5[%c0_17, %c0_18, %c0_19] : memref<1x48x128xbf16, #tpu.memory_space<vmem>>, vector<1x48x128xbf16>
    %32 = vector.shape_cast %31 : vector<1x48x128xbf16> to vector<48x128xbf16>
    %33 = vector.shape_cast %30 : vector<48x128xbf16> to vector<1x48x128xbf16>
    tpu.vector_store %arg5[%c0_17, %c0_18, %c0_19], %33 {strides = array<i32>} : memref<1x48x128xbf16, #tpu.memory_space<vmem>>, vector<1x48x128xbf16>,
    return
  }
  func.func @transform_0(%arg0: i32) -> (i32, i32, i32) {
    %c0_i32 = arith.constant 0 : i32
    %c0_i32_0 = arith.constant 0 : i32
    %c0_i32_1 = arith.constant 0 : i32
    return %arg0, %c0_i32, %c0_i32_0 : i32, i32, i32
  }
  func.func @transform_1(%arg0: i32) -> (i32, i32, i32) {
    %c0_i32 = arith.constant 0 : i32
    %c0_i32_0 = arith.constant 0 : i32
    %c0_i32_1 = arith.constant 0 : i32
    return %arg0, %c0_i32, %c0_i32_0 : i32, i32, i32
  }
  func.func @transform_2(%arg0: i32) -> (i32, i32) {
    %c0_i32 = arith.constant 0 : i32
    %c0_i32_0 = arith.constant 0 : i32
    %c0_i32_1 = arith.constant 0 : i32
    return %c0_i32, %c0_i32_0 : i32, i32
  }
  func.func @transform_3(%arg0: i32) -> (i32, i32) {
    %c0_i32 = arith.constant 0 : i32
    %c0_i32_0 = arith.constant 0 : i32
    %c0_i32_1 = arith.constant 0 : i32
    return %c0_i32, %c0_i32_0 : i32, i32
  }
  func.func @transform_4(%arg0: i32) -> (i32, i32, i32) {
    %c0_i32 = arith.constant 0 : i32
    %c0_i32_0 = arith.constant 0 : i32
    %c0_i32_1 = arith.constant 0 : i32
    return %arg0, %c0_i32, %c0_i32_0 : i32, i32, i32
  }
}

module attributes {stable_mosaic.version = 11 : i64} {
  func.func @_multi_conv_in_act_kernel(%arg0: i32, %arg1: memref<1x48x128xbf16, #tpu.memory_space<vmem>>, %arg2: memref<32x48xbf16, #tpu.memory_space<vmem>>, %arg3: memref<1x32x128xf32, #tpu.memory_space<vmem>>) attributes {dimension_semantics = [#tpu.dimension_semantics<parallel>], iteration_bounds = array<i64: 2>, scalar_prefetch = 0 : i64, scratch_operands = 0 : i64, tpu.core_type = #tpu.core_type<tc>, window_params = [{transform_indices = @transform_0, window_bounds = array<i64: 1, 48, 128>}, {pipeline_mode = #tpu.pipeline_mode<synchronous>, transform_indices = @transform_1, window_bounds = array<i64: 32, 48>}, {transform_indices = @transform_2, window_bounds = array<i64: 1, 32, 128>}]} {
    %c0 = arith.constant 0 : index
    %c0_0 = arith.constant 0 : index
    %0 = vector.load %arg2[%c0, %c0_0] : memref<32x48xbf16, #tpu.memory_space<vmem>>, vector<32x48xbf16>
    %c0_1 = arith.constant 0 : index
    %c0_2 = arith.constant 0 : index
    %c0_3 = arith.constant 0 : index
    %1 = vector.load %arg1[%c0_1, %c0_2, %c0_3] : memref<1x48x128xbf16, #tpu.memory_space<vmem>>, vector<1x48x128xbf16>
    %2 = vector.shape_cast %1 : vector<1x48x128xbf16> to vector<48x128xbf16>
    %cst = arith.constant dense<0.000000e+00> : vector<32x128xf32>
    %3 = tpu.matmul %0, %2, %cst {dimension_numbers = #tpu.dot_dimension_numbers<[1], [0], [0], [1], [0, 0, 1, 1], [], []>} : vector<32x48xbf16>, vector<48x128xbf16>, vector<32x128xf32> -> vector<32x128xf32>
    %cst_4 = arith.constant dense<0.000000e+00> : vector<32xf32>
    %4 = vector.multi_reduction <add>, %3, %cst_4 [1] : vector<32x128xf32> to vector<32xf32>
    %5 = vector.shape_cast %4 : vector<32xf32> to vector<32x1xf32>
    %cst_5 = arith.constant 7.812500e-03 : f32
    %6 = vector.broadcast %cst_5 : f32 to vector<32x1xf32>
    %7 = arith.mulf %5, %6 : vector<32x1xf32>
    %8 = vector.broadcast %7 : vector<32x1xf32> to vector<32x128xf32>
    %9 = arith.subf %3, %8 : vector<32x128xf32>
    %10 = arith.mulf %9, %9 : vector<32x128xf32>
    %cst_6 = arith.constant dense<0.000000e+00> : vector<32xf32>
    %11 = vector.multi_reduction <add>, %10, %cst_6 [1] : vector<32x128xf32> to vector<32xf32>
    %12 = vector.shape_cast %11 : vector<32xf32> to vector<32x1xf32>
    %cst_7 = arith.constant 7.812500e-03 : f32
    %13 = vector.broadcast %cst_7 : f32 to vector<32x1xf32>
    %14 = arith.mulf %12, %13 : vector<32x1xf32>
    %cst_8 = arith.constant 9.99999974E-6 : f32
    %15 = vector.broadcast %cst_8 : f32 to vector<32x1xf32>
    %16 = arith.addf %14, %15 : vector<32x1xf32>
    %17 = math.rsqrt %16 : vector<32x1xf32>
    %18 = vector.broadcast %17 : vector<32x1xf32> to vector<32x128xf32>
    %19 = arith.mulf %9, %18 : vector<32x128xf32>
    %cst_9 = arith.constant 0.000000e+00 : f32
    %20 = vector.broadcast %cst_9 : f32 to vector<32x128xf32>
    %21 = arith.cmpf oge, %19, %20 : vector<32x128xf32>
    %cst_10 = arith.constant 2.000000e-01 : f32
    %22 = vector.broadcast %cst_10 : f32 to vector<32x128xf32>
    %23 = arith.mulf %22, %19 : vector<32x128xf32>
    %24 = arith.select %21, %19, %23 : vector<32x128xi1>, vector<32x128xf32>
    %c0_11 = arith.constant 0 : index
    %c0_12 = arith.constant 0 : index
    %c0_13 = arith.constant 0 : index
    %25 = vector.load %arg3[%c0_11, %c0_12, %c0_13] : memref<1x32x128xf32, #tpu.memory_space<vmem>>, vector<1x32x128xf32>
    %26 = vector.shape_cast %25 : vector<1x32x128xf32> to vector<32x128xf32>
    %27 = vector.shape_cast %24 : vector<32x128xf32> to vector<1x32x128xf32>
    tpu.vector_store %arg3[%c0_11, %c0_12, %c0_13], %27 {strides = array<i32>} : memref<1x32x128xf32, #tpu.memory_space<vmem>>, vector<1x32x128xf32>,
    return
  }
  func.func @transform_0(%arg0: i32) -> (i32, i32, i32) {
    %c0_i32 = arith.constant 0 : i32
    %c0_i32_0 = arith.constant 0 : i32
    %c0_i32_1 = arith.constant 0 : i32
    return %arg0, %c0_i32, %c0_i32_0 : i32, i32, i32
  }
  func.func @transform_1(%arg0: i32) -> (i32, i32) {
    %c0_i32 = arith.constant 0 : i32
    %c0_i32_0 = arith.constant 0 : i32
    %c0_i32_1 = arith.constant 0 : i32
    return %c0_i32, %c0_i32_0 : i32, i32
  }
  func.func @transform_2(%arg0: i32) -> (i32, i32, i32) {
    %c0_i32 = arith.constant 0 : i32
    %c0_i32_0 = arith.constant 0 : i32
    %c0_i32_1 = arith.constant 0 : i32
    return %arg0, %c0_i32, %c0_i32_0 : i32, i32, i32
  }
}

</mosaic_0001>

<llo_original>
// kernel: neg.1
$region0: #{neg.1}
  #allocation0 [shape = 's32[1]{0}', space=sflag, size = 0x4, scoped, tag = 'scoped memory for neg.1']
  %s0 = inlined_call_operand.vmem [shape: f32[2,128,128], index: 0, kind: input, shape index: {}]
  %s1 = inlined_call_operand.vmem [shape: f32[2,128,128], index: 1, kind: output, shape index: {}]
  %v2 = vld [vmem:[%s0] sm:$0xff]
  %3 = xla_tuple %v2
  %4 = xla_tuple %3
  %v5 = vxor.u32 %v2, 2147483648
  %6 = xla_tuple %v5
  %7 = vst [vmem:[%s1] sm:$0xff] %v5
  %s8 = scalar_lea.vmem %s0, 128
  %v9 = vld [vmem:[%s8] sm:$0xff]
  %10 = xla_tuple %v9
  %11 = xla_tuple %10
  %v12 = vxor.u32 %v9, 2147483648
  %13 = xla_tuple %v12
  %s14 = scalar_lea.vmem %s1, 128
  %15 = vst [vmem:[%s14] sm:$0xff] %v12
  %s16 = scalar_lea.vmem %s0, 8
  %v17 = vld [vmem:[%s16] sm:$0xff]
  %18 = xla_tuple %v17
  %19 = xla_tuple %18
  %v20 = vxor.u32 %v17, 2147483648
  %21 = xla_tuple %v20
  %s22 = scalar_lea.vmem %s1, 8
  %23 = vst [vmem:[%s22] sm:$0xff] %v20
  %s24 = scalar_lea.vmem %s0, 136
  %v25 = vld [vmem:[%s24] sm:$0xff]
  %26 = xla_tuple %v25
  %27 = xla_tuple %26
  %v28 = vxor.u32 %v25, 2147483648
  %29 = xla_tuple %v28
  %s30 = scalar_lea.vmem %s1, 136
  %31 = vst [vmem:[%s30] sm:$0xff] %v28
  %s32 = scalar_lea.vmem %s0, 16
  %v33 = vld [vmem:[%s32] sm:$0xff]
  %34 = xla_tuple %v33
  %35 = xla_tuple %34
  %v36 = vxor.u32 %v33, 2147483648
  %37 = xla_tuple %v36
  %s38 = scalar_lea.vmem %s1, 16
  %39 = vst [vmem:[%s38] sm:$0xff] %v36
  %s40 = scalar_lea.vmem %s0, 144
  %v41 = vld [vmem:[%s40] sm:$0xff]
  %42 = xla_tuple %v41
  %43 = xla_tuple %42
  %v44 = vxor.u32 %v41, 2147483648
  %45 = xla_tuple %v44
  %s46 = scalar_lea.vmem %s1, 144
  %47 = vst [vmem:[%s46] sm:$0xff] %v44
  %s48 = scalar_lea.vmem %s0, 24
  %v49 = vld [vmem:[%s48] sm:$0xff]
  %50 = xla_tuple %v49
  %51 = xla_tuple %50
  %v52 = vxor.u32 %v49, 2147483648
  %53 = xla_tuple %v52
  %s54 = scalar_lea.vmem %s1, 24
  %55 = vst [vmem:[%s54] sm:$0xff] %v52
  %s56 = scalar_lea.vmem %s0, 152
  %v57 = vld [vmem:[%s56] sm:$0xff]
  %58 = xla_tuple %v57
  %59 = xla_tuple %58
  %v60 = vxor.u32 %v57, 2147483648
  %61 = xla_tuple %v60
  %s62 = scalar_lea.vmem %s1, 152
  %63 = vst [vmem:[%s62] sm:$0xff] %v60
  %s64 = scalar_lea.vmem %s0, 32
  %v65 = vld [vmem:[%s64] sm:$0xff]
  %66 = xla_tuple %v65
  %67 = xla_tuple %66
  %v68 = vxor.u32 %v65, 2147483648
  %69 = xla_tuple %v68
  %s70 = scalar_lea.vmem %s1, 32
  %71 = vst [vmem:[%s70] sm:$0xff] %v68
  %s72 = scalar_lea.vmem %s0, 160
  %v73 = vld [vmem:[%s72] sm:$0xff]
  %74 = xla_tuple %v73
  %75 = xla_tuple %74
  %v76 = vxor.u32 %v73, 2147483648
  %77 = xla_tuple %v76
  %s78 = scalar_lea.vmem %s1, 160
  %79 = vst [vmem:[%s78] sm:$0xff] %v76
  %s80 = scalar_lea.vmem %s0, 40
  %v81 = vld [vmem:[%s80] sm:$0xff]
  %82 = xla_tuple %v81
  %83 = xla_tuple %82
  %v84 = vxor.u32 %v81, 2147483648
  %85 = xla_tuple %v84
  %s86 = scalar_lea.vmem %s1, 40
  %87 = vst [vmem:[%s86] sm:$0xff] %v84
  %s88 = scalar_lea.vmem %s0, 168
  %v89 = vld [vmem:[%s88] sm:$0xff]
  %90 = xla_tuple %v89
  %91 = xla_tuple %90
  %v92 = vxor.u32 %v89, 2147483648
  %93 = xla_tuple %v92
  %s94 = scalar_lea.vmem %s1, 168
  %95 = vst [vmem:[%s94] sm:$0xff] %v92
  %s96 = scalar_lea.vmem %s0, 48
  %v97 = vld [vmem:[%s96] sm:$0xff]
  %98 = xla_tuple %v97
  %99 = xla_tuple %98
  %v100 = vxor.u32 %v97, 2147483648
  %101 = xla_tuple %v100
  %s102 = scalar_lea.vmem %s1, 48
  %103 = vst [vmem:[%s102] sm:$0xff] %v100
  %s104 = scalar_lea.vmem %s0, 176
  %v105 = vld [vmem:[%s104] sm:$0xff]
  %106 = xla_tuple %v105
  %107 = xla_tuple %106
  %v108 = vxor.u32 %v105, 2147483648
  %109 = xla_tuple %v108
  %s110 = scalar_lea.vmem %s1, 176
  %111 = vst [vmem:[%s110] sm:$0xff] %v108
  %s112 = scalar_lea.vmem %s0, 56
  %v113 = vld [vmem:[%s112] sm:$0xff]
  %114 = xla_tuple %v113
  %115 = xla_tuple %114
  %v116 = vxor.u32 %v113, 2147483648
  %117 = xla_tuple %v116
  %s118 = scalar_lea.vmem %s1, 56
  %119 = vst [vmem:[%s118] sm:$0xff] %v116
  %s120 = scalar_lea.vmem %s0, 184
  %v121 = vld [vmem:[%s120] sm:$0xff]
  %122 = xla_tuple %v121
  %123 = xla_tuple %122
  %v124 = vxor.u32 %v121, 2147483648
  %125 = xla_tuple %v124
  %s126 = scalar_lea.vmem %s1, 184
  %127 = vst [vmem:[%s126] sm:$0xff] %v124
  %s128 = scalar_lea.vmem %s0, 64
  %v129 = vld [vmem:[%s128] sm:$0xff]
  %130 = xla_tuple %v129
  %131 = xla_tuple %130
  %v132 = vxor.u32 %v129, 2147483648
  %133 = xla_tuple %v132
  %s134 = scalar_lea.vmem %s1, 64
  %135 = vst [vmem:[%s134] sm:$0xff] %v132
  %s136 = scalar_lea.vmem %s0, 192
  %v137 = vld [vmem:[%s136] sm:$0xff]
  %138 = xla_tuple %v137
  %139 = xla_tuple %138
  %v140 = vxor.u32 %v137, 2147483648
  %141 = xla_tuple %v140
  %s142 = scalar_lea.vmem %s1, 192
  %143 = vst [vmem:[%s142] sm:$0xff] %v140
  %s144 = scalar_lea.vmem %s0, 72
  %v145 = vld [vmem:[%s144] sm:$0xff]
  %146 = xla_tuple %v145
  %147 = xla_tuple %146
  %v148 = vxor.u32 %v145, 2147483648
  %149 = xla_tuple %v148
  %s150 = scalar_lea.vmem %s1, 72
  %151 = vst [vmem:[%s150] sm:$0xff] %v148
  %s152 = scalar_lea.vmem %s0, 200
  %v153 = vld [vmem:[%s152] sm:$0xff]
  %154 = xla_tuple %v153
  %155 = xla_tuple %154
  %v156 = vxor.u32 %v153, 2147483648
  %157 = xla_tuple %v156
  %s158 = scalar_lea.vmem %s1, 200
  %159 = vst [vmem:[%s158] sm:$0xff] %v156
  %s160 = scalar_lea.vmem %s0, 80
  %v161 = vld [vmem:[%s160] sm:$0xff]
  %162 = xla_tuple %v161
  %163 = xla_tuple %162
  %v164 = vxor.u32 %v161, 2147483648
  %165 = xla_tuple %v164
  %s166 = scalar_lea.vmem %s1, 80
  %167 = vst [vmem:[%s166] sm:$0xff] %v164
  %s168 = scalar_lea.vmem %s0, 208
  %v169 = vld [vmem:[%s168] sm:$0xff]
  %170 = xla_tuple %v169
  %171 = xla_tuple %170
  %v172 = vxor.u32 %v169, 2147483648
  %173 = xla_tuple %v172
  %s174 = scalar_lea.vmem %s1, 208
  %175 = vst [vmem:[%s174] sm:$0xff] %v172
  %s176 = scalar_lea.vmem %s0, 88
  %v177 = vld [vmem:[%s176] sm:$0xff]
  %178 = xla_tuple %v177
  %179 = xla_tuple %178
  %v180 = vxor.u32 %v177, 2147483648
  %181 = xla_tuple %v180
  %s182 = scalar_lea.vmem %s1, 88
  %183 = vst [vmem:[%s182] sm:$0xff] %v180
  %s184 = scalar_lea.vmem %s0, 216
  %v185 = vld [vmem:[%s184] sm:$0xff]
  %186 = xla_tuple %v185
  %187 = xla_tuple %186
  %v188 = vxor.u32 %v185, 2147483648
  %189 = xla_tuple %v188
  %s190 = scalar_lea.vmem %s1, 216
  %191 = vst [vmem:[%s190] sm:$0xff] %v188
  %s192 = scalar_lea.vmem %s0, 96
  %v193 = vld [vmem:[%s192] sm:$0xff]
  %194 = xla_tuple %v193
  %195 = xla_tuple %194
  %v196 = vxor.u32 %v193, 2147483648
  %197 = xla_tuple %v196
  %s198 = scalar_lea.vmem %s1, 96
  %199 = vst [vmem:[%s198] sm:$0xff] %v196
  %s200 = scalar_lea.vmem %s0, 224
  %v201 = vld [vmem:[%s200] sm:$0xff]
  %202 = xla_tuple %v201
  %203 = xla_tuple %202
  %v204 = vxor.u32 %v201, 2147483648
  %205 = xla_tuple %v204
  %s206 = scalar_lea.vmem %s1, 224
  %207 = vst [vmem:[%s206] sm:$0xff] %v204
  %s208 = scalar_lea.vmem %s0, 104
  %v209 = vld [vmem:[%s208] sm:$0xff]
  %210 = xla_tuple %v209
  %211 = xla_tuple %210
  %v212 = vxor.u32 %v209, 2147483648
  %213 = xla_tuple %v212
  %s214 = scalar_lea.vmem %s1, 104
  %215 = vst [vmem:[%s214] sm:$0xff] %v212
  %s216 = scalar_lea.vmem %s0, 232
  %v217 = vld [vmem:[%s216] sm:$0xff]
  %218 = xla_tuple %v217
  %219 = xla_tuple %218
  %v220 = vxor.u32 %v217, 2147483648
  %221 = xla_tuple %v220
  %s222 = scalar_lea.vmem %s1, 232
  %223 = vst [vmem:[%s222] sm:$0xff] %v220
  %s224 = scalar_lea.vmem %s0, 112
  %v225 = vld [vmem:[%s224] sm:$0xff]
  %226 = xla_tuple %v225
  %227 = xla_tuple %226
  %v228 = vxor.u32 %v225, 2147483648
  %229 = xla_tuple %v228
  %s230 = scalar_lea.vmem %s1, 112
  %231 = vst [vmem:[%s230] sm:$0xff] %v228
  %s232 = scalar_lea.vmem %s0, 240
  %v233 = vld [vmem:[%s232] sm:$0xff]
  %234 = xla_tuple %v233
  %235 = xla_tuple %234
  %v236 = vxor.u32 %v233, 2147483648
  %237 = xla_tuple %v236
  %s238 = scalar_lea.vmem %s1, 240
  %239 = vst [vmem:[%s238] sm:$0xff] %v236
  %s240 = scalar_lea.vmem %s0, 120
  %v241 = vld [vmem:[%s240] sm:$0xff]
  %242 = xla_tuple %v241
  %243 = xla_tuple %242
  %v244 = vxor.u32 %v241, 2147483648
  %245 = xla_tuple %v244
  %s246 = scalar_lea.vmem %s1, 120
  %247 = vst [vmem:[%s246] sm:$0xff] %v244
  %s248 = scalar_lea.vmem %s0, 248
  %v249 = vld [vmem:[%s248] sm:$0xff]
  %250 = xla_tuple %v249
  %251 = xla_tuple %250
  %v252 = vxor.u32 %v249, 2147483648
  %253 = xla_tuple %v252
  %s254 = scalar_lea.vmem %s1, 248
  %255 = vst [vmem:[%s254] sm:$0xff] %v252

// kernel: gge_forward.7
$region0: #{gge_forward.7}
  #allocation0 [shape = 'u32[]', space=smem, size = 0x4, offset = 0x4, fixed_abs, tag = 'smem constant byte address 0x4 - core index']
  #allocation1 [shape = 'u32[72,128]{1,0:T(1,128)}', space=vmem, size = 0x9000, scoped, tag = 'internal scratch']
  %s0 = inlined_call_operand.vmem [shape: bf16[2,32,768], index: 0, kind: input, shape index: {}]
  %s1 = inlined_call_operand.vmem [shape: bf16[2,32,128], index: 1, kind: input, shape index: {}]
  %s2 = inlined_call_operand.vmem [shape: bf16[32,32], index: 2, kind: input, shape index: {}]
  %s3 = inlined_call_operand.vmem [shape: bf16[32,32], index: 3, kind: input, shape index: {}]
  %s4 = inlined_call_operand.vmem [shape: bf16[2,32,128], index: 4, kind: output, shape index: {}]
  %s5 = sld [smem:[#allocation0]]
  $region49: #{gge_forward.7} parent=0
    _
  %s7 = ssub.s32 1, %s5
  %s8 = scalar_select 0, %s7, %s5
  loop: start=0, step=1, limit=4
  $region2: #{gge_forward.7} parent=0 // loop_pre_header
    _
  $region3: #{gge_forward.7} parent=0 // loop_header
    %s10 = sphi 0, %s14
    %p11 = scmp.ge.s32.totalorder %s10, 4
    %s20 = sphi 0, %s22
    %s23 = sphi 0, %s20
    %s24 = sphi 0, %s23
    %s40 = sphi 0, %s24
    %s46 = sphi 0, %s48
    %s49 = sphi 0, %s46
    %s50 = sphi 0, %s49
    %s66 = sphi 0, %s50
    %s70 = sphi 0, %s70
    %s72 = sphi 0, %s70
    %s73 = sphi 0, %s72
    %s87 = sphi 0, %s73
    %s91 = sphi 0, %s91
    %s93 = sphi 0, %s91
    %s94 = sphi 0, %s93
    %s108 = sphi 0, %s94
    %s114 = sphi 0, %s116
    %s117 = sphi 0, %s114
    %s118 = sphi 0, %s117
    %s134 = sphi 0, %s118
  $region4: #{gge_forward.7} parent=0 // loop_header_branch
    %13 = sbr.rel (%p11) target = $region8
  $region5: #{gge_forward.7} parent=0 // loop_body
    %s15 = ssub.s32 %s10, 1
    %s16 = ssub.s32 %s10, 2
    %s17 = sadd.s32 %s10, 1
    %s18 = ssub.s32 %s10, %s17
    %p19 = scmp.eq.s32.totalorder %s18, 0
    %s21 = sadd.s32 %s20, 1
    %s22 = scalar_select %p19, %s20, %s21
    %p25 = pneg %p19
    %p26 = scmp.eq.s32.totalorder %s10, 1
    %p27 = por %p25, %p26
    %p28 = scmp.ne.s32.totalorder %s20, %s23
    %p29 = scmp.eq.s32.totalorder %s10, 0
    %p30 = por %p28, %p29
    %p31 = scmp.ne.s32.totalorder %s20, %s23
    %p32 = scmp.eq.s32.totalorder %s15, 1
    %p33 = por %p31, %p32
    %p34 = scmp.ne.s32.totalorder %s23, %s24
    %p35 = scmp.eq.s32.totalorder %s15, 0
    %p36 = por %p34, %p35
    %p37 = scmp.ne.s32.totalorder %s23, %s24
    %p38 = scmp.eq.s32.totalorder %s16, 1
    %p39 = por %p37, %p38
    %p41 = scmp.ne.s32.totalorder %s24, %s40
    %p42 = scmp.eq.s32.totalorder %s16, 0
    %p43 = por %p41, %p42
    %s44 = ssub.s32 %s10, %s17
    %p45 = scmp.eq.s32.totalorder %s44, 0
    %s47 = sadd.s32 %s46, 1
    %s48 = scalar_select %p45, %s46, %s47
    %p51 = pneg %p45
    %p52 = scmp.eq.s32.totalorder %s10, 1
    %p53 = por %p51, %p52
    %p54 = scmp.ne.s32.totalorder %s46, %s49
    %p55 = scmp.eq.s32.totalorder %s10, 0
    %p56 = por %p54, %p55
    %p57 = scmp.ne.s32.totalorder %s46, %s49
    %p58 = scmp.eq.s32.totalorder %s15, 1
    %p59 = por %p57, %p58
    %p60 = scmp.ne.s32.totalorder %s49, %s50
    %p61 = scmp.eq.s32.totalorder %s15, 0
    %p62 = por %p60, %p61
    %p63 = scmp.ne.s32.totalorder %s49, %s50
    %p64 = scmp.eq.s32.totalorder %s16, 1
    %p65 = por %p63, %p64
    %p67 = scmp.ne.s32.totalorder %s50, %s66
    %p68 = scmp.eq.s32.totalorder %s16, 0
    %p69 = por %p67, %p68
    %s71 = sadd.s32 %s70, 1
    %p74 = scmp.eq.s32.totalorder %s10, 1
    %p75 = scmp.ne.s32.totalorder %s70, %s72
    %p76 = scmp.eq.s32.totalorder %s10, 0
    %p77 = por %p75, %p76
    %p78 = scmp.ne.s32.totalorder %s70, %s72
    %p79 = scmp.eq.s32.totalorder %s15, 1
    %p80 = por %p78, %p79
    %p81 = scmp.ne.s32.totalorder %s72, %s73
    %p82 = scmp.eq.s32.totalorder %s15, 0
    %p83 = por %p81, %p82
    %p84 = scmp.ne.s32.totalorder %s72, %s73
    %p85 = scmp.eq.s32.totalorder %s16, 1
    %p86 = por %p84, %p85
    %p88 = scmp.ne.s32.totalorder %s73, %s87
    %p89 = scmp.eq.s32.totalorder %s16, 0
    %p90 = por %p88, %p89
    %s92 = sadd.s32 %s91, 1
    %p95 = scmp.eq.s32.totalorder %s10, 1
    %p96 = scmp.ne.s32.totalorder %s91, %s93
    %p97 = scmp.eq.s32.totalorder %s10, 0
    %p98 = por %p96, %p97
    %p99 = scmp.ne.s32.totalorder %s91, %s93
    %p100 = scmp.eq.s32.totalorder %s15, 1
    %p101 = por %p99, %p100
    %p102 = scmp.ne.s32.totalorder %s93, %s94
    %p103 = scmp.eq.s32.totalorder %s15, 0
    %p104 = por %p102, %p103
    %p105 = scmp.ne.s32.totalorder %s93, %s94
    %p106 = scmp.eq.s32.totalorder %s16, 1
    %p107 = por %p105, %p106
    %p109 = scmp.ne.s32.totalorder %s94, %s108
    %p110 = scmp.eq.s32.totalorder %s16, 0
    %p111 = por %p109, %p110
    %s112 = ssub.s32 %s10, %s17
    %p113 = scmp.eq.s32.totalorder %s112, 0
    %s115 = sadd.s32 %s114, 1
    %s116 = scalar_select %p113, %s114, %s115
    %p119 = pneg %p113
    %p120 = scmp.eq.s32.totalorder %s10, 1
    %p121 = por %p119, %p120
    %p122 = scmp.ne.s32.totalorder %s114, %s117
    %p123 = scmp.eq.s32.totalorder %s10, 0
    %p124 = por %p122, %p123
    %p125 = scmp.ne.s32.totalorder %s114, %s117
    %p126 = scmp.eq.s32.totalorder %s15, 1
    %p127 = por %p125, %p126
    %p128 = scmp.ne.s32.totalorder %s117, %s118
    %p129 = scmp.eq.s32.totalorder %s15, 0
    %p130 = por %p128, %p129
    %p131 = scmp.ne.s32.totalorder %s117, %s118
    %p132 = scmp.eq.s32.totalorder %s16, 1
    %p133 = por %p131, %p132
    %p135 = scmp.ne.s32.totalorder %s118, %s134
    %p136 = scmp.eq.s32.totalorder %s16, 0
    %p137 = por %p135, %p136
    %p138 = scmp.le.s32.totalorder 1, %s10
    %p139 = scmp.lt.s32.totalorder %s10, 3
    %p140 = pnand %p138, %p139
    %p141 = pneg %p140
    // Predicated region
    $region9: #{gge_forward.7} parent=5 // pred_check
      _
    $region10: #{gge_forward.7} parent=5 // pred_check_branch
      %143 = sbr.rel (%p140) target = $region12
    $region11: #{gge_forward.7} parent=5 // pred_region
      %s144 = ssub.s32 %s10, 1
      // Predicated region
      $region13: #{gge_forward.7} parent=11 // pred_check
        %p145 = pneg %p83
      $region14: #{gge_forward.7} parent=11 // pred_check_branch
        %147 = sbr.rel (%p145) target = $region16
      $region15: #{gge_forward.7} parent=11 // pred_region
        _
      $region16: #{gge_forward.7} parent=11 // pred_fallthru
        _
      // Predicated region
      $region17: #{gge_forward.7} parent=11 // pred_check
        %p148 = pneg %p104
      $region18: #{gge_forward.7} parent=11 // pred_check_branch
        %150 = sbr.rel (%p148) target = $region20
      $region19: #{gge_forward.7} parent=11 // pred_region
        _
      $region20: #{gge_forward.7} parent=11 // pred_fallthru
        _
    $region12: #{gge_forward.7} parent=5 // pred_fallthru
      _
    %p151 = scmp.lt.s32.totalorder %s10, 2
    // Predicated region
    $region21: #{gge_forward.7} parent=5 // pred_check
      %p152 = pneg %p151
    $region22: #{gge_forward.7} parent=5 // pred_check_branch
      %154 = sbr.rel (%p152) target = $region24
    $region23: #{gge_forward.7} parent=5 // pred_region
      // Predicated region
      $region25: #{gge_forward.7} parent=23 // pred_check
        %p155 = pneg %p30
      $region26: #{gge_forward.7} parent=23 // pred_check_branch
        %157 = sbr.rel (%p155) target = $region28
      $region27: #{gge_forward.7} parent=23 // pred_region
        %p158 = scmp.lt.s32.totalorder %s10, 1
        %s159 = scalar_select %p158, %s10, 1
        %s160 = smul.addr %s159, 24
        %s161 = smul.addr %s160, 4
        %s162 = scalar_lea.vmem %s0, %s161
      $region28: #{gge_forward.7} parent=23 // pred_fallthru
        _
      // Predicated region
      $region29: #{gge_forward.7} parent=23 // pred_check
        %p163 = pneg %p56
      $region30: #{gge_forward.7} parent=23 // pred_check_branch
        %165 = sbr.rel (%p163) target = $region32
      $region31: #{gge_forward.7} parent=23 // pred_region
        %p166 = scmp.lt.s32.totalorder %s10, 1
        %s167 = scalar_select %p166, %s10, 1
        %s168 = smul.addr %s167, 4
        %s169 = smul.addr %s168, 4
        %s170 = scalar_lea.vmem %s1, %s169
      $region32: #{gge_forward.7} parent=23 // pred_fallthru
        _
    $region24: #{gge_forward.7} parent=5 // pred_fallthru
      _
    %p171 = scmp.le.s32.totalorder 1, %s10
    %p172 = scmp.lt.s32.totalorder %s10, 3
    %p173 = pnand %p171, %p172
    %p174 = pneg %p173
    // Predicated region
    $region33: #{gge_forward.7} parent=5 // pred_check
      _
    $region34: #{gge_forward.7} parent=5 // pred_check_branch
      %176 = sbr.rel (%p173) target = $region36
    $region35: #{gge_forward.7} parent=5 // pred_region
      %s177 = ssub.s32 %s10, 1
      %p178 = scmp.lt.s32.totalorder %s15, 1
      %s179 = scalar_select %p178, %s15, 1
      %s180 = smul.addr %s179, 24
      %s181 = smul.addr %s180, 4
      %s182 = scalar_lea.vmem %s0, %s181
      %p183 = pneg %p36
      %p184 = pneg %p33
      %p185 = scmp.lt.s32.totalorder %s15, 1
      %s186 = scalar_select %p185, %s15, 1
      %s187 = smul.addr %s186, 4
      %s188 = smul.addr %s187, 4
      %s189 = scalar_lea.vmem %s1, %s188
      %p190 = pneg %p62
      %p191 = pneg %p59
      %p192 = pneg %p83
      %p193 = pneg %p80
      %p194 = pneg %p104
      %p195 = pneg %p101
      %p196 = pneg %p130
      %p197 = pneg %p127
      %p198 = scmp.lt.s32.totalorder %s15, 1
      %s199 = scalar_select %p198, %s15, 1
      %s200 = smul.addr %s199, 4
      %s201 = smul.addr %s200, 4
      %s202 = scalar_lea.vmem %s4, %s201
      %p203 = scmp.lt.s32.totalorder %s15, 1
      %s204 = scalar_select %p203, %s15, 1
      %s205 = smul.addr %s204, 24
      %s206 = smul.addr %s205, 4
      %s207 = scalar_lea.vmem %s0, %s206
      %p208 = scmp.lt.s32.totalorder %s15, 1
      %s209 = scalar_select %p208, %s15, 1
      %s210 = smul.addr %s209, 4
      %s211 = smul.addr %s210, 4
      %s212 = scalar_lea.vmem %s1, %s211
      %p213 = scmp.lt.s32.totalorder %s15, 1
      %s214 = scalar_select %p213, %s15, 1
      %s215 = smul.addr %s214, 4
      %s216 = smul.addr %s215, 4
      %s217 = scalar_lea.vmem %s4, %s216
      %v219 = vld [vmem:[%s2] sm:$0xf]
      %v220 = vld [vmem:[%s2 + $0x4] sm:$0xf]
      %v221 = vld [vmem:[%s2 + $0x8] sm:$0xf]
      %v222 = vld [vmem:[%s2 + $0xc] sm:$0xf]
      %v223 = vld [vmem:[%s212] sm:$0xf]
      %v224 = vld [vmem:[%s212 + $0x4] sm:$0xf]
      %v225 = vld [vmem:[%s212 + $0x8] sm:$0xf]
      %v226 = vld [vmem:[%s212 + $0xc] sm:$0xf]
      %v231 = vunpack.c.l.b16 %v219
      %v232 = vunpack.c.l.b16 %v220
      %v233 = vunpack.c.l.b16 %v221
      %v234 = vunpack.c.l.b16 %v222
      %v235 = vpack.c.b16 %v232, %v231
      %v236 = vpack.c.b16 %v234, %v233
      %v241 = vunpack.c.l.b16 %v223
      %v242 = vunpack.c.l.b16 %v224
      %v243 = vunpack.c.l.b16 %v225
      %v244 = vunpack.c.l.b16 %v226
      %v245 = vpack.c.b16 %v242, %v241
      %v246 = vpack.c.b16 %v244, %v243
      %vm249 = vcmask 261120
      %v251 = vsel %vm249, %v235, 0
      %v254 = vsel %vm249, %v236, 0
      %256 = vmatpush.bf16.msra.mxu0 0
      %257 = vmatpush.bf16.msra.mxu0 0
      %258 = vmatpush.bf16.msra.mxu0 0
      %259 = vmatpush.bf16.msra.mxu0 0
      %260 = vmatpush.bf16.msra.mxu0 0
      %261 = vmatpush.bf16.msra.mxu0 0
      %262 = vmatpush.bf16.msra.mxu0 %v246
      %263 = vmatpush.bf16.msra.mxu0 %v245
      %264 = vmatmul.bf16.gmra.mxu0 %v251
      %v265 = vpop.f32.mrf.mxu0
      %v266 = vadd.f32 0.0, %v265
      %v267 = vpop.f32.mrf.mxu0
      %v268 = vadd.f32 0.0, %v267
      %269 = vmatmul.bf16.gmra.mxu0 %v254
      %v270 = vpop.f32.mrf.mxu0
      %v271 = vadd.f32 0.0, %v270
      %v272 = vpop.f32.mrf.mxu0
      %v273 = vadd.f32 0.0, %v272
      %274 = vdwg.mxu0
      %v275 = vld [vmem:[%s3] sm:$0xf]
      %v276 = vld [vmem:[%s3 + $0x4] sm:$0xf]
      %v277 = vld [vmem:[%s3 + $0x8] sm:$0xf]
      %v278 = vld [vmem:[%s3 + $0xc] sm:$0xf]
      %v279 = vld [vmem:[%s207] sm:$0xff]
      %v280 = vld [vmem:[%s207 + $0x8] sm:$0xff]
      %v281 = vld [vmem:[%s207 + $0x10] sm:$0xff]
      %v282 = vld [vmem:[%s207 + $0x18] sm:$0xff]
      %v283 = vld [vmem:[%s207 + $0x20] sm:$0xff]
      %v284 = vld [vmem:[%s207 + $0x28] sm:$0xff]
      %v285 = vld [vmem:[%s207 + $0x30] sm:$0xff]
      %v286 = vld [vmem:[%s207 + $0x38] sm:$0xff]
      %v287 = vld [vmem:[%s207 + $0x40] sm:$0xff]
      %v288 = vld [vmem:[%s207 + $0x48] sm:$0xff]
      %v289 = vld [vmem:[%s207 + $0x50] sm:$0xff]
      %v290 = vld [vmem:[%s207 + $0x58] sm:$0xff]
      %v295 = vunpack.c.l.b16 %v275
      %v296 = vunpack.c.l.b16 %v276
      %v297 = vunpack.c.l.b16 %v277
      %v298 = vunpack.c.l.b16 %v278
      %v299 = vpack.c.b16 %v296, %v295
      %v300 = vpack.c.b16 %v298, %v297
      %v313 = vunpack.c.l.b16 %v279
      %v314 = vunpack.c.h.b16 %v279
      %v315 = vunpack.c.l.b16 %v280
      %v316 = vunpack.c.h.b16 %v280
      %v317 = vunpack.c.l.b16 %v281
      %v318 = vunpack.c.h.b16 %v281
      %v319 = vunpack.c.l.b16 %v282
      %v320 = vunpack.c.h.b16 %v282
      %v321 = vunpack.c.l.b16 %v283
      %v322 = vunpack.c.h.b16 %v283
      %v323 = vunpack.c.l.b16 %v284
      %v324 = vunpack.c.h.b16 %v284
      %v325 = vunpack.c.l.b16 %v285
      %v326 = vunpack.c.h.b16 %v285
      %v327 = vunpack.c.l.b16 %v286
      %v328 = vunpack.c.h.b16 %v286
      %v329 = vunpack.c.l.b16 %v287
      %v330 = vunpack.c.h.b16 %v287
      %v331 = vunpack.c.l.b16 %v288
      %v332 = vunpack.c.h.b16 %v288
      %v333 = vunpack.c.l.b16 %v289
      %v334 = vunpack.c.h.b16 %v289
      %v335 = vunpack.c.l.b16 %v290
      %v336 = vunpack.c.h.b16 %v290
      %v337 = vpack.c.b16 %v319, %v313
      %v338 = vpack.c.b16 %v320, %v314
      %v339 = vpack.c.b16 %v321, %v315
      %v340 = vpack.c.b16 %v322, %v316
      %v341 = vpack.c.b16 %v323, %v317
      %v342 = vpack.c.b16 %v324, %v318
      %v343 = vpack.c.b16 %v331, %v325
      %v344 = vpack.c.b16 %v332, %v326
      %v345 = vpack.c.b16 %v333, %v327
      %v346 = vpack.c.b16 %v334, %v328
      %v347 = vpack.c.b16 %v335, %v329
      %v348 = vpack.c.b16 %v336, %v330
      %v362 = vsel %vm249, %v299, 0
      %v365 = vsel %vm249, %v300, 0
      %367 = vmatpush.bf16.msra.mxu0 0
      %368 = vmatpush.bf16.msra.mxu0 0
      %369 = vmatpush.bf16.msra.mxu0 0
      %370 = vmatpush.bf16.msra.mxu0 0
      %371 = vmatpush.bf16.msra.mxu0 0
      %372 = vmatpush.bf16.msra.mxu0 0
      %373 = vmatpush.bf16.msra.mxu0 %v343
      %374 = vmatpush.bf16.msra.mxu0 %v337
      %375 = vmatmul.bf16.gmra.mxu0 %v362
      %v376 = vpop.f32.mrf.mxu0
      %v377 = vadd.f32 %v266, %v376
      %v378 = vpop.f32.mrf.mxu0
      %v379 = vadd.f32 %v268, %v378
      %380 = vmatmul.bf16.gmra.mxu0 %v365
      %v381 = vpop.f32.mrf.mxu0
      %v382 = vadd.f32 %v271, %v381
      %v383 = vpop.f32.mrf.mxu0
      %v384 = vadd.f32 %v273, %v383
      %385 = vdwg.mxu0
      %386 = vmatpush.bf16.msra.mxu0 0
      %387 = vmatpush.bf16.msra.mxu0 0
      %388 = vmatpush.bf16.msra.mxu0 0
      %389 = vmatpush.bf16.msra.mxu0 0
      %390 = vmatpush.bf16.msra.mxu0 0
      %391 = vmatpush.bf16.msra.mxu0 0
      %392 = vmatpush.bf16.msra.mxu0 %v344
      %393 = vmatpush.bf16.msra.mxu0 %v338
      %394 = vmatmul.bf16.gmra.mxu0 %v362
      %v395 = vpop.f32.mrf.mxu0
      %v396 = vadd.f32 %v266, %v395
      %v397 = vpop.f32.mrf.mxu0
      %v398 = vadd.f32 %v268, %v397
      %399 = vmatmul.bf16.gmra.mxu0 %v365
      %v400 = vpop.f32.mrf.mxu0
      %v401 = vadd.f32 %v271, %v400
      %v402 = vpop.f32.mrf.mxu0
      %v403 = vadd.f32 %v273, %v402
      %404 = vdwg.mxu0
      %405 = vmatpush.bf16.msra.mxu0 0
      %406 = vmatpush.bf16.msra.mxu0 0
      %407 = vmatpush.bf16.msra.mxu0 0
      %408 = vmatpush.bf16.msra.mxu0 0
      %409 = vmatpush.bf16.msra.mxu0 0
      %410 = vmatpush.bf16.msra.mxu0 0
      %411 = vmatpush.bf16.msra.mxu0 %v345
      %412 = vmatpush.bf16.msra.mxu0 %v339
      %413 = vmatmul.bf16.gmra.mxu0 %v362
      %v414 = vpop.f32.mrf.mxu0
      %v415 = vadd.f32 %v266, %v414
      %v416 = vpop.f32.mrf.mxu0
      %v417 = vadd.f32 %v268, %v416
      %418 = vmatmul.bf16.gmra.mxu0 %v365
      %v419 = vpop.f32.mrf.mxu0
      %v420 = vadd.f32 %v271, %v419
      %v421 = vpop.f32.mrf.mxu0
      %v422 = vadd.f32 %v273, %v421
      %423 = vdwg.mxu0
      %424 = vmatpush.bf16.msra.mxu0 0
      %425 = vmatpush.bf16.msra.mxu0 0
      %426 = vmatpush.bf16.msra.mxu0 0
      %427 = vmatpush.bf16.msra.mxu0 0
      %428 = vmatpush.bf16.msra.mxu0 0
      %429 = vmatpush.bf16.msra.mxu0 0
      %430 = vmatpush.bf16.msra.mxu0 %v346
      %431 = vmatpush.bf16.msra.mxu0 %v340
      %432 = vmatmul.bf16.gmra.mxu0 %v362
      %v433 = vpop.f32.mrf.mxu0
      %v434 = vadd.f32 %v266, %v433
      %v435 = vpop.f32.mrf.mxu0
      %v436 = vadd.f32 %v268, %v435
      %437 = vmatmul.bf16.gmra.mxu0 %v365
      %v438 = vpop.f32.mrf.mxu0
      %v439 = vadd.f32 %v271, %v438
      %v440 = vpop.f32.mrf.mxu0
      %v441 = vadd.f32 %v273, %v440
      %442 = vdwg.mxu0
      %443 = vmatpush.bf16.msra.mxu0 0
      %444 = vmatpush.bf16.msra.mxu0 0
      %445 = vmatpush.bf16.msra.mxu0 0
      %446 = vmatpush.bf16.msra.mxu0 0
      %447 = vmatpush.bf16.msra.mxu0 0
      %448 = vmatpush.bf16.msra.mxu0 0
      %449 = vmatpush.bf16.msra.mxu0 %v347
      %450 = vmatpush.bf16.msra.mxu0 %v341
      %451 = vmatmul.bf16.gmra.mxu0 %v362
      %v452 = vpop.f32.mrf.mxu0
      %v453 = vadd.f32 %v266, %v452
      %v454 = vpop.f32.mrf.mxu0
      %v455 = vadd.f32 %v268, %v454
      %456 = vmatmul.bf16.gmra.mxu0 %v365
      %v457 = vpop.f32.mrf.mxu0
      %v458 = vadd.f32 %v271, %v457
      %v459 = vpop.f32.mrf.mxu0
      %v460 = vadd.f32 %v273, %v459
      %461 = vdwg.mxu0
      %462 = vmatpush.bf16.msra.mxu0 0
      %463 = vmatpush.bf16.msra.mxu0 0
      %464 = vmatpush.bf16.msra.mxu0 0
      %465 = vmatpush.bf16.msra.mxu0 0
      %466 = vmatpush.bf16.msra.mxu0 0
      %467 = vmatpush.bf16.msra.mxu0 0
      %468 = vmatpush.bf16.msra.mxu0 %v348
      %469 = vmatpush.bf16.msra.mxu0 %v342
      %470 = vmatmul.bf16.gmra.mxu0 %v362
      %v471 = vpop.f32.mrf.mxu0
      %v472 = vadd.f32 %v266, %v471
      %v473 = vpop.f32.mrf.mxu0
      %v474 = vadd.f32 %v268, %v473
      %475 = vmatmul.bf16.gmra.mxu0 %v365
      %v476 = vpop.f32.mrf.mxu0
      %v477 = vadd.f32 %v271, %v476
      %v478 = vpop.f32.mrf.mxu0
      %v479 = vadd.f32 %v273, %v478
      %480 = vdwg.mxu0
      %v481 = vadd.f32 %v377, %v396
      %v482 = vadd.f32 %v481, %v415
      %v483 = vadd.f32 %v482, %v434
      %v484 = vadd.f32 %v483, %v453
      %v485 = vadd.f32 %v484, %v472
      %486 = vadd.xlane.f32.xlu0 %v485
      %v487 = vpop.xlane.xlu0 %486
      %v488 = vadd.f32 %v379, %v398
      %v489 = vadd.f32 %v488, %v417
      %v490 = vadd.f32 %v489, %v436
      %v491 = vadd.f32 %v490, %v455
      %v492 = vadd.f32 %v491, %v474
      %493 = vadd.xlane.f32.xlu0 %v492
      %v494 = vpop.xlane.xlu0 %493
      %v495 = vadd.f32 %v382, %v401
      %v496 = vadd.f32 %v495, %v420
      %v497 = vadd.f32 %v496, %v439
      %v498 = vadd.f32 %v497, %v458
      %v499 = vadd.f32 %v498, %v477
      %500 = vadd.xlane.f32.xlu0 %v499
      %v501 = vpop.xlane.xlu0 %500
      %v502 = vadd.f32 %v384, %v403
      %v503 = vadd.f32 %v502, %v422
      %v504 = vadd.f32 %v503, %v441
      %v505 = vadd.f32 %v504, %v460
      %v506 = vadd.f32 %v505, %v479
      %507 = vadd.xlane.f32.xlu0 %v506
      %v508 = vpop.xlane.xlu0 %507
      %v509 = vmul.f32 %v487, 0.0013020834
      %v510 = vmul.f32 %v494, 0.0013020834
      %v511 = vmul.f32 %v501, 0.0013020834
      %v512 = vmul.f32 %v508, 0.0013020834
      %v513 = vsub.f32 %v377, %v509
      %v514 = vsub.f32 %v396, %v509
      %v515 = vsub.f32 %v415, %v509
      %v516 = vsub.f32 %v434, %v509
      %v517 = vsub.f32 %v453, %v509
      %v518 = vsub.f32 %v472, %v509
      %v519 = vsub.f32 %v379, %v510
      %v520 = vsub.f32 %v398, %v510
      %v521 = vsub.f32 %v417, %v510
      %v522 = vsub.f32 %v436, %v510
      %v523 = vsub.f32 %v455, %v510
      %v524 = vsub.f32 %v474, %v510
      %v525 = vsub.f32 %v382, %v511
      %v526 = vsub.f32 %v401, %v511
      %v527 = vsub.f32 %v420, %v511
      %v528 = vsub.f32 %v439, %v511
      %v529 = vsub.f32 %v458, %v511
      %v530 = vsub.f32 %v477, %v511
      %v531 = vsub.f32 %v384, %v512
      %v532 = vsub.f32 %v403, %v512
      %v533 = vsub.f32 %v422, %v512
      %v534 = vsub.f32 %v441, %v512
      %v535 = vsub.f32 %v460, %v512
      %v536 = vsub.f32 %v479, %v512
      %v537 = vmul.f32 %v513, %v513
      %v538 = vmul.f32 %v514, %v514
      %v539 = vmul.f32 %v515, %v515
      %v540 = vmul.f32 %v516, %v516
      %v541 = vmul.f32 %v517, %v517
      %v542 = vmul.f32 %v518, %v518
      %v543 = vmul.f32 %v519, %v519
      %v544 = vmul.f32 %v520, %v520
      %v545 = vmul.f32 %v521, %v521
      %v546 = vmul.f32 %v522, %v522
      %v547 = vmul.f32 %v523, %v523
      %v548 = vmul.f32 %v524, %v524
      %v549 = vmul.f32 %v525, %v525
      %v550 = vmul.f32 %v526, %v526
      %v551 = vmul.f32 %v527, %v527
      %v552 = vmul.f32 %v528, %v528
      %v553 = vmul.f32 %v529, %v529
      %v554 = vmul.f32 %v530, %v530
      %v555 = vmul.f32 %v531, %v531
      %v556 = vmul.f32 %v532, %v532
      %v557 = vmul.f32 %v533, %v533
      %v558 = vmul.f32 %v534, %v534
      %v559 = vmul.f32 %v535, %v535
      %v560 = vmul.f32 %v536, %v536
      %v561 = vadd.f32 %v537, %v538
      %v562 = vadd.f32 %v561, %v539
      %v563 = vadd.f32 %v562, %v540
      %v564 = vadd.f32 %v563, %v541
      %v565 = vadd.f32 %v564, %v542
      %566 = vadd.xlane.f32.xlu0 %v565
      %v567 = vpop.xlane.xlu0 %566
      %v568 = vadd.f32 %v543, %v544
      %v569 = vadd.f32 %v568, %v545
      %v570 = vadd.f32 %v569, %v546
      %v571 = vadd.f32 %v570, %v547
      %v572 = vadd.f32 %v571, %v548
      %573 = vadd.xlane.f32.xlu0 %v572
      %v574 = vpop.xlane.xlu0 %573
      %v575 = vadd.f32 %v549, %v550
      %v576 = vadd.f32 %v575, %v551
      %v577 = vadd.f32 %v576, %v552
      %v578 = vadd.f32 %v577, %v553
      %v579 = vadd.f32 %v578, %v554
      %580 = vadd.xlane.f32.xlu0 %v579
      %v581 = vpop.xlane.xlu0 %580
      %v582 = vadd.f32 %v555, %v556
      %v583 = vadd.f32 %v582, %v557
      %v584 = vadd.f32 %v583, %v558
      %v585 = vadd.f32 %v584, %v559
      %v586 = vadd.f32 %v585, %v560
      %587 = vadd.xlane.f32.xlu0 %v586
      %v588 = vpop.xlane.xlu0 %587
      %v589 = vmul.f32 %v567, 0.0013020834
      %v590 = vmul.f32 %v574, 0.0013020834
      %v591 = vmul.f32 %v581, 0.0013020834
      %v592 = vmul.f32 %v588, 0.0013020834
      %v593 = vadd.f32 %v589, 1e-05
      %v594 = vadd.f32 %v590, 1e-05
      %v595 = vadd.f32 %v591, 1e-05
      %v596 = vadd.f32 %v592, 1e-05
      %v597 = vrsqrt.pop %v593
      %v598 = vmul.f32 %v597, %v593
      %v599 = vmul.f32 %v598, %v597
      %v600 = vmul.f32 0.5, %v599
      %v601 = vsub.f32 1.5, %v600
      %v602 = vmul.f32 %v597, %v601
      %vm603 = vweird.f32 %v593
      %vm604 = vweird.f32 %v597
      %vm605 = vmor %vm603, %vm604
      %v606 = vsel %vm605, %v597, %v602
      %v607 = vrsqrt.pop %v594
      %v608 = vmul.f32 %v607, %v594
      %v609 = vmul.f32 %v608, %v607
      %v610 = vmul.f32 0.5, %v609
      %v611 = vsub.f32 1.5, %v610
      %v612 = vmul.f32 %v607, %v611
      %vm613 = vweird.f32 %v594
      %vm614 = vweird.f32 %v607
      %vm615 = vmor %vm613, %vm614
      %v616 = vsel %vm615, %v607, %v612
      %v617 = vrsqrt.pop %v595
      %v618 = vmul.f32 %v617, %v595
      %v619 = vmul.f32 %v618, %v617
      %v620 = vmul.f32 0.5, %v619
      %v621 = vsub.f32 1.5, %v620
      %v622 = vmul.f32 %v617, %v621
      %vm623 = vweird.f32 %v595
      %vm624 = vweird.f32 %v617
      %vm625 = vmor %vm623, %vm624
      %v626 = vsel %vm625, %v617, %v622
      %v627 = vrsqrt.pop %v596
      %v628 = vmul.f32 %v627, %v596
      %v629 = vmul.f32 %v628, %v627
      %v630 = vmul.f32 0.5, %v629
      %v631 = vsub.f32 1.5, %v630
      %v632 = vmul.f32 %v627, %v631
      %vm633 = vweird.f32 %v596
      %vm634 = vweird.f32 %v627
      %vm635 = vmor %vm633, %vm634
      %v636 = vsel %vm635, %v627, %v632
      %v637 = vmul.f32 %v513, %v606
      %v638 = vmul.f32 %v514, %v606
      %v639 = vmul.f32 %v515, %v606
      %v640 = vmul.f32 %v516, %v606
      %v641 = vmul.f32 %v517, %v606
      %v642 = vmul.f32 %v518, %v606
      %v643 = vmul.f32 %v519, %v616
      %v644 = vmul.f32 %v520, %v616
      %v645 = vmul.f32 %v521, %v616
      %v646 = vmul.f32 %v522, %v616
      %v647 = vmul.f32 %v523, %v616
      %v648 = vmul.f32 %v524, %v616
      %v649 = vmul.f32 %v525, %v626
      %v650 = vmul.f32 %v526, %v626
      %v651 = vmul.f32 %v527, %v626
      %v652 = vmul.f32 %v528, %v626
      %v653 = vmul.f32 %v529, %v626
      %v654 = vmul.f32 %v530, %v626
      %v655 = vmul.f32 %v531, %v636
      %v656 = vmul.f32 %v532, %v636
      %v657 = vmul.f32 %v533, %v636
      %v658 = vmul.f32 %v534, %v636
      %v659 = vmul.f32 %v535, %v636
      %v660 = vmul.f32 %v536, %v636
      %vm661 = vcmp.ge.f32.partialorder %v637, 0.0
      %vm662 = vcmp.ge.f32.partialorder %v638, 0.0
      %vm663 = vcmp.ge.f32.partialorder %v639, 0.0
      %vm664 = vcmp.ge.f32.partialorder %v640, 0.0
      %vm665 = vcmp.ge.f32.partialorder %v641, 0.0
      %vm666 = vcmp.ge.f32.partialorder %v642, 0.0
      %vm667 = vcmp.ge.f32.partialorder %v643, 0.0
      %vm668 = vcmp.ge.f32.partialorder %v644, 0.0
      %vm669 = vcmp.ge.f32.partialorder %v645, 0.0
      %vm670 = vcmp.ge.f32.partialorder %v646, 0.0
      %vm671 = vcmp.ge.f32.partialorder %v647, 0.0
      %vm672 = vcmp.ge.f32.partialorder %v648, 0.0
      %vm673 = vcmp.ge.f32.partialorder %v649, 0.0
      %vm674 = vcmp.ge.f32.partialorder %v650, 0.0
      %vm675 = vcmp.ge.f32.partialorder %v651, 0.0
      %vm676 = vcmp.ge.f32.partialorder %v652, 0.0
      %vm677 = vcmp.ge.f32.partialorder %v653, 0.0
      %vm678 = vcmp.ge.f32.partialorder %v654, 0.0
      %vm679 = vcmp.ge.f32.partialorder %v655, 0.0
      %vm680 = vcmp.ge.f32.partialorder %v656, 0.0
      %vm681 = vcmp.ge.f32.partialorder %v657, 0.0
      %vm682 = vcmp.ge.f32.partialorder %v658, 0.0
      %vm683 = vcmp.ge.f32.partialorder %v659, 0.0
      %vm684 = vcmp.ge.f32.partialorder %v660, 0.0
      %v685 = vmul.f32 %v637, 0.2
      %v686 = vmul.f32 %v638, 0.2
      %v687 = vmul.f32 %v639, 0.2
      %v688 = vmul.f32 %v640, 0.2
      %v689 = vmul.f32 %v641, 0.2
      %v690 = vmul.f32 %v642, 0.2
      %v691 = vmul.f32 %v643, 0.2
      %v692 = vmul.f32 %v644, 0.2
      %v693 = vmul.f32 %v645, 0.2
      %v694 = vmul.f32 %v646, 0.2
      %v695 = vmul.f32 %v647, 0.2
      %v696 = vmul.f32 %v648, 0.2
      %v697 = vmul.f32 %v649, 0.2
      %v698 = vmul.f32 %v650, 0.2
      %v699 = vmul.f32 %v651, 0.2
      %v700 = vmul.f32 %v652, 0.2
      %v701 = vmul.f32 %v653, 0.2
      %v702 = vmul.f32 %v654, 0.2
      %v703 = vmul.f32 %v655, 0.2
      %v704 = vmul.f32 %v656, 0.2
      %v705 = vmul.f32 %v657, 0.2
      %v706 = vmul.f32 %v658, 0.2
      %v707 = vmul.f32 %v659, 0.2
      %v708 = vmul.f32 %v660, 0.2
      %v709 = vsel %vm661, %v637, %v685
      %v710 = vsel %vm662, %v638, %v686
      %v711 = vsel %vm663, %v639, %v687
      %v712 = vsel %vm664, %v640, %v688
      %v713 = vsel %vm665, %v641, %v689
      %v714 = vsel %vm666, %v642, %v690
      %v715 = vsel %vm667, %v643, %v691
      %v716 = vsel %vm668, %v644, %v692
      %v717 = vsel %vm669, %v645, %v693
      %v718 = vsel %vm670, %v646, %v694
      %v719 = vsel %vm671, %v647, %v695
      %v720 = vsel %vm672, %v648, %v696
      %v721 = vsel %vm673, %v649, %v697
      %v722 = vsel %vm674, %v650, %v698
      %v723 = vsel %vm675, %v651, %v699
      %v724 = vsel %vm676, %v652, %v700
      %v725 = vsel %vm677, %v653, %v701
      %v726 = vsel %vm678, %v654, %v702
      %v727 = vsel %vm679, %v655, %v703
      %v728 = vsel %vm680, %v656, %v704
      %v729 = vsel %vm681, %v657, %v705
      %v730 = vsel %vm682, %v658, %v706
      %v731 = vsel %vm683, %v659, %v707
      %v732 = vsel %vm684, %v660, %v708
      %v733 = vmax.f32 %v709, %v710
      %v734 = vmax.f32 %v715, %v716
      %v735 = vmax.f32 %v721, %v722
      %v736 = vmax.f32 %v727, %v728
      %v737 = vmax.f32 %v733, %v711
      %v738 = vmax.f32 %v734, %v717
      %v739 = vmax.f32 %v735, %v723
      %v740 = vmax.f32 %v736, %v729
      %v741 = vmax.f32 %v737, %v712
      %v742 = vmax.f32 %v738, %v718
      %v743 = vmax.f32 %v739, %v724
      %v744 = vmax.f32 %v740, %v730
      %v745 = vmax.f32 %v741, %v713
      %v746 = vmax.f32 %v742, %v719
      %v747 = vmax.f32 %v743, %v725
      %v748 = vmax.f32 %v744, %v731
      %v749 = vmax.f32 %v745, %v714
      %v750 = vmax.f32 %v746, %v720
      %v751 = vmax.f32 %v747, %v726
      %v752 = vmax.f32 %v748, %v732
      %v753 = vpack.c.bf16 %v749, %v749
      %v754 = vpack.c.bf16 %v750, %v750
      %v755 = vpack.c.bf16 %v751, %v751
      %v756 = vpack.c.bf16 %v752, %v752
      %757 = vst [vmem:[%s217] sm:$0xf] %v753
      %758 = vst [vmem:[%s217 + $0x4] sm:$0xf] %v754
      %759 = vst [vmem:[%s217 + $0x8] sm:$0xf] %v755
      %760 = vst [vmem:[%s217 + $0xc] sm:$0xf] %v756
      %p761 = scmp.lt.s32.totalorder %s15, 1
      %s762 = scalar_select %p761, %s15, 1
      %s763 = smul.addr %s762, 4
      %s764 = smul.addr %s763, 4
      %s765 = scalar_lea.vmem %s4, %s764
      // Predicated region
      $region37: #{gge_forward.7} parent=35 // pred_check
        %p766 = pneg %p127
      $region38: #{gge_forward.7} parent=35 // pred_check_branch
        %768 = sbr.rel (%p766) target = $region40
      $region39: #{gge_forward.7} parent=35 // pred_region
        _
      $region40: #{gge_forward.7} parent=35 // pred_fallthru
        _
    $region36: #{gge_forward.7} parent=5 // pred_fallthru
      _
    %p769 = scmp.le.s32.totalorder 2, %s10
    // Predicated region
    $region41: #{gge_forward.7} parent=5 // pred_check
      %p770 = pneg %p769
    $region42: #{gge_forward.7} parent=5 // pred_check_branch
      %772 = sbr.rel (%p770) target = $region44
    $region43: #{gge_forward.7} parent=5 // pred_region
      %s773 = ssub.s32 %s10, 2
      // Predicated region
      $region45: #{gge_forward.7} parent=43 // pred_check
        %p774 = pneg %p133
      $region46: #{gge_forward.7} parent=43 // pred_check_branch
        %776 = sbr.rel (%p774) target = $region48
      $region47: #{gge_forward.7} parent=43 // pred_region
        %p777 = scmp.lt.s32.totalorder %s16, 1
        %s778 = scalar_select %p777, %s16, 1
        %s779 = smul.addr %s778, 4
        %s780 = smul.addr %s779, 4
        %s781 = scalar_lea.vmem %s4, %s780
      $region48: #{gge_forward.7} parent=43 // pred_fallthru
        _
    $region44: #{gge_forward.7} parent=5 // pred_fallthru
      _
  $region6: #{gge_forward.7} parent=0 // loop_footer
    %s14 = sadd.s32 1, %s10
  $region7: #{gge_forward.7} parent=0 // loop_footer_branch
    %9 = sbr.rel target = $region3
  $region8: #{gge_forward.7} parent=0 // loop_exit
    _

// kernel: gge_forward.8
$region0: #{gge_forward.8}
  #allocation0 [shape = 'u32[]', space=smem, size = 0x4, offset = 0x4, fixed_abs, tag = 'smem constant byte address 0x4 - core index']
  #allocation1 [shape = 'u32[72,128]{1,0:T(1,128)}', space=vmem, size = 0x9000, scoped, tag = 'internal scratch']
  %s0 = inlined_call_operand.vmem [shape: bf16[2,32,768], index: 0, kind: input, shape index: {}]
  %s1 = inlined_call_operand.vmem [shape: bf16[2,32,128], index: 1, kind: input, shape index: {}]
  %s2 = inlined_call_operand.vmem [shape: bf16[64,32], index: 2, kind: input, shape index: {}]
  %s3 = inlined_call_operand.vmem [shape: bf16[64,32], index: 3, kind: input, shape index: {}]
  %s4 = inlined_call_operand.vmem [shape: bf16[2,64,128], index: 4, kind: output, shape index: {}]
  %s5 = sld [smem:[#allocation0]]
  $region49: #{gge_forward.8} parent=0
    _
  %s7 = ssub.s32 1, %s5
  %s8 = scalar_select 0, %s7, %s5
  loop: start=0, step=1, limit=4
  $region2: #{gge_forward.8} parent=0 // loop_pre_header
    _
  $region3: #{gge_forward.8} parent=0 // loop_header
    %s10 = sphi 0, %s14
    %p11 = scmp.ge.s32.totalorder %s10, 4
    %s20 = sphi 0, %s22
    %s23 = sphi 0, %s20
    %s24 = sphi 0, %s23
    %s40 = sphi 0, %s24
    %s46 = sphi 0, %s48
    %s49 = sphi 0, %s46
    %s50 = sphi 0, %s49
    %s66 = sphi 0, %s50
    %s70 = sphi 0, %s70
    %s72 = sphi 0, %s70
    %s73 = sphi 0, %s72
    %s87 = sphi 0, %s73
    %s91 = sphi 0, %s91
    %s93 = sphi 0, %s91
    %s94 = sphi 0, %s93
    %s108 = sphi 0, %s94
    %s114 = sphi 0, %s116
    %s117 = sphi 0, %s114
    %s118 = sphi 0, %s117
    %s134 = sphi 0, %s118
  $region4: #{gge_forward.8} parent=0 // loop_header_branch
    %13 = sbr.rel (%p11) target = $region8
  $region5: #{gge_forward.8} parent=0 // loop_body
    %s15 = ssub.s32 %s10, 1
    %s16 = ssub.s32 %s10, 2
    %s17 = sadd.s32 %s10, 1
    %s18 = ssub.s32 %s10, %s17
    %p19 = scmp.eq.s32.totalorder %s18, 0
    %s21 = sadd.s32 %s20, 1
    %s22 = scalar_select %p19, %s20, %s21
    %p25 = pneg %p19
    %p26 = scmp.eq.s32.totalorder %s10, 1
    %p27 = por %p25, %p26
    %p28 = scmp.ne.s32.totalorder %s20, %s23
    %p29 = scmp.eq.s32.totalorder %s10, 0
    %p30 = por %p28, %p29
    %p31 = scmp.ne.s32.totalorder %s20, %s23
    %p32 = scmp.eq.s32.totalorder %s15, 1
    %p33 = por %p31, %p32
    %p34 = scmp.ne.s32.totalorder %s23, %s24
    %p35 = scmp.eq.s32.totalorder %s15, 0
    %p36 = por %p34, %p35
    %p37 = scmp.ne.s32.totalorder %s23, %s24
    %p38 = scmp.eq.s32.totalorder %s16, 1
    %p39 = por %p37, %p38
    %p41 = scmp.ne.s32.totalorder %s24, %s40
    %p42 = scmp.eq.s32.totalorder %s16, 0
    %p43 = por %p41, %p42
    %s44 = ssub.s32 %s10, %s17
    %p45 = scmp.eq.s32.totalorder %s44, 0
    %s47 = sadd.s32 %s46, 1
    %s48 = scalar_select %p45, %s46, %s47
    %p51 = pneg %p45
    %p52 = scmp.eq.s32.totalorder %s10, 1
    %p53 = por %p51, %p52
    %p54 = scmp.ne.s32.totalorder %s46, %s49
    %p55 = scmp.eq.s32.totalorder %s10, 0
    %p56 = por %p54, %p55
    %p57 = scmp.ne.s32.totalorder %s46, %s49
    %p58 = scmp.eq.s32.totalorder %s15, 1
    %p59 = por %p57, %p58
    %p60 = scmp.ne.s32.totalorder %s49, %s50
    %p61 = scmp.eq.s32.totalorder %s15, 0
    %p62 = por %p60, %p61
    %p63 = scmp.ne.s32.totalorder %s49, %s50
    %p64 = scmp.eq.s32.totalorder %s16, 1
    %p65 = por %p63, %p64
    %p67 = scmp.ne.s32.totalorder %s50, %s66
    %p68 = scmp.eq.s32.totalorder %s16, 0
    %p69 = por %p67, %p68
    %s71 = sadd.s32 %s70, 1
    %p74 = scmp.eq.s32.totalorder %s10, 1
    %p75 = scmp.ne.s32.totalorder %s70, %s72
    %p76 = scmp.eq.s32.totalorder %s10, 0
    %p77 = por %p75, %p76
    %p78 = scmp.ne.s32.totalorder %s70, %s72
    %p79 = scmp.eq.s32.totalorder %s15, 1
    %p80 = por %p78, %p79
    %p81 = scmp.ne.s32.totalorder %s72, %s73
    %p82 = scmp.eq.s32.totalorder %s15, 0
    %p83 = por %p81, %p82
    %p84 = scmp.ne.s32.totalorder %s72, %s73
    %p85 = scmp.eq.s32.totalorder %s16, 1
    %p86 = por %p84, %p85
    %p88 = scmp.ne.s32.totalorder %s73, %s87
    %p89 = scmp.eq.s32.totalorder %s16, 0
    %p90 = por %p88, %p89
    %s92 = sadd.s32 %s91, 1
    %p95 = scmp.eq.s32.totalorder %s10, 1
    %p96 = scmp.ne.s32.totalorder %s91, %s93
    %p97 = scmp.eq.s32.totalorder %s10, 0
    %p98 = por %p96, %p97
    %p99 = scmp.ne.s32.totalorder %s91, %s93
    %p100 = scmp.eq.s32.totalorder %s15, 1
    %p101 = por %p99, %p100
    %p102 = scmp.ne.s32.totalorder %s93, %s94
    %p103 = scmp.eq.s32.totalorder %s15, 0
    %p104 = por %p102, %p103
    %p105 = scmp.ne.s32.totalorder %s93, %s94
    %p106 = scmp.eq.s32.totalorder %s16, 1
    %p107 = por %p105, %p106
    %p109 = scmp.ne.s32.totalorder %s94, %s108
    %p110 = scmp.eq.s32.totalorder %s16, 0
    %p111 = por %p109, %p110
    %s112 = ssub.s32 %s10, %s17
    %p113 = scmp.eq.s32.totalorder %s112, 0
    %s115 = sadd.s32 %s114, 1
    %s116 = scalar_select %p113, %s114, %s115
    %p119 = pneg %p113
    %p120 = scmp.eq.s32.totalorder %s10, 1
    %p121 = por %p119, %p120
    %p122 = scmp.ne.s32.totalorder %s114, %s117
    %p123 = scmp.eq.s32.totalorder %s10, 0
    %p124 = por %p122, %p123
    %p125 = scmp.ne.s32.totalorder %s114, %s117
    %p126 = scmp.eq.s32.totalorder %s15, 1
    %p127 = por %p125, %p126
    %p128 = scmp.ne.s32.totalorder %s117, %s118
    %p129 = scmp.eq.s32.totalorder %s15, 0
    %p130 = por %p128, %p129
    %p131 = scmp.ne.s32.totalorder %s117, %s118
    %p132 = scmp.eq.s32.totalorder %s16, 1
    %p133 = por %p131, %p132
    %p135 = scmp.ne.s32.totalorder %s118, %s134
    %p136 = scmp.eq.s32.totalorder %s16, 0
    %p137 = por %p135, %p136
    %p138 = scmp.le.s32.totalorder 1, %s10
    %p139 = scmp.lt.s32.totalorder %s10, 3
    %p140 = pnand %p138, %p139
    %p141 = pneg %p140
    // Predicated region
    $region9: #{gge_forward.8} parent=5 // pred_check
      _
    $region10: #{gge_forward.8} parent=5 // pred_check_branch
      %143 = sbr.rel (%p140) target = $region12
    $region11: #{gge_forward.8} parent=5 // pred_region
      %s144 = ssub.s32 %s10, 1
      // Predicated region
      $region13: #{gge_forward.8} parent=11 // pred_check
        %p145 = pneg %p83
      $region14: #{gge_forward.8} parent=11 // pred_check_branch
        %147 = sbr.rel (%p145) target = $region16
      $region15: #{gge_forward.8} parent=11 // pred_region
        _
      $region16: #{gge_forward.8} parent=11 // pred_fallthru
        _
      // Predicated region
      $region17: #{gge_forward.8} parent=11 // pred_check
        %p148 = pneg %p104
      $region18: #{gge_forward.8} parent=11 // pred_check_branch
        %150 = sbr.rel (%p148) target = $region20
      $region19: #{gge_forward.8} parent=11 // pred_region
        _
      $region20: #{gge_forward.8} parent=11 // pred_fallthru
        _
    $region12: #{gge_forward.8} parent=5 // pred_fallthru
      _
    %p151 = scmp.lt.s32.totalorder %s10, 2
    // Predicated region
    $region21: #{gge_forward.8} parent=5 // pred_check
      %p152 = pneg %p151
    $region22: #{gge_forward.8} parent=5 // pred_check_branch
      %154 = sbr.rel (%p152) target = $region24
    $region23: #{gge_forward.8} parent=5 // pred_region
      // Predicated region
      $region25: #{gge_forward.8} parent=23 // pred_check
        %p155 = pneg %p30
      $region26: #{gge_forward.8} parent=23 // pred_check_branch
        %157 = sbr.rel (%p155) target = $region28
      $region27: #{gge_forward.8} parent=23 // pred_region
        %p158 = scmp.lt.s32.totalorder %s10, 1
        %s159 = scalar_select %p158, %s10, 1
        %s160 = smul.addr %s159, 24
        %s161 = smul.addr %s160, 4
        %s162 = scalar_lea.vmem %s0, %s161
      $region28: #{gge_forward.8} parent=23 // pred_fallthru
        _
      // Predicated region
      $region29: #{gge_forward.8} parent=23 // pred_check
        %p163 = pneg %p56
      $region30: #{gge_forward.8} parent=23 // pred_check_branch
        %165 = sbr.rel (%p163) target = $region32
      $region31: #{gge_forward.8} parent=23 // pred_region
        %p166 = scmp.lt.s32.totalorder %s10, 1
        %s167 = scalar_select %p166, %s10, 1
        %s168 = smul.addr %s167, 4
        %s169 = smul.addr %s168, 4
        %s170 = scalar_lea.vmem %s1, %s169
      $region32: #{gge_forward.8} parent=23 // pred_fallthru
        _
    $region24: #{gge_forward.8} parent=5 // pred_fallthru
      _
    %p171 = scmp.le.s32.totalorder 1, %s10
    %p172 = scmp.lt.s32.totalorder %s10, 3
    %p173 = pnand %p171, %p172
    %p174 = pneg %p173
    // Predicated region
    $region33: #{gge_forward.8} parent=5 // pred_check
      _
    $region34: #{gge_forward.8} parent=5 // pred_check_branch
      %176 = sbr.rel (%p173) target = $region36
    $region35: #{gge_forward.8} parent=5 // pred_region
      %s177 = ssub.s32 %s10, 1
      %p178 = scmp.lt.s32.totalorder %s15, 1
      %s179 = scalar_select %p178, %s15, 1
      %s180 = smul.addr %s179, 24
      %s181 = smul.addr %s180, 4
      %s182 = scalar_lea.vmem %s0, %s181
      %p183 = pneg %p36
      %p184 = pneg %p33
      %p185 = scmp.lt.s32.totalorder %s15, 1
      %s186 = scalar_select %p185, %s15, 1
      %s187 = smul.addr %s186, 4
      %s188 = smul.addr %s187, 4
      %s189 = scalar_lea.vmem %s1, %s188
      %p190 = pneg %p62
      %p191 = pneg %p59
      %p192 = pneg %p83
      %p193 = pneg %p80
      %p194 = pneg %p104
      %p195 = pneg %p101
      %p196 = pneg %p130
      %p197 = pneg %p127
      %p198 = scmp.lt.s32.totalorder %s15, 1
      %s199 = scalar_select %p198, %s15, 1
      %s200 = smul.addr %s199, 8
      %s201 = smul.addr %s200, 4
      %s202 = scalar_lea.vmem %s4, %s201
      %p203 = scmp.lt.s32.totalorder %s15, 1
      %s204 = scalar_select %p203, %s15, 1
      %s205 = smul.addr %s204, 24
      %s206 = smul.addr %s205, 4
      %s207 = scalar_lea.vmem %s0, %s206
      %p208 = scmp.lt.s32.totalorder %s15, 1
      %s209 = scalar_select %p208, %s15, 1
      %s210 = smul.addr %s209, 4
      %s211 = smul.addr %s210, 4
      %s212 = scalar_lea.vmem %s1, %s211
      %p213 = scmp.lt.s32.totalorder %s15, 1
      %s214 = scalar_select %p213, %s15, 1
      %s215 = smul.addr %s214, 8
      %s216 = smul.addr %s215, 4
      %s217 = scalar_lea.vmem %s4, %s216
      %v219 = vld [vmem:[%s2] sm:$0xf]
      %v220 = vld [vmem:[%s2 + $0x4] sm:$0xf]
      %v221 = vld [vmem:[%s2 + $0x8] sm:$0xf]
      %v222 = vld [vmem:[%s2 + $0xc] sm:$0xf]
      %v223 = vld [vmem:[%s2 + $0x10] sm:$0xf]
      %v224 = vld [vmem:[%s2 + $0x14] sm:$0xf]
      %v225 = vld [vmem:[%s2 + $0x18] sm:$0xf]
      %v226 = vld [vmem:[%s2 + $0x1c] sm:$0xf]
      %v227 = vld [vmem:[%s212] sm:$0xf]
      %v228 = vld [vmem:[%s212 + $0x4] sm:$0xf]
      %v229 = vld [vmem:[%s212 + $0x8] sm:$0xf]
      %v230 = vld [vmem:[%s212 + $0xc] sm:$0xf]
      %v239 = vunpack.c.l.b16 %v219
      %v240 = vunpack.c.l.b16 %v220
      %v241 = vunpack.c.l.b16 %v221
      %v242 = vunpack.c.l.b16 %v222
      %v243 = vunpack.c.l.b16 %v223
      %v244 = vunpack.c.l.b16 %v224
      %v245 = vunpack.c.l.b16 %v225
      %v246 = vunpack.c.l.b16 %v226
      %v247 = vpack.c.b16 %v240, %v239
      %v248 = vpack.c.b16 %v242, %v241
      %v249 = vpack.c.b16 %v244, %v243
      %v250 = vpack.c.b16 %v246, %v245
      %v255 = vunpack.c.l.b16 %v227
      %v256 = vunpack.c.l.b16 %v228
      %v257 = vunpack.c.l.b16 %v229
      %v258 = vunpack.c.l.b16 %v230
      %v259 = vpack.c.b16 %v256, %v255
      %v260 = vpack.c.b16 %v258, %v257
      %vm263 = vcmask 261120
      %v265 = vsel %vm263, %v247, 0
      %v268 = vsel %vm263, %v248, 0
      %v271 = vsel %vm263, %v249, 0
      %v274 = vsel %vm263, %v250, 0
      %276 = vmatpush.bf16.msra.mxu0 0
      %277 = vmatpush.bf16.msra.mxu0 0
      %278 = vmatpush.bf16.msra.mxu0 0
      %279 = vmatpush.bf16.msra.mxu0 0
      %280 = vmatpush.bf16.msra.mxu0 0
      %281 = vmatpush.bf16.msra.mxu0 0
      %282 = vmatpush.bf16.msra.mxu0 %v260
      %283 = vmatpush.bf16.msra.mxu0 %v259
      %284 = vmatmul.bf16.gmra.mxu0 %v265
      %v285 = vpop.f32.mrf.mxu0
      %v286 = vadd.f32 0.0, %v285
      %v287 = vpop.f32.mrf.mxu0
      %v288 = vadd.f32 0.0, %v287
      %289 = vmatmul.bf16.gmra.mxu0 %v268
      %v290 = vpop.f32.mrf.mxu0
      %v291 = vadd.f32 0.0, %v290
      %v292 = vpop.f32.mrf.mxu0
      %v293 = vadd.f32 0.0, %v292
      %294 = vmatmul.bf16.gmra.mxu0 %v271
      %v295 = vpop.f32.mrf.mxu0
      %v296 = vadd.f32 0.0, %v295
      %v297 = vpop.f32.mrf.mxu0
      %v298 = vadd.f32 0.0, %v297
      %299 = vmatmul.bf16.gmra.mxu0 %v274
      %v300 = vpop.f32.mrf.mxu0
      %v301 = vadd.f32 0.0, %v300
      %v302 = vpop.f32.mrf.mxu0
      %v303 = vadd.f32 0.0, %v302
      %304 = vdwg.mxu0
      %v305 = vld [vmem:[%s3] sm:$0xf]
      %v306 = vld [vmem:[%s3 + $0x4] sm:$0xf]
      %v307 = vld [vmem:[%s3 + $0x8] sm:$0xf]
      %v308 = vld [vmem:[%s3 + $0xc] sm:$0xf]
      %v309 = vld [vmem:[%s3 + $0x10] sm:$0xf]
      %v310 = vld [vmem:[%s3 + $0x14] sm:$0xf]
      %v311 = vld [vmem:[%s3 + $0x18] sm:$0xf]
      %v312 = vld [vmem:[%s3 + $0x1c] sm:$0xf]
      %v313 = vld [vmem:[%s207] sm:$0xff]
      %v314 = vld [vmem:[%s207 + $0x8] sm:$0xff]
      %v315 = vld [vmem:[%s207 + $0x10] sm:$0xff]
      %v316 = vld [vmem:[%s207 + $0x18] sm:$0xff]
      %v317 = vld [vmem:[%s207 + $0x20] sm:$0xff]
      %v318 = vld [vmem:[%s207 + $0x28] sm:$0xff]
      %v319 = vld [vmem:[%s207 + $0x30] sm:$0xff]
      %v320 = vld [vmem:[%s207 + $0x38] sm:$0xff]
      %v321 = vld [vmem:[%s207 + $0x40] sm:$0xff]
      %v322 = vld [vmem:[%s207 + $0x48] sm:$0xff]
      %v323 = vld [vmem:[%s207 + $0x50] sm:$0xff]
      %v324 = vld [vmem:[%s207 + $0x58] sm:$0xff]
      %v333 = vunpack.c.l.b16 %v305
      %v334 = vunpack.c.l.b16 %v306
      %v335 = vunpack.c.l.b16 %v307
      %v336 = vunpack.c.l.b16 %v308
      %v337 = vunpack.c.l.b16 %v309
      %v338 = vunpack.c.l.b16 %v310
      %v339 = vunpack.c.l.b16 %v311
      %v340 = vunpack.c.l.b16 %v312
      %v341 = vpack.c.b16 %v334, %v333
      %v342 = vpack.c.b16 %v336, %v335
      %v343 = vpack.c.b16 %v338, %v337
      %v344 = vpack.c.b16 %v340, %v339
      %v357 = vunpack.c.l.b16 %v313
      %v358 = vunpack.c.h.b16 %v313
      %v359 = vunpack.c.l.b16 %v314
      %v360 = vunpack.c.h.b16 %v314
      %v361 = vunpack.c.l.b16 %v315
      %v362 = vunpack.c.h.b16 %v315
      %v363 = vunpack.c.l.b16 %v316
      %v364 = vunpack.c.h.b16 %v316
      %v365 = vunpack.c.l.b16 %v317
      %v366 = vunpack.c.h.b16 %v317
      %v367 = vunpack.c.l.b16 %v318
      %v368 = vunpack.c.h.b16 %v318
      %v369 = vunpack.c.l.b16 %v319
      %v370 = vunpack.c.h.b16 %v319
      %v371 = vunpack.c.l.b16 %v320
      %v372 = vunpack.c.h.b16 %v320
      %v373 = vunpack.c.l.b16 %v321
      %v374 = vunpack.c.h.b16 %v321
      %v375 = vunpack.c.l.b16 %v322
      %v376 = vunpack.c.h.b16 %v322
      %v377 = vunpack.c.l.b16 %v323
      %v378 = vunpack.c.h.b16 %v323
      %v379 = vunpack.c.l.b16 %v324
      %v380 = vunpack.c.h.b16 %v324
      %v381 = vpack.c.b16 %v363, %v357
      %v382 = vpack.c.b16 %v364, %v358
      %v383 = vpack.c.b16 %v365, %v359
      %v384 = vpack.c.b16 %v366, %v360
      %v385 = vpack.c.b16 %v367, %v361
      %v386 = vpack.c.b16 %v368, %v362
      %v387 = vpack.c.b16 %v375, %v369
      %v388 = vpack.c.b16 %v376, %v370
      %v389 = vpack.c.b16 %v377, %v371
      %v390 = vpack.c.b16 %v378, %v372
      %v391 = vpack.c.b16 %v379, %v373
      %v392 = vpack.c.b16 %v380, %v374
      %v406 = vsel %vm263, %v341, 0
      %v409 = vsel %vm263, %v342, 0
      %v412 = vsel %vm263, %v343, 0
      %v415 = vsel %vm263, %v344, 0
      %417 = vmatpush.bf16.msra.mxu0 0
      %418 = vmatpush.bf16.msra.mxu0 0
      %419 = vmatpush.bf16.msra.mxu0 0
      %420 = vmatpush.bf16.msra.mxu0 0
      %421 = vmatpush.bf16.msra.mxu0 0
      %422 = vmatpush.bf16.msra.mxu0 0
      %423 = vmatpush.bf16.msra.mxu0 %v387
      %424 = vmatpush.bf16.msra.mxu0 %v381
      %425 = vmatmul.bf16.gmra.mxu0 %v406
      %v426 = vpop.f32.mrf.mxu0
      %v427 = vadd.f32 %v286, %v426
      %v428 = vpop.f32.mrf.mxu0
      %v429 = vadd.f32 %v288, %v428
      %430 = vmatmul.bf16.gmra.mxu0 %v409
      %v431 = vpop.f32.mrf.mxu0
      %v432 = vadd.f32 %v291, %v431
      %v433 = vpop.f32.mrf.mxu0
      %v434 = vadd.f32 %v293, %v433
      %435 = vmatmul.bf16.gmra.mxu0 %v412
      %v436 = vpop.f32.mrf.mxu0
      %v437 = vadd.f32 %v296, %v436
      %v438 = vpop.f32.mrf.mxu0
      %v439 = vadd.f32 %v298, %v438
      %440 = vmatmul.bf16.gmra.mxu0 %v415
      %v441 = vpop.f32.mrf.mxu0
      %v442 = vadd.f32 %v301, %v441
      %v443 = vpop.f32.mrf.mxu0
      %v444 = vadd.f32 %v303, %v443
      %445 = vdwg.mxu0
      %446 = vmatpush.bf16.msra.mxu0 0
      %447 = vmatpush.bf16.msra.mxu0 0
      %448 = vmatpush.bf16.msra.mxu0 0
      %449 = vmatpush.bf16.msra.mxu0 0
      %450 = vmatpush.bf16.msra.mxu0 0
      %451 = vmatpush.bf16.msra.mxu0 0
      %452 = vmatpush.bf16.msra.mxu0 %v388
      %453 = vmatpush.bf16.msra.mxu0 %v382
      %454 = vmatmul.bf16.gmra.mxu0 %v406
      %v455 = vpop.f32.mrf.mxu0
      %v456 = vadd.f32 %v286, %v455
      %v457 = vpop.f32.mrf.mxu0
      %v458 = vadd.f32 %v288, %v457
      %459 = vmatmul.bf16.gmra.mxu0 %v409
      %v460 = vpop.f32.mrf.mxu0
      %v461 = vadd.f32 %v291, %v460
      %v462 = vpop.f32.mrf.mxu0
      %v463 = vadd.f32 %v293, %v462
      %464 = vmatmul.bf16.gmra.mxu0 %v412
      %v465 = vpop.f32.mrf.mxu0
      %v466 = vadd.f32 %v296, %v465
      %v467 = vpop.f32.mrf.mxu0
      %v468 = vadd.f32 %v298, %v467
      %469 = vmatmul.bf16.gmra.mxu0 %v415
      %v470 = vpop.f32.mrf.mxu0
      %v471 = vadd.f32 %v301, %v470
      %v472 = vpop.f32.mrf.mxu0
      %v473 = vadd.f32 %v303, %v472
      %474 = vdwg.mxu0
      %475 = vmatpush.bf16.msra.mxu0 0
      %476 = vmatpush.bf16.msra.mxu0 0
      %477 = vmatpush.bf16.msra.mxu0 0
      %478 = vmatpush.bf16.msra.mxu0 0
      %479 = vmatpush.bf16.msra.mxu0 0
      %480 = vmatpush.bf16.msra.mxu0 0
      %481 = vmatpush.bf16.msra.mxu0 %v389
      %482 = vmatpush.bf16.msra.mxu0 %v383
      %483 = vmatmul.bf16.gmra.mxu0 %v406
      %v484 = vpop.f32.mrf.mxu0
      %v485 = vadd.f32 %v286, %v484
      %v486 = vpop.f32.mrf.mxu0
      %v487 = vadd.f32 %v288, %v486
      %488 = vmatmul.bf16.gmra.mxu0 %v409
      %v489 = vpop.f32.mrf.mxu0
      %v490 = vadd.f32 %v291, %v489
      %v491 = vpop.f32.mrf.mxu0
      %v492 = vadd.f32 %v293, %v491
      %493 = vmatmul.bf16.gmra.mxu0 %v412
      %v494 = vpop.f32.mrf.mxu0
      %v495 = vadd.f32 %v296, %v494
      %v496 = vpop.f32.mrf.mxu0
      %v497 = vadd.f32 %v298, %v496
      %498 = vmatmul.bf16.gmra.mxu0 %v415
      %v499 = vpop.f32.mrf.mxu0
      %v500 = vadd.f32 %v301, %v499
      %v501 = vpop.f32.mrf.mxu0
      %v502 = vadd.f32 %v303, %v501
      %503 = vdwg.mxu0
      %504 = vmatpush.bf16.msra.mxu0 0
      %505 = vmatpush.bf16.msra.mxu0 0
      %506 = vmatpush.bf16.msra.mxu0 0
      %507 = vmatpush.bf16.msra.mxu0 0
      %508 = vmatpush.bf16.msra.mxu0 0
      %509 = vmatpush.bf16.msra.mxu0 0
      %510 = vmatpush.bf16.msra.mxu0 %v390
      %511 = vmatpush.bf16.msra.mxu0 %v384
      %512 = vmatmul.bf16.gmra.mxu0 %v406
      %v513 = vpop.f32.mrf.mxu0
      %v514 = vadd.f32 %v286, %v513
      %v515 = vpop.f32.mrf.mxu0
      %v516 = vadd.f32 %v288, %v515
      %517 = vmatmul.bf16.gmra.mxu0 %v409
      %v518 = vpop.f32.mrf.mxu0
      %v519 = vadd.f32 %v291, %v518
      %v520 = vpop.f32.mrf.mxu0
      %v521 = vadd.f32 %v293, %v520
      %522 = vmatmul.bf16.gmra.mxu0 %v412
      %v523 = vpop.f32.mrf.mxu0
      %v524 = vadd.f32 %v296, %v523
      %v525 = vpop.f32.mrf.mxu0
      %v526 = vadd.f32 %v298, %v525
      %527 = vmatmul.bf16.gmra.mxu0 %v415
      %v528 = vpop.f32.mrf.mxu0
      %v529 = vadd.f32 %v301, %v528
      %v530 = vpop.f32.mrf.mxu0
      %v531 = vadd.f32 %v303, %v530
      %532 = vdwg.mxu0
      %533 = vmatpush.bf16.msra.mxu0 0
      %534 = vmatpush.bf16.msra.mxu0 0
      %535 = vmatpush.bf16.msra.mxu0 0
      %536 = vmatpush.bf16.msra.mxu0 0
      %537 = vmatpush.bf16.msra.mxu0 0
      %538 = vmatpush.bf16.msra.mxu0 0
      %539 = vmatpush.bf16.msra.mxu0 %v391
      %540 = vmatpush.bf16.msra.mxu0 %v385
      %541 = vmatmul.bf16.gmra.mxu0 %v406
      %v542 = vpop.f32.mrf.mxu0
      %v543 = vadd.f32 %v286, %v542
      %v544 = vpop.f32.mrf.mxu0
      %v545 = vadd.f32 %v288, %v544
      %546 = vmatmul.bf16.gmra.mxu0 %v409
      %v547 = vpop.f32.mrf.mxu0
      %v548 = vadd.f32 %v291, %v547
      %v549 = vpop.f32.mrf.mxu0
      %v550 = vadd.f32 %v293, %v549
      %551 = vmatmul.bf16.gmra.mxu0 %v412
      %v552 = vpop.f32.mrf.mxu0
      %v553 = vadd.f32 %v296, %v552
      %v554 = vpop.f32.mrf.mxu0
      %v555 = vadd.f32 %v298, %v554
      %556 = vmatmul.bf16.gmra.mxu0 %v415
      %v557 = vpop.f32.mrf.mxu0
      %v558 = vadd.f32 %v301, %v557
      %v559 = vpop.f32.mrf.mxu0
      %v560 = vadd.f32 %v303, %v559
      %561 = vdwg.mxu0
      %562 = vmatpush.bf16.msra.mxu0 0
      %563 = vmatpush.bf16.msra.mxu0 0
      %564 = vmatpush.bf16.msra.mxu0 0
      %565 = vmatpush.bf16.msra.mxu0 0
      %566 = vmatpush.bf16.msra.mxu0 0
      %567 = vmatpush.bf16.msra.mxu0 0
      %568 = vmatpush.bf16.msra.mxu0 %v392
      %569 = vmatpush.bf16.msra.mxu0 %v386
      %570 = vmatmul.bf16.gmra.mxu0 %v406
      %v571 = vpop.f32.mrf.mxu0
      %v572 = vadd.f32 %v286, %v571
      %v573 = vpop.f32.mrf.mxu0
      %v574 = vadd.f32 %v288, %v573
      %575 = vmatmul.bf16.gmra.mxu0 %v409
      %v576 = vpop.f32.mrf.mxu0
      %v577 = vadd.f32 %v291, %v576
      %v578 = vpop.f32.mrf.mxu0
      %v579 = vadd.f32 %v293, %v578
      %580 = vmatmul.bf16.gmra.mxu0 %v412
      %v581 = vpop.f32.mrf.mxu0
      %v582 = vadd.f32 %v296, %v581
      %v583 = vpop.f32.mrf.mxu0
      %v584 = vadd.f32 %v298, %v583
      %585 = vmatmul.bf16.gmra.mxu0 %v415
      %v586 = vpop.f32.mrf.mxu0
      %v587 = vadd.f32 %v301, %v586
      %v588 = vpop.f32.mrf.mxu0
      %v589 = vadd.f32 %v303, %v588
      %590 = vdwg.mxu0
      %v591 = vadd.f32 %v427, %v456
      %v592 = vadd.f32 %v591, %v485
      %v593 = vadd.f32 %v592, %v514
      %v594 = vadd.f32 %v593, %v543
      %v595 = vadd.f32 %v594, %v572
      %596 = vadd.xlane.f32.xlu0 %v595
      %v597 = vpop.xlane.xlu0 %596
      %v598 = vadd.f32 %v429, %v458
      %v599 = vadd.f32 %v598, %v487
      %v600 = vadd.f32 %v599, %v516
      %v601 = vadd.f32 %v600, %v545
      %v602 = vadd.f32 %v601, %v574
      %603 = vadd.xlane.f32.xlu0 %v602
      %v604 = vpop.xlane.xlu0 %603
      %v605 = vadd.f32 %v432, %v461
      %v606 = vadd.f32 %v605, %v490
      %v607 = vadd.f32 %v606, %v519
      %v608 = vadd.f32 %v607, %v548
      %v609 = vadd.f32 %v608, %v577
      %610 = vadd.xlane.f32.xlu0 %v609
      %v611 = vpop.xlane.xlu0 %610
      %v612 = vadd.f32 %v434, %v463
      %v613 = vadd.f32 %v612, %v492
      %v614 = vadd.f32 %v613, %v521
      %v615 = vadd.f32 %v614, %v550
      %v616 = vadd.f32 %v615, %v579
      %617 = vadd.xlane.f32.xlu0 %v616
      %v618 = vpop.xlane.xlu0 %617
      %v619 = vadd.f32 %v437, %v466
      %v620 = vadd.f32 %v619, %v495
      %v621 = vadd.f32 %v620, %v524
      %v622 = vadd.f32 %v621, %v553
      %v623 = vadd.f32 %v622, %v582
      %624 = vadd.xlane.f32.xlu0 %v623
      %v625 = vpop.xlane.xlu0 %624
      %v626 = vadd.f32 %v439, %v468
      %v627 = vadd.f32 %v626, %v497
      %v628 = vadd.f32 %v627, %v526
      %v629 = vadd.f32 %v628, %v555
      %v630 = vadd.f32 %v629, %v584
      %631 = vadd.xlane.f32.xlu0 %v630
      %v632 = vpop.xlane.xlu0 %631
      %v633 = vadd.f32 %v442, %v471
      %v634 = vadd.f32 %v633, %v500
      %v635 = vadd.f32 %v634, %v529
      %v636 = vadd.f32 %v635, %v558
      %v637 = vadd.f32 %v636, %v587
      %638 = vadd.xlane.f32.xlu0 %v637
      %v639 = vpop.xlane.xlu0 %638
      %v640 = vadd.f32 %v444, %v473
      %v641 = vadd.f32 %v640, %v502
      %v642 = vadd.f32 %v641, %v531
      %v643 = vadd.f32 %v642, %v560
      %v644 = vadd.f32 %v643, %v589
      %645 = vadd.xlane.f32.xlu0 %v644
      %v646 = vpop.xlane.xlu0 %645
      %v647 = vmul.f32 %v597, 0.0013020834
      %v648 = vmul.f32 %v604, 0.0013020834
      %v649 = vmul.f32 %v611, 0.0013020834
      %v650 = vmul.f32 %v618, 0.0013020834
      %v651 = vmul.f32 %v625, 0.0013020834
      %v652 = vmul.f32 %v632, 0.0013020834
      %v653 = vmul.f32 %v639, 0.0013020834
      %v654 = vmul.f32 %v646, 0.0013020834
      %v655 = vsub.f32 %v427, %v647
      %v656 = vsub.f32 %v456, %v647
      %v657 = vsub.f32 %v485, %v647
      %v658 = vsub.f32 %v514, %v647
      %v659 = vsub.f32 %v543, %v647
      %v660 = vsub.f32 %v572, %v647
      %v661 = vsub.f32 %v429, %v648
      %v662 = vsub.f32 %v458, %v648
      %v663 = vsub.f32 %v487, %v648
      %v664 = vsub.f32 %v516, %v648
      %v665 = vsub.f32 %v545, %v648
      %v666 = vsub.f32 %v574, %v648
      %v667 = vsub.f32 %v432, %v649
      %v668 = vsub.f32 %v461, %v649
      %v669 = vsub.f32 %v490, %v649
      %v670 = vsub.f32 %v519, %v649
      %v671 = vsub.f32 %v548, %v649
      %v672 = vsub.f32 %v577, %v649
      %v673 = vsub.f32 %v434, %v650
      %v674 = vsub.f32 %v463, %v650
      %v675 = vsub.f32 %v492, %v650
      %v676 = vsub.f32 %v521, %v650
      %v677 = vsub.f32 %v550, %v650
      %v678 = vsub.f32 %v579, %v650
      %v679 = vsub.f32 %v437, %v651
      %v680 = vsub.f32 %v466, %v651
      %v681 = vsub.f32 %v495, %v651
      %v682 = vsub.f32 %v524, %v651
      %v683 = vsub.f32 %v553, %v651
      %v684 = vsub.f32 %v582, %v651
      %v685 = vsub.f32 %v439, %v652
      %v686 = vsub.f32 %v468, %v652
      %v687 = vsub.f32 %v497, %v652
      %v688 = vsub.f32 %v526, %v652
      %v689 = vsub.f32 %v555, %v652
      %v690 = vsub.f32 %v584, %v652
      %v691 = vsub.f32 %v442, %v653
      %v692 = vsub.f32 %v471, %v653
      %v693 = vsub.f32 %v500, %v653
      %v694 = vsub.f32 %v529, %v653
      %v695 = vsub.f32 %v558, %v653
      %v696 = vsub.f32 %v587, %v653
      %v697 = vsub.f32 %v444, %v654
      %v698 = vsub.f32 %v473, %v654
      %v699 = vsub.f32 %v502, %v654
      %v700 = vsub.f32 %v531, %v654
      %v701 = vsub.f32 %v560, %v654
      %v702 = vsub.f32 %v589, %v654
      %v703 = vmul.f32 %v655, %v655
      %v704 = vmul.f32 %v656, %v656
      %v705 = vmul.f32 %v657, %v657
      %v706 = vmul.f32 %v658, %v658
      %v707 = vmul.f32 %v659, %v659
      %v708 = vmul.f32 %v660, %v660
      %v709 = vmul.f32 %v661, %v661
      %v710 = vmul.f32 %v662, %v662
      %v711 = vmul.f32 %v663, %v663
      %v712 = vmul.f32 %v664, %v664
      %v713 = vmul.f32 %v665, %v665
      %v714 = vmul.f32 %v666, %v666
      %v715 = vmul.f32 %v667, %v667
      %v716 = vmul.f32 %v668, %v668
      %v717 = vmul.f32 %v669, %v669
      %v718 = vmul.f32 %v670, %v670
      %v719 = vmul.f32 %v671, %v671
      %v720 = vmul.f32 %v672, %v672
      %v721 = vmul.f32 %v673, %v673
      %v722 = vmul.f32 %v674, %v674
      %v723 = vmul.f32 %v675, %v675
      %v724 = vmul.f32 %v676, %v676
      %v725 = vmul.f32 %v677, %v677
      %v726 = vmul.f32 %v678, %v678
      %v727 = vmul.f32 %v679, %v679
      %v728 = vmul.f32 %v680, %v680
      %v729 = vmul.f32 %v681, %v681
      %v730 = vmul.f32 %v682, %v682
      %v731 = vmul.f32 %v683, %v683
      %v732 = vmul.f32 %v684, %v684
      %v733 = vmul.f32 %v685, %v685
      %v734 = vmul.f32 %v686, %v686
      %v735 = vmul.f32 %v687, %v687
      %v736 = vmul.f32 %v688, %v688
      %v737 = vmul.f32 %v689, %v689
      %v738 = vmul.f32 %v690, %v690
      %v739 = vmul.f32 %v691, %v691
      %v740 = vmul.f32 %v692, %v692
      %v741 = vmul.f32 %v693, %v693
      %v742 = vmul.f32 %v694, %v694
      %v743 = vmul.f32 %v695, %v695
      %v744 = vmul.f32 %v696, %v696
      %v745 = vmul.f32 %v697, %v697
      %v746 = vmul.f32 %v698, %v698
      %v747 = vmul.f32 %v699, %v699
      %v748 = vmul.f32 %v700, %v700
      %v749 = vmul.f32 %v701, %v701
      %v750 = vmul.f32 %v702, %v702
      %v751 = vadd.f32 %v703, %v704
      %v752 = vadd.f32 %v751, %v705
      %v753 = vadd.f32 %v752, %v706
      %v754 = vadd.f32 %v753, %v707
      %v755 = vadd.f32 %v754, %v708
      %756 = vadd.xlane.f32.xlu0 %v755
      %v757 = vpop.xlane.xlu0 %756
      %v758 = vadd.f32 %v709, %v710
      %v759 = vadd.f32 %v758, %v711
      %v760 = vadd.f32 %v759, %v712
      %v761 = vadd.f32 %v760, %v713
      %v762 = vadd.f32 %v761, %v714
      %763 = vadd.xlane.f32.xlu0 %v762
      %v764 = vpop.xlane.xlu0 %763
      %v765 = vadd.f32 %v715, %v716
      %v766 = vadd.f32 %v765, %v717
      %v767 = vadd.f32 %v766, %v718
      %v768 = vadd.f32 %v767, %v719
      %v769 = vadd.f32 %v768, %v720
      %770 = vadd.xlane.f32.xlu0 %v769
      %v771 = vpop.xlane.xlu0 %770
      %v772 = vadd.f32 %v721, %v722
      %v773 = vadd.f32 %v772, %v723
      %v774 = vadd.f32 %v773, %v724
      %v775 = vadd.f32 %v774, %v725
      %v776 = vadd.f32 %v775, %v726
      %777 = vadd.xlane.f32.xlu0 %v776
      %v778 = vpop.xlane.xlu0 %777
      %v779 = vadd.f32 %v727, %v728
      %v780 = vadd.f32 %v779, %v729
      %v781 = vadd.f32 %v780, %v730
      %v782 = vadd.f32 %v781, %v731
      %v783 = vadd.f32 %v782, %v732
      %784 = vadd.xlane.f32.xlu0 %v783
      %v785 = vpop.xlane.xlu0 %784
      %v786 = vadd.f32 %v733, %v734
      %v787 = vadd.f32 %v786, %v735
      %v788 = vadd.f32 %v787, %v736
      %v789 = vadd.f32 %v788, %v737
      %v790 = vadd.f32 %v789, %v738
      %791 = vadd.xlane.f32.xlu0 %v790
      %v792 = vpop.xlane.xlu0 %791
      %v793 = vadd.f32 %v739, %v740
      %v794 = vadd.f32 %v793, %v741
      %v795 = vadd.f32 %v794, %v742
      %v796 = vadd.f32 %v795, %v743
      %v797 = vadd.f32 %v796, %v744
      %798 = vadd.xlane.f32.xlu0 %v797
      %v799 = vpop.xlane.xlu0 %798
      %v800 = vadd.f32 %v745, %v746
      %v801 = vadd.f32 %v800, %v747
      %v802 = vadd.f32 %v801, %v748
      %v803 = vadd.f32 %v802, %v749
      %v804 = vadd.f32 %v803, %v750
      %805 = vadd.xlane.f32.xlu0 %v804
      %v806 = vpop.xlane.xlu0 %805
      %v807 = vmul.f32 %v757, 0.0013020834
      %v808 = vmul.f32 %v764, 0.0013020834
      %v809 = vmul.f32 %v771, 0.0013020834
      %v810 = vmul.f32 %v778, 0.0013020834
      %v811 = vmul.f32 %v785, 0.0013020834
      %v812 = vmul.f32 %v792, 0.0013020834
      %v813 = vmul.f32 %v799, 0.0013020834
      %v814 = vmul.f32 %v806, 0.0013020834
      %v815 = vadd.f32 %v807, 1e-05
      %v816 = vadd.f32 %v808, 1e-05
      %v817 = vadd.f32 %v809, 1e-05
      %v818 = vadd.f32 %v810, 1e-05
      %v819 = vadd.f32 %v811, 1e-05
      %v820 = vadd.f32 %v812, 1e-05
      %v821 = vadd.f32 %v813, 1e-05
      %v822 = vadd.f32 %v814, 1e-05
      %v823 = vrsqrt.pop %v815
      %v824 = vmul.f32 %v823, %v815
      %v825 = vmul.f32 %v824, %v823
      %v826 = vmul.f32 0.5, %v825
      %v827 = vsub.f32 1.5, %v826
      %v828 = vmul.f32 %v823, %v827
      %vm829 = vweird.f32 %v815
      %vm830 = vweird.f32 %v823
      %vm831 = vmor %vm829, %vm830
      %v832 = vsel %vm831, %v823, %v828
      %v833 = vrsqrt.pop %v816
      %v834 = vmul.f32 %v833, %v816
      %v835 = vmul.f32 %v834, %v833
      %v836 = vmul.f32 0.5, %v835
      %v837 = vsub.f32 1.5, %v836
      %v838 = vmul.f32 %v833, %v837
      %vm839 = vweird.f32 %v816
      %vm840 = vweird.f32 %v833
      %vm841 = vmor %vm839, %vm840
      %v842 = vsel %vm841, %v833, %v838
      %v843 = vrsqrt.pop %v817
      %v844 = vmul.f32 %v843, %v817
      %v845 = vmul.f32 %v844, %v843
      %v846 = vmul.f32 0.5, %v845
      %v847 = vsub.f32 1.5, %v846
      %v848 = vmul.f32 %v843, %v847
      %vm849 = vweird.f32 %v817
      %vm850 = vweird.f32 %v843
      %vm851 = vmor %vm849, %vm850
      %v852 = vsel %vm851, %v843, %v848
      %v853 = vrsqrt.pop %v818
      %v854 = vmul.f32 %v853, %v818
      %v855 = vmul.f32 %v854, %v853
      %v856 = vmul.f32 0.5, %v855
      %v857 = vsub.f32 1.5, %v856
      %v858 = vmul.f32 %v853, %v857
      %vm859 = vweird.f32 %v818
      %vm860 = vweird.f32 %v853
      %vm861 = vmor %vm859, %vm860
      %v862 = vsel %vm861, %v853, %v858
      %v863 = vrsqrt.pop %v819
      %v864 = vmul.f32 %v863, %v819
      %v865 = vmul.f32 %v864, %v863
      %v866 = vmul.f32 0.5, %v865
      %v867 = vsub.f32 1.5, %v866
      %v868 = vmul.f32 %v863, %v867
      %vm869 = vweird.f32 %v819
      %vm870 = vweird.f32 %v863
      %vm871 = vmor %vm869, %vm870
      %v872 = vsel %vm871, %v863, %v868
      %v873 = vrsqrt.pop %v820
      %v874 = vmul.f32 %v873, %v820
      %v875 = vmul.f32 %v874, %v873
      %v876 = vmul.f32 0.5, %v875
      %v877 = vsub.f32 1.5, %v876
      %v878 = vmul.f32 %v873, %v877
      %vm879 = vweird.f32 %v820
      %vm880 = vweird.f32 %v873
      %vm881 = vmor %vm879, %vm880
      %v882 = vsel %vm881, %v873, %v878
      %v883 = vrsqrt.pop %v821
      %v884 = vmul.f32 %v883, %v821
      %v885 = vmul.f32 %v884, %v883
      %v886 = vmul.f32 0.5, %v885
      %v887 = vsub.f32 1.5, %v886
      %v888 = vmul.f32 %v883, %v887
      %vm889 = vweird.f32 %v821
      %vm890 = vweird.f32 %v883
      %vm891 = vmor %vm889, %vm890
      %v892 = vsel %vm891, %v883, %v888
      %v893 = vrsqrt.pop %v822
      %v894 = vmul.f32 %v893, %v822
      %v895 = vmul.f32 %v894, %v893
      %v896 = vmul.f32 0.5, %v895
      %v897 = vsub.f32 1.5, %v896
      %v898 = vmul.f32 %v893, %v897
      %vm899 = vweird.f32 %v822
      %vm900 = vweird.f32 %v893
      %vm901 = vmor %vm899, %vm900
      %v902 = vsel %vm901, %v893, %v898
      %v903 = vmul.f32 %v655, %v832
      %v904 = vmul.f32 %v656, %v832
      %v905 = vmul.f32 %v657, %v832
      %v906 = vmul.f32 %v658, %v832
      %v907 = vmul.f32 %v659, %v832
      %v908 = vmul.f32 %v660, %v832
      %v909 = vmul.f32 %v661, %v842
      %v910 = vmul.f32 %v662, %v842
      %v911 = vmul.f32 %v663, %v842
      %v912 = vmul.f32 %v664, %v842
      %v913 = vmul.f32 %v665, %v842
      %v914 = vmul.f32 %v666, %v842
      %v915 = vmul.f32 %v667, %v852
      %v916 = vmul.f32 %v668, %v852
      %v917 = vmul.f32 %v669, %v852
      %v918 = vmul.f32 %v670, %v852
      %v919 = vmul.f32 %v671, %v852
      %v920 = vmul.f32 %v672, %v852
      %v921 = vmul.f32 %v673, %v862
      %v922 = vmul.f32 %v674, %v862
      %v923 = vmul.f32 %v675, %v862
      %v924 = vmul.f32 %v676, %v862
      %v925 = vmul.f32 %v677, %v862
      %v926 = vmul.f32 %v678, %v862
      %v927 = vmul.f32 %v679, %v872
      %v928 = vmul.f32 %v680, %v872
      %v929 = vmul.f32 %v681, %v872
      %v930 = vmul.f32 %v682, %v872
      %v931 = vmul.f32 %v683, %v872
      %v932 = vmul.f32 %v684, %v872
      %v933 = vmul.f32 %v685, %v882
      %v934 = vmul.f32 %v686, %v882
      %v935 = vmul.f32 %v687, %v882
      %v936 = vmul.f32 %v688, %v882
      %v937 = vmul.f32 %v689, %v882
      %v938 = vmul.f32 %v690, %v882
      %v939 = vmul.f32 %v691, %v892
      %v940 = vmul.f32 %v692, %v892
      %v941 = vmul.f32 %v693, %v892
      %v942 = vmul.f32 %v694, %v892
      %v943 = vmul.f32 %v695, %v892
      %v944 = vmul.f32 %v696, %v892
      %v945 = vmul.f32 %v697, %v902
      %v946 = vmul.f32 %v698, %v902
      %v947 = vmul.f32 %v699, %v902
      %v948 = vmul.f32 %v700, %v902
      %v949 = vmul.f32 %v701, %v902
      %v950 = vmul.f32 %v702, %v902
      %vm951 = vcmp.ge.f32.partialorder %v903, 0.0
      %vm952 = vcmp.ge.f32.partialorder %v904, 0.0
      %vm953 = vcmp.ge.f32.partialorder %v905, 0.0
      %vm954 = vcmp.ge.f32.partialorder %v906, 0.0
      %vm955 = vcmp.ge.f32.partialorder %v907, 0.0
      %vm956 = vcmp.ge.f32.partialorder %v908, 0.0
      %vm957 = vcmp.ge.f32.partialorder %v909, 0.0
      %vm958 = vcmp.ge.f32.partialorder %v910, 0.0
      %vm959 = vcmp.ge.f32.partialorder %v911, 0.0
      %vm960 = vcmp.ge.f32.partialorder %v912, 0.0
      %vm961 = vcmp.ge.f32.partialorder %v913, 0.0
      %vm962 = vcmp.ge.f32.partialorder %v914, 0.0
      %vm963 = vcmp.ge.f32.partialorder %v915, 0.0
      %vm964 = vcmp.ge.f32.partialorder %v916, 0.0
      %vm965 = vcmp.ge.f32.partialorder %v917, 0.0
      %vm966 = vcmp.ge.f32.partialorder %v918, 0.0
      %vm967 = vcmp.ge.f32.partialorder %v919, 0.0
      %vm968 = vcmp.ge.f32.partialorder %v920, 0.0
      %vm969 = vcmp.ge.f32.partialorder %v921, 0.0
      %vm970 = vcmp.ge.f32.partialorder %v922, 0.0
      %vm971 = vcmp.ge.f32.partialorder %v923, 0.0
      %vm972 = vcmp.ge.f32.partialorder %v924, 0.0
      %vm973 = vcmp.ge.f32.partialorder %v925, 0.0
      %vm974 = vcmp.ge.f32.partialorder %v926, 0.0
      %vm975 = vcmp.ge.f32.partialorder %v927, 0.0
      %vm976 = vcmp.ge.f32.partialorder %v928, 0.0
      %vm977 = vcmp.ge.f32.partialorder %v929, 0.0
      %vm978 = vcmp.ge.f32.partialorder %v930, 0.0
      %vm979 = vcmp.ge.f32.partialorder %v931, 0.0
      %vm980 = vcmp.ge.f32.partialorder %v932, 0.0
      %vm981 = vcmp.ge.f32.partialorder %v933, 0.0
      %vm982 = vcmp.ge.f32.partialorder %v934, 0.0
      %vm983 = vcmp.ge.f32.partialorder %v935, 0.0
      %vm984 = vcmp.ge.f32.partialorder %v936, 0.0
      %vm985 = vcmp.ge.f32.partialorder %v937, 0.0
      %vm986 = vcmp.ge.f32.partialorder %v938, 0.0
      %vm987 = vcmp.ge.f32.partialorder %v939, 0.0
      %vm988 = vcmp.ge.f32.partialorder %v940, 0.0
      %vm989 = vcmp.ge.f32.partialorder %v941, 0.0
      %vm990 = vcmp.ge.f32.partialorder %v942, 0.0
      %vm991 = vcmp.ge.f32.partialorder %v943, 0.0
      %vm992 = vcmp.ge.f32.partialorder %v944, 0.0
      %vm993 = vcmp.ge.f32.partialorder %v945, 0.0
      %vm994 = vcmp.ge.f32.partialorder %v946, 0.0
      %vm995 = vcmp.ge.f32.partialorder %v947, 0.0
      %vm996 = vcmp.ge.f32.partialorder %v948, 0.0
      %vm997 = vcmp.ge.f32.partialorder %v949, 0.0
      %vm998 = vcmp.ge.f32.partialorder %v950, 0.0
      %v999 = vmul.f32 %v903, 0.2
      %v1000 = vmul.f32 %v904, 0.2
      %v1001 = vmul.f32 %v905, 0.2
      %v1002 = vmul.f32 %v906, 0.2
      %v1003 = vmul.f32 %v907, 0.2
      %v1004 = vmul.f32 %v908, 0.2
      %v1005 = vmul.f32 %v909, 0.2
      %v1006 = vmul.f32 %v910, 0.2
      %v1007 = vmul.f32 %v911, 0.2
      %v1008 = vmul.f32 %v912, 0.2
      %v1009 = vmul.f32 %v913, 0.2
      %v1010 = vmul.f32 %v914, 0.2
      %v1011 = vmul.f32 %v915, 0.2
      %v1012 = vmul.f32 %v916, 0.2
      %v1013 = vmul.f32 %v917, 0.2
      %v1014 = vmul.f32 %v918, 0.2
      %v1015 = vmul.f32 %v919, 0.2
      %v1016 = vmul.f32 %v920, 0.2
      %v1017 = vmul.f32 %v921, 0.2
      %v1018 = vmul.f32 %v922, 0.2
      %v1019 = vmul.f32 %v923, 0.2
      %v1020 = vmul.f32 %v924, 0.2
      %v1021 = vmul.f32 %v925, 0.2
      %v1022 = vmul.f32 %v926, 0.2
      %v1023 = vmul.f32 %v927, 0.2
      %v1024 = vmul.f32 %v928, 0.2
      %v1025 = vmul.f32 %v929, 0.2
      %v1026 = vmul.f32 %v930, 0.2
      %v1027 = vmul.f32 %v931, 0.2
      %v1028 = vmul.f32 %v932, 0.2
      %v1029 = vmul.f32 %v933, 0.2
      %v1030 = vmul.f32 %v934, 0.2
      %v1031 = vmul.f32 %v935, 0.2
      %v1032 = vmul.f32 %v936, 0.2
      %v1033 = vmul.f32 %v937, 0.2
      %v1034 = vmul.f32 %v938, 0.2
      %v1035 = vmul.f32 %v939, 0.2
      %v1036 = vmul.f32 %v940, 0.2
      %v1037 = vmul.f32 %v941, 0.2
      %v1038 = vmul.f32 %v942, 0.2
      %v1039 = vmul.f32 %v943, 0.2
      %v1040 = vmul.f32 %v944, 0.2
      %v1041 = vmul.f32 %v945, 0.2
      %v1042 = vmul.f32 %v946, 0.2
      %v1043 = vmul.f32 %v947, 0.2
      %v1044 = vmul.f32 %v948, 0.2
      %v1045 = vmul.f32 %v949, 0.2
      %v1046 = vmul.f32 %v950, 0.2
      %v1047 = vsel %vm951, %v903, %v999
      %v1048 = vsel %vm952, %v904, %v1000
      %v1049 = vsel %vm953, %v905, %v1001
      %v1050 = vsel %vm954, %v906, %v1002
      %v1051 = vsel %vm955, %v907, %v1003
      %v1052 = vsel %vm956, %v908, %v1004
      %v1053 = vsel %vm957, %v909, %v1005
      %v1054 = vsel %vm958, %v910, %v1006
      %v1055 = vsel %vm959, %v911, %v1007
      %v1056 = vsel %vm960, %v912, %v1008
      %v1057 = vsel %vm961, %v913, %v1009
      %v1058 = vsel %vm962, %v914, %v1010
      %v1059 = vsel %vm963, %v915, %v1011
      %v1060 = vsel %vm964, %v916, %v1012
      %v1061 = vsel %vm965, %v917, %v1013
      %v1062 = vsel %vm966, %v918, %v1014
      %v1063 = vsel %vm967, %v919, %v1015
      %v1064 = vsel %vm968, %v920, %v1016
      %v1065 = vsel %vm969, %v921, %v1017
      %v1066 = vsel %vm970, %v922, %v1018
      %v1067 = vsel %vm971, %v923, %v1019
      %v1068 = vsel %vm972, %v924, %v1020
      %v1069 = vsel %vm973, %v925, %v1021
      %v1070 = vsel %vm974, %v926, %v1022
      %v1071 = vsel %vm975, %v927, %v1023
      %v1072 = vsel %vm976, %v928, %v1024
      %v1073 = vsel %vm977, %v929, %v1025
      %v1074 = vsel %vm978, %v930, %v1026
      %v1075 = vsel %vm979, %v931, %v1027
      %v1076 = vsel %vm980, %v932, %v1028
      %v1077 = vsel %vm981, %v933, %v1029
      %v1078 = vsel %vm982, %v934, %v1030
      %v1079 = vsel %vm983, %v935, %v1031
      %v1080 = vsel %vm984, %v936, %v1032
      %v1081 = vsel %vm985, %v937, %v1033
      %v1082 = vsel %vm986, %v938, %v1034
      %v1083 = vsel %vm987, %v939, %v1035
      %v1084 = vsel %vm988, %v940, %v1036
      %v1085 = vsel %vm989, %v941, %v1037
      %v1086 = vsel %vm990, %v942, %v1038
      %v1087 = vsel %vm991, %v943, %v1039
      %v1088 = vsel %vm992, %v944, %v1040
      %v1089 = vsel %vm993, %v945, %v1041
      %v1090 = vsel %vm994, %v946, %v1042
      %v1091 = vsel %vm995, %v947, %v1043
      %v1092 = vsel %vm996, %v948, %v1044
      %v1093 = vsel %vm997, %v949, %v1045
      %v1094 = vsel %vm998, %v950, %v1046
      %v1095 = vmax.f32 %v1047, %v1048
      %v1096 = vmax.f32 %v1053, %v1054
      %v1097 = vmax.f32 %v1059, %v1060
      %v1098 = vmax.f32 %v1065, %v1066
      %v1099 = vmax.f32 %v1071, %v1072
      %v1100 = vmax.f32 %v1077, %v1078
      %v1101 = vmax.f32 %v1083, %v1084
      %v1102 = vmax.f32 %v1089, %v1090
      %v1103 = vmax.f32 %v1095, %v1049
      %v1104 = vmax.f32 %v1096, %v1055
      %v1105 = vmax.f32 %v1097, %v1061
      %v1106 = vmax.f32 %v1098, %v1067
      %v1107 = vmax.f32 %v1099, %v1073
      %v1108 = vmax.f32 %v1100, %v1079
      %v1109 = vmax.f32 %v1101, %v1085
      %v1110 = vmax.f32 %v1102, %v1091
      %v1111 = vmax.f32 %v1103, %v1050
      %v1112 = vmax.f32 %v1104, %v1056
      %v1113 = vmax.f32 %v1105, %v1062
      %v1114 = vmax.f32 %v1106, %v1068
      %v1115 = vmax.f32 %v1107, %v1074
      %v1116 = vmax.f32 %v1108, %v1080
      %v1117 = vmax.f32 %v1109, %v1086
      %v1118 = vmax.f32 %v1110, %v1092
      %v1119 = vmax.f32 %v1111, %v1051
      %v1120 = vmax.f32 %v1112, %v1057
      %v1121 = vmax.f32 %v1113, %v1063
      %v1122 = vmax.f32 %v1114, %v1069
      %v1123 = vmax.f32 %v1115, %v1075
      %v1124 = vmax.f32 %v1116, %v1081
      %v1125 = vmax.f32 %v1117, %v1087
      %v1126 = vmax.f32 %v1118, %v1093
      %v1127 = vmax.f32 %v1119, %v1052
      %v1128 = vmax.f32 %v1120, %v1058
      %v1129 = vmax.f32 %v1121, %v1064
      %v1130 = vmax.f32 %v1122, %v1070
      %v1131 = vmax.f32 %v1123, %v1076
      %v1132 = vmax.f32 %v1124, %v1082
      %v1133 = vmax.f32 %v1125, %v1088
      %v1134 = vmax.f32 %v1126, %v1094
      %v1135 = vpack.c.bf16 %v1127, %v1127
      %v1136 = vpack.c.bf16 %v1128, %v1128
      %v1137 = vpack.c.bf16 %v1129, %v1129
      %v1138 = vpack.c.bf16 %v1130, %v1130
      %v1139 = vpack.c.bf16 %v1131, %v1131
      %v1140 = vpack.c.bf16 %v1132, %v1132
      %v1141 = vpack.c.bf16 %v1133, %v1133
      %v1142 = vpack.c.bf16 %v1134, %v1134
      %1143 = vst [vmem:[%s217] sm:$0xf] %v1135
      %1144 = vst [vmem:[%s217 + $0x4] sm:$0xf] %v1136
      %1145 = vst [vmem:[%s217 + $0x8] sm:$0xf] %v1137
      %1146 = vst [vmem:[%s217 + $0xc] sm:$0xf] %v1138
      %1147 = vst [vmem:[%s217 + $0x10] sm:$0xf] %v1139
      %1148 = vst [vmem:[%s217 + $0x14] sm:$0xf] %v1140
      %1149 = vst [vmem:[%s217 + $0x18] sm:$0xf] %v1141
      %1150 = vst [vmem:[%s217 + $0x1c] sm:$0xf] %v1142
      %p1151 = scmp.lt.s32.totalorder %s15, 1
      %s1152 = scalar_select %p1151, %s15, 1
      %s1153 = smul.addr %s1152, 8
      %s1154 = smul.addr %s1153, 4
      %s1155 = scalar_lea.vmem %s4, %s1154
      // Predicated region
      $region37: #{gge_forward.8} parent=35 // pred_check
        %p1156 = pneg %p127
      $region38: #{gge_forward.8} parent=35 // pred_check_branch
        %1158 = sbr.rel (%p1156) target = $region40
      $region39: #{gge_forward.8} parent=35 // pred_region
        _
      $region40: #{gge_forward.8} parent=35 // pred_fallthru
        _
    $region36: #{gge_forward.8} parent=5 // pred_fallthru
      _
    %p1159 = scmp.le.s32.totalorder 2, %s10
    // Predicated region
    $region41: #{gge_forward.8} parent=5 // pred_check
      %p1160 = pneg %p1159
    $region42: #{gge_forward.8} parent=5 // pred_check_branch
      %1162 = sbr.rel (%p1160) target = $region44
    $region43: #{gge_forward.8} parent=5 // pred_region
      %s1163 = ssub.s32 %s10, 2
      // Predicated region
      $region45: #{gge_forward.8} parent=43 // pred_check
        %p1164 = pneg %p133
      $region46: #{gge_forward.8} parent=43 // pred_check_branch
        %1166 = sbr.rel (%p1164) target = $region48
      $region47: #{gge_forward.8} parent=43 // pred_region
        %p1167 = scmp.lt.s32.totalorder %s16, 1
        %s1168 = scalar_select %p1167, %s16, 1
        %s1169 = smul.addr %s1168, 8
        %s1170 = smul.addr %s1169, 4
        %s1171 = scalar_lea.vmem %s4, %s1170
      $region48: #{gge_forward.8} parent=43 // pred_fallthru
        _
    $region44: #{gge_forward.8} parent=5 // pred_fallthru
      _
  $region6: #{gge_forward.8} parent=0 // loop_footer
    %s14 = sadd.s32 1, %s10
  $region7: #{gge_forward.8} parent=0 // loop_footer_branch
    %9 = sbr.rel target = $region3
  $region8: #{gge_forward.8} parent=0 // loop_exit
    _

// kernel: gge_forward.9
$region0: #{gge_forward.9}
  #allocation0 [shape = 'u32[]', space=smem, size = 0x4, offset = 0x4, fixed_abs, tag = 'smem constant byte address 0x4 - core index']
  #allocation1 [shape = 'u32[72,128]{1,0:T(1,128)}', space=vmem, size = 0x9000, scoped, tag = 'internal scratch']
  %s0 = inlined_call_operand.vmem [shape: bf16[2,32,128], index: 0, kind: input, shape index: {}]
  %s1 = inlined_call_operand.vmem [shape: bf16[2,32,128], index: 1, kind: input, shape index: {}]
  %s2 = inlined_call_operand.vmem [shape: bf16[2,64,128], index: 2, kind: input, shape index: {}]
  %s3 = inlined_call_operand.vmem [shape: bf16[32,32], index: 3, kind: input, shape index: {}]
  %s4 = inlined_call_operand.vmem [shape: bf16[32,32], index: 4, kind: input, shape index: {}]
  %s5 = inlined_call_operand.vmem [shape: bf16[32,64], index: 5, kind: input, shape index: {}]
  %s6 = inlined_call_operand.vmem [shape: bf16[2,32,128], index: 6, kind: output, shape index: {}]
  %s7 = sld [smem:[#allocation0]]
  $region57: #{gge_forward.9} parent=0
    _
  %s9 = ssub.s32 1, %s7
  %s10 = scalar_select 0, %s9, %s7
  loop: start=0, step=1, limit=4
  $region2: #{gge_forward.9} parent=0 // loop_pre_header
    _
  $region3: #{gge_forward.9} parent=0 // loop_header
    %s12 = sphi 0, %s16
    %p13 = scmp.ge.s32.totalorder %s12, 4
    %s22 = sphi 0, %s24
    %s25 = sphi 0, %s22
    %s26 = sphi 0, %s25
    %s42 = sphi 0, %s26
    %s48 = sphi 0, %s50
    %s51 = sphi 0, %s48
    %s52 = sphi 0, %s51
    %s68 = sphi 0, %s52
    %s74 = sphi 0, %s76
    %s77 = sphi 0, %s74
    %s78 = sphi 0, %s77
    %s94 = sphi 0, %s78
    %s98 = sphi 0, %s98
    %s100 = sphi 0, %s98
    %s101 = sphi 0, %s100
    %s115 = sphi 0, %s101
    %s119 = sphi 0, %s119
    %s121 = sphi 0, %s119
    %s122 = sphi 0, %s121
    %s136 = sphi 0, %s122
    %s140 = sphi 0, %s140
    %s142 = sphi 0, %s140
    %s143 = sphi 0, %s142
    %s157 = sphi 0, %s143
    %s163 = sphi 0, %s165
    %s166 = sphi 0, %s163
    %s167 = sphi 0, %s166
    %s183 = sphi 0, %s167
  $region4: #{gge_forward.9} parent=0 // loop_header_branch
    %15 = sbr.rel (%p13) target = $region8
  $region5: #{gge_forward.9} parent=0 // loop_body
    %s17 = ssub.s32 %s12, 1
    %s18 = ssub.s32 %s12, 2
    %s19 = sadd.s32 %s12, 1
    %s20 = ssub.s32 %s12, %s19
    %p21 = scmp.eq.s32.totalorder %s20, 0
    %s23 = sadd.s32 %s22, 1
    %s24 = scalar_select %p21, %s22, %s23
    %p27 = pneg %p21
    %p28 = scmp.eq.s32.totalorder %s12, 1
    %p29 = por %p27, %p28
    %p30 = scmp.ne.s32.totalorder %s22, %s25
    %p31 = scmp.eq.s32.totalorder %s12, 0
    %p32 = por %p30, %p31
    %p33 = scmp.ne.s32.totalorder %s22, %s25
    %p34 = scmp.eq.s32.totalorder %s17, 1
    %p35 = por %p33, %p34
    %p36 = scmp.ne.s32.totalorder %s25, %s26
    %p37 = scmp.eq.s32.totalorder %s17, 0
    %p38 = por %p36, %p37
    %p39 = scmp.ne.s32.totalorder %s25, %s26
    %p40 = scmp.eq.s32.totalorder %s18, 1
    %p41 = por %p39, %p40
    %p43 = scmp.ne.s32.totalorder %s26, %s42
    %p44 = scmp.eq.s32.totalorder %s18, 0
    %p45 = por %p43, %p44
    %s46 = ssub.s32 %s12, %s19
    %p47 = scmp.eq.s32.totalorder %s46, 0
    %s49 = sadd.s32 %s48, 1
    %s50 = scalar_select %p47, %s48, %s49
    %p53 = pneg %p47
    %p54 = scmp.eq.s32.totalorder %s12, 1
    %p55 = por %p53, %p54
    %p56 = scmp.ne.s32.totalorder %s48, %s51
    %p57 = scmp.eq.s32.totalorder %s12, 0
    %p58 = por %p56, %p57
    %p59 = scmp.ne.s32.totalorder %s48, %s51
    %p60 = scmp.eq.s32.totalorder %s17, 1
    %p61 = por %p59, %p60
    %p62 = scmp.ne.s32.totalorder %s51, %s52
    %p63 = scmp.eq.s32.totalorder %s17, 0
    %p64 = por %p62, %p63
    %p65 = scmp.ne.s32.totalorder %s51, %s52
    %p66 = scmp.eq.s32.totalorder %s18, 1
    %p67 = por %p65, %p66
    %p69 = scmp.ne.s32.totalorder %s52, %s68
    %p70 = scmp.eq.s32.totalorder %s18, 0
    %p71 = por %p69, %p70
    %s72 = ssub.s32 %s12, %s19
    %p73 = scmp.eq.s32.totalorder %s72, 0
    %s75 = sadd.s32 %s74, 1
    %s76 = scalar_select %p73, %s74, %s75
    %p79 = pneg %p73
    %p80 = scmp.eq.s32.totalorder %s12, 1
    %p81 = por %p79, %p80
    %p82 = scmp.ne.s32.totalorder %s74, %s77
    %p83 = scmp.eq.s32.totalorder %s12, 0
    %p84 = por %p82, %p83
    %p85 = scmp.ne.s32.totalorder %s74, %s77
    %p86 = scmp.eq.s32.totalorder %s17, 1
    %p87 = por %p85, %p86
    %p88 = scmp.ne.s32.totalorder %s77, %s78
    %p89 = scmp.eq.s32.totalorder %s17, 0
    %p90 = por %p88, %p89
    %p91 = scmp.ne.s32.totalorder %s77, %s78
    %p92 = scmp.eq.s32.totalorder %s18, 1
    %p93 = por %p91, %p92
    %p95 = scmp.ne.s32.totalorder %s78, %s94
    %p96 = scmp.eq.s32.totalorder %s18, 0
    %p97 = por %p95, %p96
    %s99 = sadd.s32 %s98, 1
    %p102 = scmp.eq.s32.totalorder %s12, 1
    %p103 = scmp.ne.s32.totalorder %s98, %s100
    %p104 = scmp.eq.s32.totalorder %s12, 0
    %p105 = por %p103, %p104
    %p106 = scmp.ne.s32.totalorder %s98, %s100
    %p107 = scmp.eq.s32.totalorder %s17, 1
    %p108 = por %p106, %p107
    %p109 = scmp.ne.s32.totalorder %s100, %s101
    %p110 = scmp.eq.s32.totalorder %s17, 0
    %p111 = por %p109, %p110
    %p112 = scmp.ne.s32.totalorder %s100, %s101
    %p113 = scmp.eq.s32.totalorder %s18, 1
    %p114 = por %p112, %p113
    %p116 = scmp.ne.s32.totalorder %s101, %s115
    %p117 = scmp.eq.s32.totalorder %s18, 0
    %p118 = por %p116, %p117
    %s120 = sadd.s32 %s119, 1
    %p123 = scmp.eq.s32.totalorder %s12, 1
    %p124 = scmp.ne.s32.totalorder %s119, %s121
    %p125 = scmp.eq.s32.totalorder %s12, 0
    %p126 = por %p124, %p125
    %p127 = scmp.ne.s32.totalorder %s119, %s121
    %p128 = scmp.eq.s32.totalorder %s17, 1
    %p129 = por %p127, %p128
    %p130 = scmp.ne.s32.totalorder %s121, %s122
    %p131 = scmp.eq.s32.totalorder %s17, 0
    %p132 = por %p130, %p131
    %p133 = scmp.ne.s32.totalorder %s121, %s122
    %p134 = scmp.eq.s32.totalorder %s18, 1
    %p135 = por %p133, %p134
    %p137 = scmp.ne.s32.totalorder %s122, %s136
    %p138 = scmp.eq.s32.totalorder %s18, 0
    %p139 = por %p137, %p138
    %s141 = sadd.s32 %s140, 1
    %p144 = scmp.eq.s32.totalorder %s12, 1
    %p145 = scmp.ne.s32.totalorder %s140, %s142
    %p146 = scmp.eq.s32.totalorder %s12, 0
    %p147 = por %p145, %p146
    %p148 = scmp.ne.s32.totalorder %s140, %s142
    %p149 = scmp.eq.s32.totalorder %s17, 1
    %p150 = por %p148, %p149
    %p151 = scmp.ne.s32.totalorder %s142, %s143
    %p152 = scmp.eq.s32.totalorder %s17, 0
    %p153 = por %p151, %p152
    %p154 = scmp.ne.s32.totalorder %s142, %s143
    %p155 = scmp.eq.s32.totalorder %s18, 1
    %p156 = por %p154, %p155
    %p158 = scmp.ne.s32.totalorder %s143, %s157
    %p159 = scmp.eq.s32.totalorder %s18, 0
    %p160 = por %p158, %p159
    %s161 = ssub.s32 %s12, %s19
    %p162 = scmp.eq.s32.totalorder %s161, 0
    %s164 = sadd.s32 %s163, 1
    %s165 = scalar_select %p162, %s163, %s164
    %p168 = pneg %p162
    %p169 = scmp.eq.s32.totalorder %s12, 1
    %p170 = por %p168, %p169
    %p171 = scmp.ne.s32.totalorder %s163, %s166
    %p172 = scmp.eq.s32.totalorder %s12, 0
    %p173 = por %p171, %p172
    %p174 = scmp.ne.s32.totalorder %s163, %s166
    %p175 = scmp.eq.s32.totalorder %s17, 1
    %p176 = por %p174, %p175
    %p177 = scmp.ne.s32.totalorder %s166, %s167
    %p178 = scmp.eq.s32.totalorder %s17, 0
    %p179 = por %p177, %p178
    %p180 = scmp.ne.s32.totalorder %s166, %s167
    %p181 = scmp.eq.s32.totalorder %s18, 1
    %p182 = por %p180, %p181
    %p184 = scmp.ne.s32.totalorder %s167, %s183
    %p185 = scmp.eq.s32.totalorder %s18, 0
    %p186 = por %p184, %p185
    %p187 = scmp.le.s32.totalorder 1, %s12
    %p188 = scmp.lt.s32.totalorder %s12, 3
    %p189 = pnand %p187, %p188
    %p190 = pneg %p189
    // Predicated region
    $region9: #{gge_forward.9} parent=5 // pred_check
      _
    $region10: #{gge_forward.9} parent=5 // pred_check_branch
      %192 = sbr.rel (%p189) target = $region12
    $region11: #{gge_forward.9} parent=5 // pred_region
      %s193 = ssub.s32 %s12, 1
      // Predicated region
      $region13: #{gge_forward.9} parent=11 // pred_check
        %p194 = pneg %p111
      $region14: #{gge_forward.9} parent=11 // pred_check_branch
        %196 = sbr.rel (%p194) target = $region16
      $region15: #{gge_forward.9} parent=11 // pred_region
        _
      $region16: #{gge_forward.9} parent=11 // pred_fallthru
        _
      // Predicated region
      $region17: #{gge_forward.9} parent=11 // pred_check
        %p197 = pneg %p132
      $region18: #{gge_forward.9} parent=11 // pred_check_branch
        %199 = sbr.rel (%p197) target = $region20
      $region19: #{gge_forward.9} parent=11 // pred_region
        _
      $region20: #{gge_forward.9} parent=11 // pred_fallthru
        _
      // Predicated region
      $region21: #{gge_forward.9} parent=11 // pred_check
        %p200 = pneg %p153
      $region22: #{gge_forward.9} parent=11 // pred_check_branch
        %202 = sbr.rel (%p200) target = $region24
      $region23: #{gge_forward.9} parent=11 // pred_region
        _
      $region24: #{gge_forward.9} parent=11 // pred_fallthru
        _
    $region12: #{gge_forward.9} parent=5 // pred_fallthru
      _
    %p203 = scmp.lt.s32.totalorder %s12, 2
    // Predicated region
    $region25: #{gge_forward.9} parent=5 // pred_check
      %p204 = pneg %p203
    $region26: #{gge_forward.9} parent=5 // pred_check_branch
      %206 = sbr.rel (%p204) target = $region28
    $region27: #{gge_forward.9} parent=5 // pred_region
      // Predicated region
      $region29: #{gge_forward.9} parent=27 // pred_check
        %p207 = pneg %p32
      $region30: #{gge_forward.9} parent=27 // pred_check_branch
        %209 = sbr.rel (%p207) target = $region32
      $region31: #{gge_forward.9} parent=27 // pred_region
        %p210 = scmp.lt.s32.totalorder %s12, 1
        %s211 = scalar_select %p210, %s12, 1
        %s212 = smul.addr %s211, 4
        %s213 = smul.addr %s212, 4
        %s214 = scalar_lea.vmem %s0, %s213
      $region32: #{gge_forward.9} parent=27 // pred_fallthru
        _
      // Predicated region
      $region33: #{gge_forward.9} parent=27 // pred_check
        %p215 = pneg %p58
      $region34: #{gge_forward.9} parent=27 // pred_check_branch
        %217 = sbr.rel (%p215) target = $region36
      $region35: #{gge_forward.9} parent=27 // pred_region
        %p218 = scmp.lt.s32.totalorder %s12, 1
        %s219 = scalar_select %p218, %s12, 1
        %s220 = smul.addr %s219, 4
        %s221 = smul.addr %s220, 4
        %s222 = scalar_lea.vmem %s1, %s221
      $region36: #{gge_forward.9} parent=27 // pred_fallthru
        _
      // Predicated region
      $region37: #{gge_forward.9} parent=27 // pred_check
        %p223 = pneg %p84
      $region38: #{gge_forward.9} parent=27 // pred_check_branch
        %225 = sbr.rel (%p223) target = $region40
      $region39: #{gge_forward.9} parent=27 // pred_region
        %p226 = scmp.lt.s32.totalorder %s12, 1
        %s227 = scalar_select %p226, %s12, 1
        %s228 = smul.addr %s227, 8
        %s229 = smul.addr %s228, 4
        %s230 = scalar_lea.vmem %s2, %s229
      $region40: #{gge_forward.9} parent=27 // pred_fallthru
        _
    $region28: #{gge_forward.9} parent=5 // pred_fallthru
      _
    %p231 = scmp.le.s32.totalorder 1, %s12
    %p232 = scmp.lt.s32.totalorder %s12, 3
    %p233 = pnand %p231, %p232
    %p234 = pneg %p233
    // Predicated region
    $region41: #{gge_forward.9} parent=5 // pred_check
      _
    $region42: #{gge_forward.9} parent=5 // pred_check_branch
      %236 = sbr.rel (%p233) target = $region44
    $region43: #{gge_forward.9} parent=5 // pred_region
      %s237 = ssub.s32 %s12, 1
      %p238 = scmp.lt.s32.totalorder %s17, 1
      %s239 = scalar_select %p238, %s17, 1
      %s240 = smul.addr %s239, 4
      %s241 = smul.addr %s240, 4
      %s242 = scalar_lea.vmem %s0, %s241
      %p243 = pneg %p38
      %p244 = pneg %p35
      %p245 = scmp.lt.s32.totalorder %s17, 1
      %s246 = scalar_select %p245, %s17, 1
      %s247 = smul.addr %s246, 4
      %s248 = smul.addr %s247, 4
      %s249 = scalar_lea.vmem %s1, %s248
      %p250 = pneg %p64
      %p251 = pneg %p61
      %p252 = scmp.lt.s32.totalorder %s17, 1
      %s253 = scalar_select %p252, %s17, 1
      %s254 = smul.addr %s253, 8
      %s255 = smul.addr %s254, 4
      %s256 = scalar_lea.vmem %s2, %s255
      %p257 = pneg %p90
      %p258 = pneg %p87
      %p259 = pneg %p111
      %p260 = pneg %p108
      %p261 = pneg %p132
      %p262 = pneg %p129
      %p263 = pneg %p153
      %p264 = pneg %p150
      %p265 = pneg %p179
      %p266 = pneg %p176
      %p267 = scmp.lt.s32.totalorder %s17, 1
      %s268 = scalar_select %p267, %s17, 1
      %s269 = smul.addr %s268, 4
      %s270 = smul.addr %s269, 4
      %s271 = scalar_lea.vmem %s6, %s270
      %p272 = scmp.lt.s32.totalorder %s17, 1
      %s273 = scalar_select %p272, %s17, 1
      %s274 = smul.addr %s273, 4
      %s275 = smul.addr %s274, 4
      %s276 = scalar_lea.vmem %s0, %s275
      %p277 = scmp.lt.s32.totalorder %s17, 1
      %s278 = scalar_select %p277, %s17, 1
      %s279 = smul.addr %s278, 4
      %s280 = smul.addr %s279, 4
      %s281 = scalar_lea.vmem %s1, %s280
      %p282 = scmp.lt.s32.totalorder %s17, 1
      %s283 = scalar_select %p282, %s17, 1
      %s284 = smul.addr %s283, 8
      %s285 = smul.addr %s284, 4
      %s286 = scalar_lea.vmem %s2, %s285
      %p287 = scmp.lt.s32.totalorder %s17, 1
      %s288 = scalar_select %p287, %s17, 1
      %s289 = smul.addr %s288, 4
      %s290 = smul.addr %s289, 4
      %s291 = scalar_lea.vmem %s6, %s290
      %v293 = vld [vmem:[%s3] sm:$0xf]
      %v294 = vld [vmem:[%s3 + $0x4] sm:$0xf]
      %v295 = vld [vmem:[%s3 + $0x8] sm:$0xf]
      %v296 = vld [vmem:[%s3 + $0xc] sm:$0xf]
      %v297 = vld [vmem:[%s276] sm:$0xf]
      %v298 = vld [vmem:[%s276 + $0x4] sm:$0xf]
      %v299 = vld [vmem:[%s276 + $0x8] sm:$0xf]
      %v300 = vld [vmem:[%s276 + $0xc] sm:$0xf]
      %v301 = vld [vmem:[%s4] sm:$0xf]
      %v302 = vld [vmem:[%s4 + $0x4] sm:$0xf]
      %v303 = vld [vmem:[%s4 + $0x8] sm:$0xf]
      %v304 = vld [vmem:[%s4 + $0xc] sm:$0xf]
      %v305 = vld [vmem:[%s281] sm:$0xf]
      %v306 = vld [vmem:[%s281 + $0x4] sm:$0xf]
      %v307 = vld [vmem:[%s281 + $0x8] sm:$0xf]
      %v308 = vld [vmem:[%s281 + $0xc] sm:$0xf]
      %v313 = vunpack.c.l.b16 %v301
      %v314 = vunpack.c.l.b16 %v302
      %v315 = vunpack.c.l.b16 %v303
      %v316 = vunpack.c.l.b16 %v304
      %v317 = vpack.c.b16 %v314, %v313
      %v318 = vpack.c.b16 %v316, %v315
      %v323 = vunpack.c.l.b16 %v305
      %v324 = vunpack.c.l.b16 %v306
      %v325 = vunpack.c.l.b16 %v307
      %v326 = vunpack.c.l.b16 %v308
      %v327 = vpack.c.b16 %v324, %v323
      %v328 = vpack.c.b16 %v326, %v325
      %vm331 = vcmask 261120
      %v333 = vsel %vm331, %v317, 0
      %v336 = vsel %vm331, %v318, 0
      %338 = vmatpush.bf16.msra.mxu0 0
      %339 = vmatpush.bf16.msra.mxu0 0
      %340 = vmatpush.bf16.msra.mxu0 0
      %341 = vmatpush.bf16.msra.mxu0 0
      %342 = vmatpush.bf16.msra.mxu0 0
      %343 = vmatpush.bf16.msra.mxu0 0
      %344 = vmatpush.bf16.msra.mxu0 %v328
      %345 = vmatpush.bf16.msra.mxu0 %v327
      %346 = vmatmul.bf16.gmra.mxu0 %v333
      %v347 = vpop.f32.mrf.mxu0
      %v348 = vadd.f32 0.0, %v347
      %v349 = vpop.f32.mrf.mxu0
      %v350 = vadd.f32 0.0, %v349
      %351 = vmatmul.bf16.gmra.mxu0 %v336
      %v352 = vpop.f32.mrf.mxu0
      %v353 = vadd.f32 0.0, %v352
      %v354 = vpop.f32.mrf.mxu0
      %v355 = vadd.f32 0.0, %v354
      %356 = vdwg.mxu0
      %v361 = vunpack.c.l.b16 %v293
      %v362 = vunpack.c.l.b16 %v294
      %v363 = vunpack.c.l.b16 %v295
      %v364 = vunpack.c.l.b16 %v296
      %v365 = vpack.c.b16 %v362, %v361
      %v366 = vpack.c.b16 %v364, %v363
      %v371 = vunpack.c.l.b16 %v297
      %v372 = vunpack.c.l.b16 %v298
      %v373 = vunpack.c.l.b16 %v299
      %v374 = vunpack.c.l.b16 %v300
      %v375 = vpack.c.b16 %v372, %v371
      %v376 = vpack.c.b16 %v374, %v373
      %v380 = vsel %vm331, %v365, 0
      %v383 = vsel %vm331, %v366, 0
      %385 = vmatpush.bf16.msra.mxu0 0
      %386 = vmatpush.bf16.msra.mxu0 0
      %387 = vmatpush.bf16.msra.mxu0 0
      %388 = vmatpush.bf16.msra.mxu0 0
      %389 = vmatpush.bf16.msra.mxu0 0
      %390 = vmatpush.bf16.msra.mxu0 0
      %391 = vmatpush.bf16.msra.mxu0 %v376
      %392 = vmatpush.bf16.msra.mxu0 %v375
      %393 = vmatmul.bf16.gmra.mxu0 %v380
      %v394 = vpop.f32.mrf.mxu0
      %v395 = vadd.f32 %v348, %v394
      %v396 = vpop.f32.mrf.mxu0
      %v397 = vadd.f32 %v350, %v396
      %398 = vmatmul.bf16.gmra.mxu0 %v383
      %v399 = vpop.f32.mrf.mxu0
      %v400 = vadd.f32 %v353, %v399
      %v401 = vpop.f32.mrf.mxu0
      %v402 = vadd.f32 %v355, %v401
      %403 = vdwg.mxu0
      %v404 = vld [vmem:[%s5] sm:$0xf]
      %v405 = vld [vmem:[%s5 + $0x4] sm:$0xf]
      %v406 = vld [vmem:[%s5 + $0x8] sm:$0xf]
      %v407 = vld [vmem:[%s5 + $0xc] sm:$0xf]
      %v408 = vld [vmem:[%s286] sm:$0xf]
      %v409 = vld [vmem:[%s286 + $0x4] sm:$0xf]
      %v410 = vld [vmem:[%s286 + $0x8] sm:$0xf]
      %v411 = vld [vmem:[%s286 + $0xc] sm:$0xf]
      %v412 = vld [vmem:[%s286 + $0x10] sm:$0xf]
      %v413 = vld [vmem:[%s286 + $0x14] sm:$0xf]
      %v414 = vld [vmem:[%s286 + $0x18] sm:$0xf]
      %v415 = vld [vmem:[%s286 + $0x1c] sm:$0xf]
      %v420 = vunpack.c.l.b16 %v404
      %v421 = vunpack.c.l.b16 %v405
      %v422 = vunpack.c.l.b16 %v406
      %v423 = vunpack.c.l.b16 %v407
      %v424 = vpack.c.b16 %v421, %v420
      %v425 = vpack.c.b16 %v423, %v422
      %v434 = vunpack.c.l.b16 %v408
      %v435 = vunpack.c.l.b16 %v409
      %v436 = vunpack.c.l.b16 %v410
      %v437 = vunpack.c.l.b16 %v411
      %v438 = vunpack.c.l.b16 %v412
      %v439 = vunpack.c.l.b16 %v413
      %v440 = vunpack.c.l.b16 %v414
      %v441 = vunpack.c.l.b16 %v415
      %v442 = vpack.c.b16 %v435, %v434
      %v443 = vpack.c.b16 %v437, %v436
      %v444 = vpack.c.b16 %v439, %v438
      %v445 = vpack.c.b16 %v441, %v440
      %vm450 = vcmask 523264
      %v452 = vsel %vm450, %v424, 0
      %v455 = vsel %vm450, %v425, 0
      %457 = vmatpush.bf16.msra.mxu0 0
      %458 = vmatpush.bf16.msra.mxu0 0
      %459 = vmatpush.bf16.msra.mxu0 0
      %460 = vmatpush.bf16.msra.mxu0 0
      %461 = vmatpush.bf16.msra.mxu0 %v445
      %462 = vmatpush.bf16.msra.mxu0 %v444
      %463 = vmatpush.bf16.msra.mxu0 %v443
      %464 = vmatpush.bf16.msra.mxu0 %v442
      %465 = vmatmul.bf16.gmra.mxu0 %v452
      %v466 = vpop.f32.mrf.mxu0
      %v467 = vadd.f32 0.0, %v466
      %v468 = vpop.f32.mrf.mxu0
      %v469 = vadd.f32 0.0, %v468
      %470 = vmatmul.bf16.gmra.mxu0 %v455
      %v471 = vpop.f32.mrf.mxu0
      %v472 = vadd.f32 0.0, %v471
      %v473 = vpop.f32.mrf.mxu0
      %v474 = vadd.f32 0.0, %v473
      %475 = vdwg.mxu0
      %v476 = vadd.f32 %v395, %v467
      %v477 = vadd.f32 %v397, %v469
      %v478 = vadd.f32 %v400, %v472
      %v479 = vadd.f32 %v402, %v474
      %480 = vadd.xlane.f32.xlu0 %v476
      %v481 = vpop.xlane.xlu0 %480
      %482 = vadd.xlane.f32.xlu0 %v477
      %v483 = vpop.xlane.xlu0 %482
      %484 = vadd.xlane.f32.xlu0 %v478
      %v485 = vpop.xlane.xlu0 %484
      %486 = vadd.xlane.f32.xlu0 %v479
      %v487 = vpop.xlane.xlu0 %486
      %v488 = vmul.f32 %v481, 0.0078125
      %v489 = vmul.f32 %v483, 0.0078125
      %v490 = vmul.f32 %v485, 0.0078125
      %v491 = vmul.f32 %v487, 0.0078125
      %v492 = vsub.f32 %v476, %v488
      %v493 = vsub.f32 %v477, %v489
      %v494 = vsub.f32 %v478, %v490
      %v495 = vsub.f32 %v479, %v491
      %v496 = vmul.f32 %v492, %v492
      %v497 = vmul.f32 %v493, %v493
      %v498 = vmul.f32 %v494, %v494
      %v499 = vmul.f32 %v495, %v495
      %500 = vadd.xlane.f32.xlu0 %v496
      %v501 = vpop.xlane.xlu0 %500
      %502 = vadd.xlane.f32.xlu0 %v497
      %v503 = vpop.xlane.xlu0 %502
      %504 = vadd.xlane.f32.xlu0 %v498
      %v505 = vpop.xlane.xlu0 %504
      %506 = vadd.xlane.f32.xlu0 %v499
      %v507 = vpop.xlane.xlu0 %506
      %v508 = vmul.f32 %v501, 0.0078125
      %v509 = vmul.f32 %v503, 0.0078125
      %v510 = vmul.f32 %v505, 0.0078125
      %v511 = vmul.f32 %v507, 0.0078125
      %v512 = vadd.f32 %v508, 1e-05
      %v513 = vadd.f32 %v509, 1e-05
      %v514 = vadd.f32 %v510, 1e-05
      %v515 = vadd.f32 %v511, 1e-05
      %v516 = vrsqrt.pop %v512
      %v517 = vmul.f32 %v516, %v512
      %v518 = vmul.f32 %v517, %v516
      %v519 = vmul.f32 0.5, %v518
      %v520 = vsub.f32 1.5, %v519
      %v521 = vmul.f32 %v516, %v520
      %vm522 = vweird.f32 %v512
      %vm523 = vweird.f32 %v516
      %vm524 = vmor %vm522, %vm523
      %v525 = vsel %vm524, %v516, %v521
      %v526 = vrsqrt.pop %v513
      %v527 = vmul.f32 %v526, %v513
      %v528 = vmul.f32 %v527, %v526
      %v529 = vmul.f32 0.5, %v528
      %v530 = vsub.f32 1.5, %v529
      %v531 = vmul.f32 %v526, %v530
      %vm532 = vweird.f32 %v513
      %vm533 = vweird.f32 %v526
      %vm534 = vmor %vm532, %vm533
      %v535 = vsel %vm534, %v526, %v531
      %v536 = vrsqrt.pop %v514
      %v537 = vmul.f32 %v536, %v514
      %v538 = vmul.f32 %v537, %v536
      %v539 = vmul.f32 0.5, %v538
      %v540 = vsub.f32 1.5, %v539
      %v541 = vmul.f32 %v536, %v540
      %vm542 = vweird.f32 %v514
      %vm543 = vweird.f32 %v536
      %vm544 = vmor %vm542, %vm543
      %v545 = vsel %vm544, %v536, %v541
      %v546 = vrsqrt.pop %v515
      %v547 = vmul.f32 %v546, %v515
      %v548 = vmul.f32 %v547, %v546
      %v549 = vmul.f32 0.5, %v548
      %v550 = vsub.f32 1.5, %v549
      %v551 = vmul.f32 %v546, %v550
      %vm552 = vweird.f32 %v515
      %vm553 = vweird.f32 %v546
      %vm554 = vmor %vm552, %vm553
      %v555 = vsel %vm554, %v546, %v551
      %v556 = vmul.f32 %v492, %v525
      %v557 = vmul.f32 %v493, %v535
      %v558 = vmul.f32 %v494, %v545
      %v559 = vmul.f32 %v495, %v555
      %vm560 = vcmp.ge.f32.partialorder %v556, 0.0
      %vm561 = vcmp.ge.f32.partialorder %v557, 0.0
      %vm562 = vcmp.ge.f32.partialorder %v558, 0.0
      %vm563 = vcmp.ge.f32.partialorder %v559, 0.0
      %v564 = vmul.f32 %v556, 0.2
      %v565 = vmul.f32 %v557, 0.2
      %v566 = vmul.f32 %v558, 0.2
      %v567 = vmul.f32 %v559, 0.2
      %v568 = vsel %vm560, %v556, %v564
      %v569 = vsel %vm561, %v557, %v565
      %v570 = vsel %vm562, %v558, %v566
      %v571 = vsel %vm563, %v559, %v567
      %v572 = vpack.c.bf16 %v568, %v568
      %v573 = vpack.c.bf16 %v569, %v569
      %v574 = vpack.c.bf16 %v570, %v570
      %v575 = vpack.c.bf16 %v571, %v571
      %576 = vst [vmem:[%s291] sm:$0xf] %v572
      %577 = vst [vmem:[%s291 + $0x4] sm:$0xf] %v573
      %578 = vst [vmem:[%s291 + $0x8] sm:$0xf] %v574
      %579 = vst [vmem:[%s291 + $0xc] sm:$0xf] %v575
      %p580 = scmp.lt.s32.totalorder %s17, 1
      %s581 = scalar_select %p580, %s17, 1
      %s582 = smul.addr %s581, 4
      %s583 = smul.addr %s582, 4
      %s584 = scalar_lea.vmem %s6, %s583
      // Predicated region
      $region45: #{gge_forward.9} parent=43 // pred_check
        %p585 = pneg %p176
      $region46: #{gge_forward.9} parent=43 // pred_check_branch
        %587 = sbr.rel (%p585) target = $region48
      $region47: #{gge_forward.9} parent=43 // pred_region
        _
      $region48: #{gge_forward.9} parent=43 // pred_fallthru
        _
    $region44: #{gge_forward.9} parent=5 // pred_fallthru
      _
    %p588 = scmp.le.s32.totalorder 2, %s12
    // Predicated region
    $region49: #{gge_forward.9} parent=5 // pred_check
      %p589 = pneg %p588
    $region50: #{gge_forward.9} parent=5 // pred_check_branch
      %591 = sbr.rel (%p589) target = $region52
    $region51: #{gge_forward.9} parent=5 // pred_region
      %s592 = ssub.s32 %s12, 2
      // Predicated region
      $region53: #{gge_forward.9} parent=51 // pred_check
        %p593 = pneg %p182
      $region54: #{gge_forward.9} parent=51 // pred_check_branch
        %595 = sbr.rel (%p593) target = $region56
      $region55: #{gge_forward.9} parent=51 // pred_region
        %p596 = scmp.lt.s32.totalorder %s18, 1
        %s597 = scalar_select %p596, %s18, 1
        %s598 = smul.addr %s597, 4
        %s599 = smul.addr %s598, 4
        %s600 = scalar_lea.vmem %s6, %s599
      $region56: #{gge_forward.9} parent=51 // pred_fallthru
        _
    $region52: #{gge_forward.9} parent=5 // pred_fallthru
      _
  $region6: #{gge_forward.9} parent=0 // loop_footer
    %s16 = sadd.s32 1, %s12
  $region7: #{gge_forward.9} parent=0 // loop_footer_branch
    %11 = sbr.rel target = $region3
  $region8: #{gge_forward.9} parent=0 // loop_exit
    _

// kernel: gge_forward.10
$region0: #{gge_forward.10}
  #allocation0 [shape = 'u32[]', space=smem, size = 0x4, offset = 0x4, fixed_abs, tag = 'smem constant byte address 0x4 - core index']
  #allocation1 [shape = 'u32[72,128]{1,0:T(1,128)}', space=vmem, size = 0x9000, scoped, tag = 'internal scratch']
  %s0 = inlined_call_operand.vmem [shape: bf16[2,16,128], index: 0, kind: input, shape index: {}]
  %s1 = inlined_call_operand.vmem [shape: bf16[2,32,128], index: 1, kind: input, shape index: {}]
  %s2 = inlined_call_operand.vmem [shape: bf16[48,16], index: 2, kind: input, shape index: {}]
  %s3 = inlined_call_operand.vmem [shape: bf16[48,32], index: 3, kind: input, shape index: {}]
  %s4 = inlined_call_operand.vmem [shape: bf16[2,48,128], index: 4, kind: output, shape index: {}]
  %s5 = sld [smem:[#allocation0]]
  $region49: #{gge_forward.10} parent=0
    _
  %s7 = ssub.s32 1, %s5
  %s8 = scalar_select 0, %s7, %s5
  loop: start=0, step=1, limit=4
  $region2: #{gge_forward.10} parent=0 // loop_pre_header
    _
  $region3: #{gge_forward.10} parent=0 // loop_header
    %s10 = sphi 0, %s14
    %p11 = scmp.ge.s32.totalorder %s10, 4
    %s20 = sphi 0, %s22
    %s23 = sphi 0, %s20
    %s24 = sphi 0, %s23
    %s40 = sphi 0, %s24
    %s46 = sphi 0, %s48
    %s49 = sphi 0, %s46
    %s50 = sphi 0, %s49
    %s66 = sphi 0, %s50
    %s70 = sphi 0, %s70
    %s72 = sphi 0, %s70
    %s73 = sphi 0, %s72
    %s87 = sphi 0, %s73
    %s91 = sphi 0, %s91
    %s93 = sphi 0, %s91
    %s94 = sphi 0, %s93
    %s108 = sphi 0, %s94
    %s114 = sphi 0, %s116
    %s117 = sphi 0, %s114
    %s118 = sphi 0, %s117
    %s134 = sphi 0, %s118
  $region4: #{gge_forward.10} parent=0 // loop_header_branch
    %13 = sbr.rel (%p11) target = $region8
  $region5: #{gge_forward.10} parent=0 // loop_body
    %s15 = ssub.s32 %s10, 1
    %s16 = ssub.s32 %s10, 2
    %s17 = sadd.s32 %s10, 1
    %s18 = ssub.s32 %s10, %s17
    %p19 = scmp.eq.s32.totalorder %s18, 0
    %s21 = sadd.s32 %s20, 1
    %s22 = scalar_select %p19, %s20, %s21
    %p25 = pneg %p19
    %p26 = scmp.eq.s32.totalorder %s10, 1
    %p27 = por %p25, %p26
    %p28 = scmp.ne.s32.totalorder %s20, %s23
    %p29 = scmp.eq.s32.totalorder %s10, 0
    %p30 = por %p28, %p29
    %p31 = scmp.ne.s32.totalorder %s20, %s23
    %p32 = scmp.eq.s32.totalorder %s15, 1
    %p33 = por %p31, %p32
    %p34 = scmp.ne.s32.totalorder %s23, %s24
    %p35 = scmp.eq.s32.totalorder %s15, 0
    %p36 = por %p34, %p35
    %p37 = scmp.ne.s32.totalorder %s23, %s24
    %p38 = scmp.eq.s32.totalorder %s16, 1
    %p39 = por %p37, %p38
    %p41 = scmp.ne.s32.totalorder %s24, %s40
    %p42 = scmp.eq.s32.totalorder %s16, 0
    %p43 = por %p41, %p42
    %s44 = ssub.s32 %s10, %s17
    %p45 = scmp.eq.s32.totalorder %s44, 0
    %s47 = sadd.s32 %s46, 1
    %s48 = scalar_select %p45, %s46, %s47
    %p51 = pneg %p45
    %p52 = scmp.eq.s32.totalorder %s10, 1
    %p53 = por %p51, %p52
    %p54 = scmp.ne.s32.totalorder %s46, %s49
    %p55 = scmp.eq.s32.totalorder %s10, 0
    %p56 = por %p54, %p55
    %p57 = scmp.ne.s32.totalorder %s46, %s49
    %p58 = scmp.eq.s32.totalorder %s15, 1
    %p59 = por %p57, %p58
    %p60 = scmp.ne.s32.totalorder %s49, %s50
    %p61 = scmp.eq.s32.totalorder %s15, 0
    %p62 = por %p60, %p61
    %p63 = scmp.ne.s32.totalorder %s49, %s50
    %p64 = scmp.eq.s32.totalorder %s16, 1
    %p65 = por %p63, %p64
    %p67 = scmp.ne.s32.totalorder %s50, %s66
    %p68 = scmp.eq.s32.totalorder %s16, 0
    %p69 = por %p67, %p68
    %s71 = sadd.s32 %s70, 1
    %p74 = scmp.eq.s32.totalorder %s10, 1
    %p75 = scmp.ne.s32.totalorder %s70, %s72
    %p76 = scmp.eq.s32.totalorder %s10, 0
    %p77 = por %p75, %p76
    %p78 = scmp.ne.s32.totalorder %s70, %s72
    %p79 = scmp.eq.s32.totalorder %s15, 1
    %p80 = por %p78, %p79
    %p81 = scmp.ne.s32.totalorder %s72, %s73
    %p82 = scmp.eq.s32.totalorder %s15, 0
    %p83 = por %p81, %p82
    %p84 = scmp.ne.s32.totalorder %s72, %s73
    %p85 = scmp.eq.s32.totalorder %s16, 1
    %p86 = por %p84, %p85
    %p88 = scmp.ne.s32.totalorder %s73, %s87
    %p89 = scmp.eq.s32.totalorder %s16, 0
    %p90 = por %p88, %p89
    %s92 = sadd.s32 %s91, 1
    %p95 = scmp.eq.s32.totalorder %s10, 1
    %p96 = scmp.ne.s32.totalorder %s91, %s93
    %p97 = scmp.eq.s32.totalorder %s10, 0
    %p98 = por %p96, %p97
    %p99 = scmp.ne.s32.totalorder %s91, %s93
    %p100 = scmp.eq.s32.totalorder %s15, 1
    %p101 = por %p99, %p100
    %p102 = scmp.ne.s32.totalorder %s93, %s94
    %p103 = scmp.eq.s32.totalorder %s15, 0
    %p104 = por %p102, %p103
    %p105 = scmp.ne.s32.totalorder %s93, %s94
    %p106 = scmp.eq.s32.totalorder %s16, 1
    %p107 = por %p105, %p106
    %p109 = scmp.ne.s32.totalorder %s94, %s108
    %p110 = scmp.eq.s32.totalorder %s16, 0
    %p111 = por %p109, %p110
    %s112 = ssub.s32 %s10, %s17
    %p113 = scmp.eq.s32.totalorder %s112, 0
    %s115 = sadd.s32 %s114, 1
    %s116 = scalar_select %p113, %s114, %s115
    %p119 = pneg %p113
    %p120 = scmp.eq.s32.totalorder %s10, 1
    %p121 = por %p119, %p120
    %p122 = scmp.ne.s32.totalorder %s114, %s117
    %p123 = scmp.eq.s32.totalorder %s10, 0
    %p124 = por %p122, %p123
    %p125 = scmp.ne.s32.totalorder %s114, %s117
    %p126 = scmp.eq.s32.totalorder %s15, 1
    %p127 = por %p125, %p126
    %p128 = scmp.ne.s32.totalorder %s117, %s118
    %p129 = scmp.eq.s32.totalorder %s15, 0
    %p130 = por %p128, %p129
    %p131 = scmp.ne.s32.totalorder %s117, %s118
    %p132 = scmp.eq.s32.totalorder %s16, 1
    %p133 = por %p131, %p132
    %p135 = scmp.ne.s32.totalorder %s118, %s134
    %p136 = scmp.eq.s32.totalorder %s16, 0
    %p137 = por %p135, %p136
    %p138 = scmp.le.s32.totalorder 1, %s10
    %p139 = scmp.lt.s32.totalorder %s10, 3
    %p140 = pnand %p138, %p139
    %p141 = pneg %p140
    // Predicated region
    $region9: #{gge_forward.10} parent=5 // pred_check
      _
    $region10: #{gge_forward.10} parent=5 // pred_check_branch
      %143 = sbr.rel (%p140) target = $region12
    $region11: #{gge_forward.10} parent=5 // pred_region
      %s144 = ssub.s32 %s10, 1
      // Predicated region
      $region13: #{gge_forward.10} parent=11 // pred_check
        %p145 = pneg %p83
      $region14: #{gge_forward.10} parent=11 // pred_check_branch
        %147 = sbr.rel (%p145) target = $region16
      $region15: #{gge_forward.10} parent=11 // pred_region
        _
      $region16: #{gge_forward.10} parent=11 // pred_fallthru
        _
      // Predicated region
      $region17: #{gge_forward.10} parent=11 // pred_check
        %p148 = pneg %p104
      $region18: #{gge_forward.10} parent=11 // pred_check_branch
        %150 = sbr.rel (%p148) target = $region20
      $region19: #{gge_forward.10} parent=11 // pred_region
        _
      $region20: #{gge_forward.10} parent=11 // pred_fallthru
        _
    $region12: #{gge_forward.10} parent=5 // pred_fallthru
      _
    %p151 = scmp.lt.s32.totalorder %s10, 2
    // Predicated region
    $region21: #{gge_forward.10} parent=5 // pred_check
      %p152 = pneg %p151
    $region22: #{gge_forward.10} parent=5 // pred_check_branch
      %154 = sbr.rel (%p152) target = $region24
    $region23: #{gge_forward.10} parent=5 // pred_region
      // Predicated region
      $region25: #{gge_forward.10} parent=23 // pred_check
        %p155 = pneg %p30
      $region26: #{gge_forward.10} parent=23 // pred_check_branch
        %157 = sbr.rel (%p155) target = $region28
      $region27: #{gge_forward.10} parent=23 // pred_region
        %p158 = scmp.lt.s32.totalorder %s10, 1
        %s159 = scalar_select %p158, %s10, 1
        %s160 = smul.addr %s159, 2
        %s161 = smul.addr %s160, 4
        %s162 = scalar_lea.vmem %s0, %s161
      $region28: #{gge_forward.10} parent=23 // pred_fallthru
        _
      // Predicated region
      $region29: #{gge_forward.10} parent=23 // pred_check
        %p163 = pneg %p56
      $region30: #{gge_forward.10} parent=23 // pred_check_branch
        %165 = sbr.rel (%p163) target = $region32
      $region31: #{gge_forward.10} parent=23 // pred_region
        %p166 = scmp.lt.s32.totalorder %s10, 1
        %s167 = scalar_select %p166, %s10, 1
        %s168 = smul.addr %s167, 4
        %s169 = smul.addr %s168, 4
        %s170 = scalar_lea.vmem %s1, %s169
      $region32: #{gge_forward.10} parent=23 // pred_fallthru
        _
    $region24: #{gge_forward.10} parent=5 // pred_fallthru
      _
    %p171 = scmp.le.s32.totalorder 1, %s10
    %p172 = scmp.lt.s32.totalorder %s10, 3
    %p173 = pnand %p171, %p172
    %p174 = pneg %p173
    // Predicated region
    $region33: #{gge_forward.10} parent=5 // pred_check
      _
    $region34: #{gge_forward.10} parent=5 // pred_check_branch
      %176 = sbr.rel (%p173) target = $region36
    $region35: #{gge_forward.10} parent=5 // pred_region
      %s177 = ssub.s32 %s10, 1
      %p178 = scmp.lt.s32.totalorder %s15, 1
      %s179 = scalar_select %p178, %s15, 1
      %s180 = smul.addr %s179, 2
      %s181 = smul.addr %s180, 4
      %s182 = scalar_lea.vmem %s0, %s181
      %p183 = pneg %p36
      %p184 = pneg %p33
      %p185 = scmp.lt.s32.totalorder %s15, 1
      %s186 = scalar_select %p185, %s15, 1
      %s187 = smul.addr %s186, 4
      %s188 = smul.addr %s187, 4
      %s189 = scalar_lea.vmem %s1, %s188
      %p190 = pneg %p62
      %p191 = pneg %p59
      %p192 = pneg %p83
      %p193 = pneg %p80
      %p194 = pneg %p104
      %p195 = pneg %p101
      %p196 = pneg %p130
      %p197 = pneg %p127
      %p198 = scmp.lt.s32.totalorder %s15, 1
      %s199 = scalar_select %p198, %s15, 1
      %s200 = smul.addr %s199, 6
      %s201 = smul.addr %s200, 4
      %s202 = scalar_lea.vmem %s4, %s201
      %p203 = scmp.lt.s32.totalorder %s15, 1
      %s204 = scalar_select %p203, %s15, 1
      %s205 = smul.addr %s204, 2
      %s206 = smul.addr %s205, 4
      %s207 = scalar_lea.vmem %s0, %s206
      %p208 = scmp.lt.s32.totalorder %s15, 1
      %s209 = scalar_select %p208, %s15, 1
      %s210 = smul.addr %s209, 4
      %s211 = smul.addr %s210, 4
      %s212 = scalar_lea.vmem %s1, %s211
      %p213 = scmp.lt.s32.totalorder %s15, 1
      %s214 = scalar_select %p213, %s15, 1
      %s215 = smul.addr %s214, 6
      %s216 = smul.addr %s215, 4
      %s217 = scalar_lea.vmem %s4, %s216
      %v219 = vld [vmem:[%s2] sm:$0xf]
      %v220 = vld [vmem:[%s2 + $0x4] sm:$0xf]
      %v221 = vld [vmem:[%s2 + $0x8] sm:$0xf]
      %v222 = vld [vmem:[%s2 + $0xc] sm:$0xf]
      %v223 = vld [vmem:[%s2 + $0x10] sm:$0xf]
      %v224 = vld [vmem:[%s2 + $0x14] sm:$0xf]
      %v225 = vld [vmem:[%s207] sm:$0xf]
      %v226 = vld [vmem:[%s207 + $0x4] sm:$0xf]
      %v227 = vld [vmem:[%s3] sm:$0xf]
      %v228 = vld [vmem:[%s3 + $0x4] sm:$0xf]
      %v229 = vld [vmem:[%s3 + $0x8] sm:$0xf]
      %v230 = vld [vmem:[%s3 + $0xc] sm:$0xf]
      %v231 = vld [vmem:[%s3 + $0x10] sm:$0xf]
      %v232 = vld [vmem:[%s3 + $0x14] sm:$0xf]
      %v233 = vld [vmem:[%s212] sm:$0xf]
      %v234 = vld [vmem:[%s212 + $0x4] sm:$0xf]
      %v235 = vld [vmem:[%s212 + $0x8] sm:$0xf]
      %v236 = vld [vmem:[%s212 + $0xc] sm:$0xf]
      %v243 = vunpack.c.l.b16 %v227
      %v244 = vunpack.c.l.b16 %v228
      %v245 = vunpack.c.l.b16 %v229
      %v246 = vunpack.c.l.b16 %v230
      %v247 = vunpack.c.l.b16 %v231
      %v248 = vunpack.c.l.b16 %v232
      %v249 = vpack.c.b16 %v244, %v243
      %v250 = vpack.c.b16 %v246, %v245
      %v251 = vpack.c.b16 %v248, %v247
      %v256 = vunpack.c.l.b16 %v233
      %v257 = vunpack.c.l.b16 %v234
      %v258 = vunpack.c.l.b16 %v235
      %v259 = vunpack.c.l.b16 %v236
      %v260 = vpack.c.b16 %v257, %v256
      %v261 = vpack.c.b16 %v259, %v258
      %vm264 = vcmask 261120
      %v266 = vsel %vm264, %v249, 0
      %v269 = vsel %vm264, %v250, 0
      %v272 = vsel %vm264, %v251, 0
      %274 = vmatpush.bf16.msra.mxu0 0
      %275 = vmatpush.bf16.msra.mxu0 0
      %276 = vmatpush.bf16.msra.mxu0 0
      %277 = vmatpush.bf16.msra.mxu0 0
      %278 = vmatpush.bf16.msra.mxu0 0
      %279 = vmatpush.bf16.msra.mxu0 0
      %280 = vmatpush.bf16.msra.mxu0 %v261
      %281 = vmatpush.bf16.msra.mxu0 %v260
      %282 = vmatmul.bf16.gmra.mxu0 %v266
      %v283 = vpop.f32.mrf.mxu0
      %v284 = vadd.f32 0.0, %v283
      %v285 = vpop.f32.mrf.mxu0
      %v286 = vadd.f32 0.0, %v285
      %287 = vmatmul.bf16.gmra.mxu0 %v269
      %v288 = vpop.f32.mrf.mxu0
      %v289 = vadd.f32 0.0, %v288
      %v290 = vpop.f32.mrf.mxu0
      %v291 = vadd.f32 0.0, %v290
      %292 = vmatmul.bf16.gmra.mxu0 %v272
      %v293 = vpop.f32.mrf.mxu0
      %v294 = vadd.f32 0.0, %v293
      %v295 = vpop.f32.mrf.mxu0
      %v296 = vadd.f32 0.0, %v295
      %297 = vdwg.mxu0
      %v304 = vunpack.c.l.b16 %v219
      %v305 = vunpack.c.l.b16 %v220
      %v306 = vunpack.c.l.b16 %v221
      %v307 = vunpack.c.l.b16 %v222
      %v308 = vunpack.c.l.b16 %v223
      %v309 = vunpack.c.l.b16 %v224
      %v310 = vpack.c.b16 %v305, %v304
      %v311 = vpack.c.b16 %v307, %v306
      %v312 = vpack.c.b16 %v309, %v308
      %v315 = vunpack.c.l.b16 %v225
      %v316 = vunpack.c.l.b16 %v226
      %v317 = vpack.c.b16 %v316, %v315
      %vm319 = vcmask 130048
      %v321 = vsel %vm319, %v310, 0
      %v324 = vsel %vm319, %v311, 0
      %v327 = vsel %vm319, %v312, 0
      %329 = vmatpush.bf16.msra.mxu0 0
      %330 = vmatpush.bf16.msra.mxu0 0
      %331 = vmatpush.bf16.msra.mxu0 0
      %332 = vmatpush.bf16.msra.mxu0 0
      %333 = vmatpush.bf16.msra.mxu0 0
      %334 = vmatpush.bf16.msra.mxu0 0
      %335 = vmatpush.bf16.msra.mxu0 0
      %336 = vmatpush.bf16.msra.mxu0 %v317
      %337 = vmatmul.bf16.gmra.mxu0 %v321
      %v338 = vpop.f32.mrf.mxu0
      %v339 = vadd.f32 %v284, %v338
      %v340 = vpop.f32.mrf.mxu0
      %v341 = vadd.f32 %v286, %v340
      %342 = vmatmul.bf16.gmra.mxu0 %v324
      %v343 = vpop.f32.mrf.mxu0
      %v344 = vadd.f32 %v289, %v343
      %v345 = vpop.f32.mrf.mxu0
      %v346 = vadd.f32 %v291, %v345
      %347 = vmatmul.bf16.gmra.mxu0 %v327
      %v348 = vpop.f32.mrf.mxu0
      %v349 = vadd.f32 %v294, %v348
      %v350 = vpop.f32.mrf.mxu0
      %v351 = vadd.f32 %v296, %v350
      %352 = vdwg.mxu0
      %353 = vadd.xlane.f32.xlu0 %v339
      %v354 = vpop.xlane.xlu0 %353
      %355 = vadd.xlane.f32.xlu0 %v341
      %v356 = vpop.xlane.xlu0 %355
      %357 = vadd.xlane.f32.xlu0 %v344
      %v358 = vpop.xlane.xlu0 %357
      %359 = vadd.xlane.f32.xlu0 %v346
      %v360 = vpop.xlane.xlu0 %359
      %361 = vadd.xlane.f32.xlu0 %v349
      %v362 = vpop.xlane.xlu0 %361
      %363 = vadd.xlane.f32.xlu0 %v351
      %v364 = vpop.xlane.xlu0 %363
      %v365 = vmul.f32 %v354, 0.0078125
      %v366 = vmul.f32 %v356, 0.0078125
      %v367 = vmul.f32 %v358, 0.0078125
      %v368 = vmul.f32 %v360, 0.0078125
      %v369 = vmul.f32 %v362, 0.0078125
      %v370 = vmul.f32 %v364, 0.0078125
      %v371 = vsub.f32 %v339, %v365
      %v372 = vsub.f32 %v341, %v366
      %v373 = vsub.f32 %v344, %v367
      %v374 = vsub.f32 %v346, %v368
      %v375 = vsub.f32 %v349, %v369
      %v376 = vsub.f32 %v351, %v370
      %v377 = vmul.f32 %v371, %v371
      %v378 = vmul.f32 %v372, %v372
      %v379 = vmul.f32 %v373, %v373
      %v380 = vmul.f32 %v374, %v374
      %v381 = vmul.f32 %v375, %v375
      %v382 = vmul.f32 %v376, %v376
      %383 = vadd.xlane.f32.xlu0 %v377
      %v384 = vpop.xlane.xlu0 %383
      %385 = vadd.xlane.f32.xlu0 %v378
      %v386 = vpop.xlane.xlu0 %385
      %387 = vadd.xlane.f32.xlu0 %v379
      %v388 = vpop.xlane.xlu0 %387
      %389 = vadd.xlane.f32.xlu0 %v380
      %v390 = vpop.xlane.xlu0 %389
      %391 = vadd.xlane.f32.xlu0 %v381
      %v392 = vpop.xlane.xlu0 %391
      %393 = vadd.xlane.f32.xlu0 %v382
      %v394 = vpop.xlane.xlu0 %393
      %v395 = vmul.f32 %v384, 0.0078125
      %v396 = vmul.f32 %v386, 0.0078125
      %v397 = vmul.f32 %v388, 0.0078125
      %v398 = vmul.f32 %v390, 0.0078125
      %v399 = vmul.f32 %v392, 0.0078125
      %v400 = vmul.f32 %v394, 0.0078125
      %v401 = vadd.f32 %v395, 1e-05
      %v402 = vadd.f32 %v396, 1e-05
      %v403 = vadd.f32 %v397, 1e-05
      %v404 = vadd.f32 %v398, 1e-05
      %v405 = vadd.f32 %v399, 1e-05
      %v406 = vadd.f32 %v400, 1e-05
      %v407 = vrsqrt.pop %v401
      %v408 = vmul.f32 %v407, %v401
      %v409 = vmul.f32 %v408, %v407
      %v410 = vmul.f32 0.5, %v409
      %v411 = vsub.f32 1.5, %v410
      %v412 = vmul.f32 %v407, %v411
      %vm413 = vweird.f32 %v401
      %vm414 = vweird.f32 %v407
      %vm415 = vmor %vm413, %vm414
      %v416 = vsel %vm415, %v407, %v412
      %v417 = vrsqrt.pop %v402
      %v418 = vmul.f32 %v417, %v402
      %v419 = vmul.f32 %v418, %v417
      %v420 = vmul.f32 0.5, %v419
      %v421 = vsub.f32 1.5, %v420
      %v422 = vmul.f32 %v417, %v421
      %vm423 = vweird.f32 %v402
      %vm424 = vweird.f32 %v417
      %vm425 = vmor %vm423, %vm424
      %v426 = vsel %vm425, %v417, %v422
      %v427 = vrsqrt.pop %v403
      %v428 = vmul.f32 %v427, %v403
      %v429 = vmul.f32 %v428, %v427
      %v430 = vmul.f32 0.5, %v429
      %v431 = vsub.f32 1.5, %v430
      %v432 = vmul.f32 %v427, %v431
      %vm433 = vweird.f32 %v403
      %vm434 = vweird.f32 %v427
      %vm435 = vmor %vm433, %vm434
      %v436 = vsel %vm435, %v427, %v432
      %v437 = vrsqrt.pop %v404
      %v438 = vmul.f32 %v437, %v404
      %v439 = vmul.f32 %v438, %v437
      %v440 = vmul.f32 0.5, %v439
      %v441 = vsub.f32 1.5, %v440
      %v442 = vmul.f32 %v437, %v441
      %vm443 = vweird.f32 %v404
      %vm444 = vweird.f32 %v437
      %vm445 = vmor %vm443, %vm444
      %v446 = vsel %vm445, %v437, %v442
      %v447 = vrsqrt.pop %v405
      %v448 = vmul.f32 %v447, %v405
      %v449 = vmul.f32 %v448, %v447
      %v450 = vmul.f32 0.5, %v449
      %v451 = vsub.f32 1.5, %v450
      %v452 = vmul.f32 %v447, %v451
      %vm453 = vweird.f32 %v405
      %vm454 = vweird.f32 %v447
      %vm455 = vmor %vm453, %vm454
      %v456 = vsel %vm455, %v447, %v452
      %v457 = vrsqrt.pop %v406
      %v458 = vmul.f32 %v457, %v406
      %v459 = vmul.f32 %v458, %v457
      %v460 = vmul.f32 0.5, %v459
      %v461 = vsub.f32 1.5, %v460
      %v462 = vmul.f32 %v457, %v461
      %vm463 = vweird.f32 %v406
      %vm464 = vweird.f32 %v457
      %vm465 = vmor %vm463, %vm464
      %v466 = vsel %vm465, %v457, %v462
      %v467 = vmul.f32 %v371, %v416
      %v468 = vmul.f32 %v372, %v426
      %v469 = vmul.f32 %v373, %v436
      %v470 = vmul.f32 %v374, %v446
      %v471 = vmul.f32 %v375, %v456
      %v472 = vmul.f32 %v376, %v466
      %vm473 = vcmp.ge.f32.partialorder %v467, 0.0
      %vm474 = vcmp.ge.f32.partialorder %v468, 0.0
      %vm475 = vcmp.ge.f32.partialorder %v469, 0.0
      %vm476 = vcmp.ge.f32.partialorder %v470, 0.0
      %vm477 = vcmp.ge.f32.partialorder %v471, 0.0
      %vm478 = vcmp.ge.f32.partialorder %v472, 0.0
      %v479 = vmul.f32 %v467, 0.2
      %v480 = vmul.f32 %v468, 0.2
      %v481 = vmul.f32 %v469, 0.2
      %v482 = vmul.f32 %v470, 0.2
      %v483 = vmul.f32 %v471, 0.2
      %v484 = vmul.f32 %v472, 0.2
      %v485 = vsel %vm473, %v467, %v479
      %v486 = vsel %vm474, %v468, %v480
      %v487 = vsel %vm475, %v469, %v481
      %v488 = vsel %vm476, %v470, %v482
      %v489 = vsel %vm477, %v471, %v483
      %v490 = vsel %vm478, %v472, %v484
      %v491 = vpack.c.bf16 %v485, %v485
      %v492 = vpack.c.bf16 %v486, %v486
      %v493 = vpack.c.bf16 %v487, %v487
      %v494 = vpack.c.bf16 %v488, %v488
      %v495 = vpack.c.bf16 %v489, %v489
      %v496 = vpack.c.bf16 %v490, %v490
      %497 = vst [vmem:[%s217] sm:$0xf] %v491
      %498 = vst [vmem:[%s217 + $0x4] sm:$0xf] %v492
      %499 = vst [vmem:[%s217 + $0x8] sm:$0xf] %v493
      %500 = vst [vmem:[%s217 + $0xc] sm:$0xf] %v494
      %501 = vst [vmem:[%s217 + $0x10] sm:$0xf] %v495
      %502 = vst [vmem:[%s217 + $0x14] sm:$0xf] %v496
      %p503 = scmp.lt.s32.totalorder %s15, 1
      %s504 = scalar_select %p503, %s15, 1
      %s505 = smul.addr %s504, 6
      %s506 = smul.addr %s505, 4
      %s507 = scalar_lea.vmem %s4, %s506
      // Predicated region
      $region37: #{gge_forward.10} parent=35 // pred_check
        %p508 = pneg %p127
      $region38: #{gge_forward.10} parent=35 // pred_check_branch
        %510 = sbr.rel (%p508) target = $region40
      $region39: #{gge_forward.10} parent=35 // pred_region
        _
      $region40: #{gge_forward.10} parent=35 // pred_fallthru
        _
    $region36: #{gge_forward.10} parent=5 // pred_fallthru
      _
    %p511 = scmp.le.s32.totalorder 2, %s10
    // Predicated region
    $region41: #{gge_forward.10} parent=5 // pred_check
      %p512 = pneg %p511
    $region42: #{gge_forward.10} parent=5 // pred_check_branch
      %514 = sbr.rel (%p512) target = $region44
    $region43: #{gge_forward.10} parent=5 // pred_region
      %s515 = ssub.s32 %s10, 2
      // Predicated region
      $region45: #{gge_forward.10} parent=43 // pred_check
        %p516 = pneg %p133
      $region46: #{gge_forward.10} parent=43 // pred_check_branch
        %518 = sbr.rel (%p516) target = $region48
      $region47: #{gge_forward.10} parent=43 // pred_region
        %p519 = scmp.lt.s32.totalorder %s16, 1
        %s520 = scalar_select %p519, %s16, 1
        %s521 = smul.addr %s520, 6
        %s522 = smul.addr %s521, 4
        %s523 = scalar_lea.vmem %s4, %s522
      $region48: #{gge_forward.10} parent=43 // pred_fallthru
        _
    $region44: #{gge_forward.10} parent=5 // pred_fallthru
      _
  $region6: #{gge_forward.10} parent=0 // loop_footer
    %s14 = sadd.s32 1, %s10
  $region7: #{gge_forward.10} parent=0 // loop_footer_branch
    %9 = sbr.rel target = $region3
  $region8: #{gge_forward.10} parent=0 // loop_exit
    _

// kernel: gge_forward.6
$region0: #{gge_forward.6}
  #allocation0 [shape = 'u32[]', space=smem, size = 0x4, offset = 0x4, fixed_abs, tag = 'smem constant byte address 0x4 - core index']
  #allocation1 [shape = 'u32[72,128]{1,0:T(1,128)}', space=vmem, size = 0x9000, scoped, tag = 'internal scratch']
  %s0 = inlined_call_operand.vmem [shape: bf16[2,10,1024], index: 0, kind: input, shape index: {}]
  %s1 = inlined_call_operand.vmem [shape: bf16[16,10], index: 1, kind: input, shape index: {}]
  %s2 = inlined_call_operand.vmem [shape: bf16[32,16], index: 2, kind: input, shape index: {}]
  %s3 = inlined_call_operand.vmem [shape: bf16[16,32], index: 3, kind: input, shape index: {}]
  %s4 = inlined_call_operand.vmem [shape: bf16[2,16,128], index: 4, kind: output, shape index: {}]
  %s5 = sld [smem:[#allocation0]]
  $region49: #{gge_forward.6} parent=0
    _
  %s7 = ssub.s32 1, %s5
  %s8 = scalar_select 0, %s7, %s5
  loop: start=0, step=1, limit=4
  $region2: #{gge_forward.6} parent=0 // loop_pre_header
    _
  $region3: #{gge_forward.6} parent=0 // loop_header
    %s10 = sphi 0, %s14
    %p11 = scmp.ge.s32.totalorder %s10, 4
    %s20 = sphi 0, %s22
    %s23 = sphi 0, %s20
    %s24 = sphi 0, %s23
    %s40 = sphi 0, %s24
    %s44 = sphi 0, %s44
    %s46 = sphi 0, %s44
    %s47 = sphi 0, %s46
    %s61 = sphi 0, %s47
    %s65 = sphi 0, %s65
    %s67 = sphi 0, %s65
    %s68 = sphi 0, %s67
    %s82 = sphi 0, %s68
    %s86 = sphi 0, %s86
    %s88 = sphi 0, %s86
    %s89 = sphi 0, %s88
    %s103 = sphi 0, %s89
    %s109 = sphi 0, %s111
    %s112 = sphi 0, %s109
    %s113 = sphi 0, %s112
    %s129 = sphi 0, %s113
  $region4: #{gge_forward.6} parent=0 // loop_header_branch
    %13 = sbr.rel (%p11) target = $region8
  $region5: #{gge_forward.6} parent=0 // loop_body
    %s15 = ssub.s32 %s10, 1
    %s16 = ssub.s32 %s10, 2
    %s17 = sadd.s32 %s10, 1
    %s18 = ssub.s32 %s10, %s17
    %p19 = scmp.eq.s32.totalorder %s18, 0
    %s21 = sadd.s32 %s20, 1
    %s22 = scalar_select %p19, %s20, %s21
    %p25 = pneg %p19
    %p26 = scmp.eq.s32.totalorder %s10, 1
    %p27 = por %p25, %p26
    %p28 = scmp.ne.s32.totalorder %s20, %s23
    %p29 = scmp.eq.s32.totalorder %s10, 0
    %p30 = por %p28, %p29
    %p31 = scmp.ne.s32.totalorder %s20, %s23
    %p32 = scmp.eq.s32.totalorder %s15, 1
    %p33 = por %p31, %p32
    %p34 = scmp.ne.s32.totalorder %s23, %s24
    %p35 = scmp.eq.s32.totalorder %s15, 0
    %p36 = por %p34, %p35
    %p37 = scmp.ne.s32.totalorder %s23, %s24
    %p38 = scmp.eq.s32.totalorder %s16, 1
    %p39 = por %p37, %p38
    %p41 = scmp.ne.s32.totalorder %s24, %s40
    %p42 = scmp.eq.s32.totalorder %s16, 0
    %p43 = por %p41, %p42
    %s45 = sadd.s32 %s44, 1
    %p48 = scmp.eq.s32.totalorder %s10, 1
    %p49 = scmp.ne.s32.totalorder %s44, %s46
    %p50 = scmp.eq.s32.totalorder %s10, 0
    %p51 = por %p49, %p50
    %p52 = scmp.ne.s32.totalorder %s44, %s46
    %p53 = scmp.eq.s32.totalorder %s15, 1
    %p54 = por %p52, %p53
    %p55 = scmp.ne.s32.totalorder %s46, %s47
    %p56 = scmp.eq.s32.totalorder %s15, 0
    %p57 = por %p55, %p56
    %p58 = scmp.ne.s32.totalorder %s46, %s47
    %p59 = scmp.eq.s32.totalorder %s16, 1
    %p60 = por %p58, %p59
    %p62 = scmp.ne.s32.totalorder %s47, %s61
    %p63 = scmp.eq.s32.totalorder %s16, 0
    %p64 = por %p62, %p63
    %s66 = sadd.s32 %s65, 1
    %p69 = scmp.eq.s32.totalorder %s10, 1
    %p70 = scmp.ne.s32.totalorder %s65, %s67
    %p71 = scmp.eq.s32.totalorder %s10, 0
    %p72 = por %p70, %p71
    %p73 = scmp.ne.s32.totalorder %s65, %s67
    %p74 = scmp.eq.s32.totalorder %s15, 1
    %p75 = por %p73, %p74
    %p76 = scmp.ne.s32.totalorder %s67, %s68
    %p77 = scmp.eq.s32.totalorder %s15, 0
    %p78 = por %p76, %p77
    %p79 = scmp.ne.s32.totalorder %s67, %s68
    %p80 = scmp.eq.s32.totalorder %s16, 1
    %p81 = por %p79, %p80
    %p83 = scmp.ne.s32.totalorder %s68, %s82
    %p84 = scmp.eq.s32.totalorder %s16, 0
    %p85 = por %p83, %p84
    %s87 = sadd.s32 %s86, 1
    %p90 = scmp.eq.s32.totalorder %s10, 1
    %p91 = scmp.ne.s32.totalorder %s86, %s88
    %p92 = scmp.eq.s32.totalorder %s10, 0
    %p93 = por %p91, %p92
    %p94 = scmp.ne.s32.totalorder %s86, %s88
    %p95 = scmp.eq.s32.totalorder %s15, 1
    %p96 = por %p94, %p95
    %p97 = scmp.ne.s32.totalorder %s88, %s89
    %p98 = scmp.eq.s32.totalorder %s15, 0
    %p99 = por %p97, %p98
    %p100 = scmp.ne.s32.totalorder %s88, %s89
    %p101 = scmp.eq.s32.totalorder %s16, 1
    %p102 = por %p100, %p101
    %p104 = scmp.ne.s32.totalorder %s89, %s103
    %p105 = scmp.eq.s32.totalorder %s16, 0
    %p106 = por %p104, %p105
    %s107 = ssub.s32 %s10, %s17
    %p108 = scmp.eq.s32.totalorder %s107, 0
    %s110 = sadd.s32 %s109, 1
    %s111 = scalar_select %p108, %s109, %s110
    %p114 = pneg %p108
    %p115 = scmp.eq.s32.totalorder %s10, 1
    %p116 = por %p114, %p115
    %p117 = scmp.ne.s32.totalorder %s109, %s112
    %p118 = scmp.eq.s32.totalorder %s10, 0
    %p119 = por %p117, %p118
    %p120 = scmp.ne.s32.totalorder %s109, %s112
    %p121 = scmp.eq.s32.totalorder %s15, 1
    %p122 = por %p120, %p121
    %p123 = scmp.ne.s32.totalorder %s112, %s113
    %p124 = scmp.eq.s32.totalorder %s15, 0
    %p125 = por %p123, %p124
    %p126 = scmp.ne.s32.totalorder %s112, %s113
    %p127 = scmp.eq.s32.totalorder %s16, 1
    %p128 = por %p126, %p127
    %p130 = scmp.ne.s32.totalorder %s113, %s129
    %p131 = scmp.eq.s32.totalorder %s16, 0
    %p132 = por %p130, %p131
    %p133 = scmp.le.s32.totalorder 1, %s10
    %p134 = scmp.lt.s32.totalorder %s10, 3
    %p135 = pnand %p133, %p134
    %p136 = pneg %p135
    // Predicated region
    $region9: #{gge_forward.6} parent=5 // pred_check
      _
    $region10: #{gge_forward.6} parent=5 // pred_check_branch
      %138 = sbr.rel (%p135) target = $region12
    $region11: #{gge_forward.6} parent=5 // pred_region
      %s139 = ssub.s32 %s10, 1
      // Predicated region
      $region13: #{gge_forward.6} parent=11 // pred_check
        %p140 = pneg %p57
      $region14: #{gge_forward.6} parent=11 // pred_check_branch
        %142 = sbr.rel (%p140) target = $region16
      $region15: #{gge_forward.6} parent=11 // pred_region
        _
      $region16: #{gge_forward.6} parent=11 // pred_fallthru
        _
      // Predicated region
      $region17: #{gge_forward.6} parent=11 // pred_check
        %p143 = pneg %p78
      $region18: #{gge_forward.6} parent=11 // pred_check_branch
        %145 = sbr.rel (%p143) target = $region20
      $region19: #{gge_forward.6} parent=11 // pred_region
        _
      $region20: #{gge_forward.6} parent=11 // pred_fallthru
        _
      // Predicated region
      $region21: #{gge_forward.6} parent=11 // pred_check
        %p146 = pneg %p99
      $region22: #{gge_forward.6} parent=11 // pred_check_branch
        %148 = sbr.rel (%p146) target = $region24
      $region23: #{gge_forward.6} parent=11 // pred_region
        _
      $region24: #{gge_forward.6} parent=11 // pred_fallthru
        _
    $region12: #{gge_forward.6} parent=5 // pred_fallthru
      _
    %p149 = scmp.lt.s32.totalorder %s10, 2
    // Predicated region
    $region25: #{gge_forward.6} parent=5 // pred_check
      %p150 = pneg %p149
    $region26: #{gge_forward.6} parent=5 // pred_check_branch
      %152 = sbr.rel (%p150) target = $region28
    $region27: #{gge_forward.6} parent=5 // pred_region
      // Predicated region
      $region29: #{gge_forward.6} parent=27 // pred_check
        %p153 = pneg %p30
      $region30: #{gge_forward.6} parent=27 // pred_check_branch
        %155 = sbr.rel (%p153) target = $region32
      $region31: #{gge_forward.6} parent=27 // pred_region
        %p156 = scmp.lt.s32.totalorder %s10, 1
        %s157 = scalar_select %p156, %s10, 1
        %s158 = smul.addr %s157, 16
        %s159 = smul.addr %s158, 4
        %s160 = scalar_lea.vmem %s0, %s159
      $region32: #{gge_forward.6} parent=27 // pred_fallthru
        _
    $region28: #{gge_forward.6} parent=5 // pred_fallthru
      _
    %p161 = scmp.le.s32.totalorder 1, %s10
    %p162 = scmp.lt.s32.totalorder %s10, 3
    %p163 = pnand %p161, %p162
    %p164 = pneg %p163
    // Predicated region
    $region33: #{gge_forward.6} parent=5 // pred_check
      _
    $region34: #{gge_forward.6} parent=5 // pred_check_branch
      %166 = sbr.rel (%p163) target = $region36
    $region35: #{gge_forward.6} parent=5 // pred_region
      %s167 = ssub.s32 %s10, 1
      %p168 = scmp.lt.s32.totalorder %s15, 1
      %s169 = scalar_select %p168, %s15, 1
      %s170 = smul.addr %s169, 16
      %s171 = smul.addr %s170, 4
      %s172 = scalar_lea.vmem %s0, %s171
      %p173 = pneg %p36
      %p174 = pneg %p33
      %p175 = pneg %p57
      %p176 = pneg %p54
      %p177 = pneg %p78
      %p178 = pneg %p75
      %p179 = pneg %p99
      %p180 = pneg %p96
      %p181 = pneg %p125
      %p182 = pneg %p122
      %p183 = scmp.lt.s32.totalorder %s15, 1
      %s184 = scalar_select %p183, %s15, 1
      %s185 = smul.addr %s184, 2
      %s186 = smul.addr %s185, 4
      %s187 = scalar_lea.vmem %s4, %s186
      %p188 = scmp.lt.s32.totalorder %s15, 1
      %s189 = scalar_select %p188, %s15, 1
      %s190 = smul.addr %s189, 16
      %s191 = smul.addr %s190, 4
      %s192 = scalar_lea.vmem %s0, %s191
      %p193 = scmp.lt.s32.totalorder %s15, 1
      %s194 = scalar_select %p193, %s15, 1
      %s195 = smul.addr %s194, 2
      %s196 = smul.addr %s195, 4
      %s197 = scalar_lea.vmem %s4, %s196
      %v199 = vld [vmem:[%s192] sm:$0xff]
      %v200 = vld [vmem:[%s192 + $0x8] sm:$0xff]
      %v201 = vld [vmem:[%s192 + $0x10] sm:$0xff]
      %v202 = vld [vmem:[%s192 + $0x18] sm:$0xff]
      %v203 = vld [vmem:[%s192 + $0x20] sm:$0x11]
      %v204 = vld [vmem:[%s192 + $0x28] sm:$0x11]
      %v205 = vld [vmem:[%s192 + $0x30] sm:$0x11]
      %v206 = vld [vmem:[%s192 + $0x38] sm:$0x11]
      %v207 = vld [vmem:[%s1] sm:$0xf]
      %v208 = vld [vmem:[%s1 + $0x4] sm:$0xf]
      %v211 = vunpack.c.l.b16 %v207
      %v212 = vunpack.c.l.b16 %v208
      %v213 = vpack.c.b16 %v212, %v211
      %v222 = vunpack.c.l.b16 %v199
      %v223 = vunpack.c.h.b16 %v199
      %v224 = vunpack.c.l.b16 %v200
      %v225 = vunpack.c.h.b16 %v200
      %v226 = vunpack.c.l.b16 %v201
      %v227 = vunpack.c.h.b16 %v201
      %v228 = vunpack.c.l.b16 %v202
      %v229 = vunpack.c.h.b16 %v202
      %v230 = vunpack.c.l.b16 %v203
      %v231 = vunpack.c.h.b16 %v203
      %v232 = vunpack.c.l.b16 %v204
      %v233 = vunpack.c.h.b16 %v204
      %v234 = vunpack.c.l.b16 %v205
      %v235 = vunpack.c.h.b16 %v205
      %v236 = vunpack.c.l.b16 %v206
      %v237 = vunpack.c.h.b16 %v206
      %v238 = vpack.c.b16 %v230, %v222
      %v239 = vpack.c.b16 %v231, %v223
      %v240 = vpack.c.b16 %v232, %v224
      %v241 = vpack.c.b16 %v233, %v225
      %v242 = vpack.c.b16 %v234, %v226
      %v243 = vpack.c.b16 %v235, %v227
      %v244 = vpack.c.b16 %v236, %v228
      %v245 = vpack.c.b16 %v237, %v229
      %vm246 = vcmask 80896
      %v248 = vsel %vm246, %v213, 0
      %vm250 = vcmask 1044480
      %v252 = vsel %vm250, %v238, 0
      %v255 = vsel %vm250, %v239, 0
      %v258 = vsel %vm250, %v240, 0
      %v261 = vsel %vm250, %v241, 0
      %v264 = vsel %vm250, %v242, 0
      %v267 = vsel %vm250, %v243, 0
      %v270 = vsel %vm250, %v244, 0
      %v273 = vsel %vm250, %v245, 0
      %275 = vmatpush.bf16.msra.mxu0 0
      %276 = vmatpush.bf16.msra.mxu0 0
      %277 = vmatpush.bf16.msra.mxu0 0
      %278 = vmatpush.bf16.msra.mxu0 0
      %279 = vmatpush.bf16.msra.mxu0 0
      %280 = vmatpush.bf16.msra.mxu0 0
      %281 = vmatpush.bf16.msra.mxu0 0
      %282 = vmatpush.bf16.msra.mxu0 %v252
      %283 = vmatmul.bf16.gmra.mxu0 %v248
      %v284 = vpop.f32.mrf.mxu0
      %v285 = vadd.f32 0.0, %v284
      %v286 = vpop.f32.mrf.mxu0
      %v287 = vadd.f32 0.0, %v286
      %288 = vdwg.mxu0
      %289 = vmatpush.bf16.msra.mxu0 0
      %290 = vmatpush.bf16.msra.mxu0 0
      %291 = vmatpush.bf16.msra.mxu0 0
      %292 = vmatpush.bf16.msra.mxu0 0
      %293 = vmatpush.bf16.msra.mxu0 0
      %294 = vmatpush.bf16.msra.mxu0 0
      %295 = vmatpush.bf16.msra.mxu0 0
      %296 = vmatpush.bf16.msra.mxu0 %v255
      %297 = vmatmul.bf16.gmra.mxu0 %v248
      %v298 = vpop.f32.mrf.mxu0
      %v299 = vadd.f32 0.0, %v298
      %v300 = vpop.f32.mrf.mxu0
      %v301 = vadd.f32 0.0, %v300
      %302 = vdwg.mxu0
      %303 = vmatpush.bf16.msra.mxu0 0
      %304 = vmatpush.bf16.msra.mxu0 0
      %305 = vmatpush.bf16.msra.mxu0 0
      %306 = vmatpush.bf16.msra.mxu0 0
      %307 = vmatpush.bf16.msra.mxu0 0
      %308 = vmatpush.bf16.msra.mxu0 0
      %309 = vmatpush.bf16.msra.mxu0 0
      %310 = vmatpush.bf16.msra.mxu0 %v258
      %311 = vmatmul.bf16.gmra.mxu0 %v248
      %v312 = vpop.f32.mrf.mxu0
      %v313 = vadd.f32 0.0, %v312
      %v314 = vpop.f32.mrf.mxu0
      %v315 = vadd.f32 0.0, %v314
      %316 = vdwg.mxu0
      %317 = vmatpush.bf16.msra.mxu0 0
      %318 = vmatpush.bf16.msra.mxu0 0
      %319 = vmatpush.bf16.msra.mxu0 0
      %320 = vmatpush.bf16.msra.mxu0 0
      %321 = vmatpush.bf16.msra.mxu0 0
      %322 = vmatpush.bf16.msra.mxu0 0
      %323 = vmatpush.bf16.msra.mxu0 0
      %324 = vmatpush.bf16.msra.mxu0 %v261
      %325 = vmatmul.bf16.gmra.mxu0 %v248
      %v326 = vpop.f32.mrf.mxu0
      %v327 = vadd.f32 0.0, %v326
      %v328 = vpop.f32.mrf.mxu0
      %v329 = vadd.f32 0.0, %v328
      %330 = vdwg.mxu0
      %331 = vmatpush.bf16.msra.mxu0 0
      %332 = vmatpush.bf16.msra.mxu0 0
      %333 = vmatpush.bf16.msra.mxu0 0
      %334 = vmatpush.bf16.msra.mxu0 0
      %335 = vmatpush.bf16.msra.mxu0 0
      %336 = vmatpush.bf16.msra.mxu0 0
      %337 = vmatpush.bf16.msra.mxu0 0
      %338 = vmatpush.bf16.msra.mxu0 %v264
      %339 = vmatmul.bf16.gmra.mxu0 %v248
      %v340 = vpop.f32.mrf.mxu0
      %v341 = vadd.f32 0.0, %v340
      %v342 = vpop.f32.mrf.mxu0
      %v343 = vadd.f32 0.0, %v342
      %344 = vdwg.mxu0
      %345 = vmatpush.bf16.msra.mxu0 0
      %346 = vmatpush.bf16.msra.mxu0 0
      %347 = vmatpush.bf16.msra.mxu0 0
      %348 = vmatpush.bf16.msra.mxu0 0
      %349 = vmatpush.bf16.msra.mxu0 0
      %350 = vmatpush.bf16.msra.mxu0 0
      %351 = vmatpush.bf16.msra.mxu0 0
      %352 = vmatpush.bf16.msra.mxu0 %v267
      %353 = vmatmul.bf16.gmra.mxu0 %v248
      %v354 = vpop.f32.mrf.mxu0
      %v355 = vadd.f32 0.0, %v354
      %v356 = vpop.f32.mrf.mxu0
      %v357 = vadd.f32 0.0, %v356
      %358 = vdwg.mxu0
      %359 = vmatpush.bf16.msra.mxu0 0
      %360 = vmatpush.bf16.msra.mxu0 0
      %361 = vmatpush.bf16.msra.mxu0 0
      %362 = vmatpush.bf16.msra.mxu0 0
      %363 = vmatpush.bf16.msra.mxu0 0
      %364 = vmatpush.bf16.msra.mxu0 0
      %365 = vmatpush.bf16.msra.mxu0 0
      %366 = vmatpush.bf16.msra.mxu0 %v270
      %367 = vmatmul.bf16.gmra.mxu0 %v248
      %v368 = vpop.f32.mrf.mxu0
      %v369 = vadd.f32 0.0, %v368
      %v370 = vpop.f32.mrf.mxu0
      %v371 = vadd.f32 0.0, %v370
      %372 = vdwg.mxu0
      %373 = vmatpush.bf16.msra.mxu0 0
      %374 = vmatpush.bf16.msra.mxu0 0
      %375 = vmatpush.bf16.msra.mxu0 0
      %376 = vmatpush.bf16.msra.mxu0 0
      %377 = vmatpush.bf16.msra.mxu0 0
      %378 = vmatpush.bf16.msra.mxu0 0
      %379 = vmatpush.bf16.msra.mxu0 0
      %380 = vmatpush.bf16.msra.mxu0 %v273
      %381 = vmatmul.bf16.gmra.mxu0 %v248
      %v382 = vpop.f32.mrf.mxu0
      %v383 = vadd.f32 0.0, %v382
      %v384 = vpop.f32.mrf.mxu0
      %v385 = vadd.f32 0.0, %v384
      %386 = vdwg.mxu0
      %v387 = vadd.f32 %v285, %v299
      %v388 = vadd.f32 %v387, %v313
      %v389 = vadd.f32 %v388, %v327
      %v390 = vadd.f32 %v389, %v341
      %v391 = vadd.f32 %v390, %v355
      %v392 = vadd.f32 %v391, %v369
      %v393 = vadd.f32 %v392, %v383
      %394 = vadd.xlane.f32.xlu0 %v393
      %v395 = vpop.xlane.xlu0 %394
      %v396 = vadd.f32 %v287, %v301
      %v397 = vadd.f32 %v396, %v315
      %v398 = vadd.f32 %v397, %v329
      %v399 = vadd.f32 %v398, %v343
      %v400 = vadd.f32 %v399, %v357
      %v401 = vadd.f32 %v400, %v371
      %v402 = vadd.f32 %v401, %v385
      %403 = vadd.xlane.f32.xlu0 %v402
      %v404 = vpop.xlane.xlu0 %403
      %v405 = vmul.f32 %v395, 0.0009765625
      %v406 = vmul.f32 %v404, 0.0009765625
      %v407 = vsub.f32 %v285, %v405
      %v408 = vsub.f32 %v299, %v405
      %v409 = vsub.f32 %v313, %v405
      %v410 = vsub.f32 %v327, %v405
      %v411 = vsub.f32 %v341, %v405
      %v412 = vsub.f32 %v355, %v405
      %v413 = vsub.f32 %v369, %v405
      %v414 = vsub.f32 %v383, %v405
      %v415 = vsub.f32 %v287, %v406
      %v416 = vsub.f32 %v301, %v406
      %v417 = vsub.f32 %v315, %v406
      %v418 = vsub.f32 %v329, %v406
      %v419 = vsub.f32 %v343, %v406
      %v420 = vsub.f32 %v357, %v406
      %v421 = vsub.f32 %v371, %v406
      %v422 = vsub.f32 %v385, %v406
      %v423 = vmul.f32 %v407, %v407
      %v424 = vmul.f32 %v408, %v408
      %v425 = vmul.f32 %v409, %v409
      %v426 = vmul.f32 %v410, %v410
      %v427 = vmul.f32 %v411, %v411
      %v428 = vmul.f32 %v412, %v412
      %v429 = vmul.f32 %v413, %v413
      %v430 = vmul.f32 %v414, %v414
      %v431 = vmul.f32 %v415, %v415
      %v432 = vmul.f32 %v416, %v416
      %v433 = vmul.f32 %v417, %v417
      %v434 = vmul.f32 %v418, %v418
      %v435 = vmul.f32 %v419, %v419
      %v436 = vmul.f32 %v420, %v420
      %v437 = vmul.f32 %v421, %v421
      %v438 = vmul.f32 %v422, %v422
      %v439 = vadd.f32 %v423, %v424
      %v440 = vadd.f32 %v439, %v425
      %v441 = vadd.f32 %v440, %v426
      %v442 = vadd.f32 %v441, %v427
      %v443 = vadd.f32 %v442, %v428
      %v444 = vadd.f32 %v443, %v429
      %v445 = vadd.f32 %v444, %v430
      %446 = vadd.xlane.f32.xlu0 %v445
      %v447 = vpop.xlane.xlu0 %446
      %v448 = vadd.f32 %v431, %v432
      %v449 = vadd.f32 %v448, %v433
      %v450 = vadd.f32 %v449, %v434
      %v451 = vadd.f32 %v450, %v435
      %v452 = vadd.f32 %v451, %v436
      %v453 = vadd.f32 %v452, %v437
      %v454 = vadd.f32 %v453, %v438
      %455 = vadd.xlane.f32.xlu0 %v454
      %v456 = vpop.xlane.xlu0 %455
      %v457 = vmul.f32 %v447, 0.0009765625
      %v458 = vmul.f32 %v456, 0.0009765625
      %v459 = vadd.f32 %v457, 1e-05
      %v460 = vadd.f32 %v458, 1e-05
      %v461 = vrsqrt.pop %v459
      %v462 = vmul.f32 %v461, %v459
      %v463 = vmul.f32 %v462, %v461
      %v464 = vmul.f32 0.5, %v463
      %v465 = vsub.f32 1.5, %v464
      %v466 = vmul.f32 %v461, %v465
      %vm467 = vweird.f32 %v459
      %vm468 = vweird.f32 %v461
      %vm469 = vmor %vm467, %vm468
      %v470 = vsel %vm469, %v461, %v466
      %v471 = vrsqrt.pop %v460
      %v472 = vmul.f32 %v471, %v460
      %v473 = vmul.f32 %v472, %v471
      %v474 = vmul.f32 0.5, %v473
      %v475 = vsub.f32 1.5, %v474
      %v476 = vmul.f32 %v471, %v475
      %vm477 = vweird.f32 %v460
      %vm478 = vweird.f32 %v471
      %vm479 = vmor %vm477, %vm478
      %v480 = vsel %vm479, %v471, %v476
      %v481 = vmul.f32 %v407, %v470
      %v482 = vmul.f32 %v408, %v470
      %v483 = vmul.f32 %v409, %v470
      %v484 = vmul.f32 %v410, %v470
      %v485 = vmul.f32 %v411, %v470
      %v486 = vmul.f32 %v412, %v470
      %v487 = vmul.f32 %v413, %v470
      %v488 = vmul.f32 %v414, %v470
      %v489 = vmul.f32 %v415, %v480
      %v490 = vmul.f32 %v416, %v480
      %v491 = vmul.f32 %v417, %v480
      %v492 = vmul.f32 %v418, %v480
      %v493 = vmul.f32 %v419, %v480
      %v494 = vmul.f32 %v420, %v480
      %v495 = vmul.f32 %v421, %v480
      %v496 = vmul.f32 %v422, %v480
      %v497 = vmax.f32 %v481, 0.0
      %v498 = vmax.f32 %v482, 0.0
      %v499 = vmax.f32 %v483, 0.0
      %v500 = vmax.f32 %v484, 0.0
      %v501 = vmax.f32 %v485, 0.0
      %v502 = vmax.f32 %v486, 0.0
      %v503 = vmax.f32 %v487, 0.0
      %v504 = vmax.f32 %v488, 0.0
      %v505 = vmax.f32 %v489, 0.0
      %v506 = vmax.f32 %v490, 0.0
      %v507 = vmax.f32 %v491, 0.0
      %v508 = vmax.f32 %v492, 0.0
      %v509 = vmax.f32 %v493, 0.0
      %v510 = vmax.f32 %v494, 0.0
      %v511 = vmax.f32 %v495, 0.0
      %v512 = vmax.f32 %v496, 0.0
      %v513 = vld [vmem:[%s2] sm:$0xf]
      %v514 = vld [vmem:[%s2 + $0x4] sm:$0xf]
      %v515 = vld [vmem:[%s2 + $0x8] sm:$0xf]
      %v516 = vld [vmem:[%s2 + $0xc] sm:$0xf]
      %v517 = vpack.c.bf16 %v505, %v497
      %v518 = vpack.c.bf16 %v506, %v498
      %v519 = vpack.c.bf16 %v507, %v499
      %v520 = vpack.c.bf16 %v508, %v500
      %v521 = vpack.c.bf16 %v509, %v501
      %v522 = vpack.c.bf16 %v510, %v502
      %v523 = vpack.c.bf16 %v511, %v503
      %v524 = vpack.c.bf16 %v512, %v504
      %v529 = vunpack.c.l.b16 %v513
      %v530 = vunpack.c.l.b16 %v514
      %v531 = vunpack.c.l.b16 %v515
      %v532 = vunpack.c.l.b16 %v516
      %v533 = vpack.c.b16 %v530, %v529
      %v534 = vpack.c.b16 %v532, %v531
      %vm535 = vcmask 130048
      %v537 = vsel %vm535, %v533, 0
      %v540 = vsel %vm535, %v534, 0
      %542 = vmatpush.bf16.msra.mxu0 0
      %543 = vmatpush.bf16.msra.mxu0 0
      %544 = vmatpush.bf16.msra.mxu0 0
      %545 = vmatpush.bf16.msra.mxu0 0
      %546 = vmatpush.bf16.msra.mxu0 0
      %547 = vmatpush.bf16.msra.mxu0 0
      %548 = vmatpush.bf16.msra.mxu0 0
      %549 = vmatpush.bf16.msra.mxu0 %v517
      %550 = vmatmul.bf16.gmra.mxu0 %v537
      %v551 = vpop.f32.mrf.mxu0
      %v552 = vadd.f32 0.0, %v551
      %v553 = vpop.f32.mrf.mxu0
      %v554 = vadd.f32 0.0, %v553
      %555 = vmatmul.bf16.gmra.mxu0 %v540
      %v556 = vpop.f32.mrf.mxu0
      %v557 = vadd.f32 0.0, %v556
      %v558 = vpop.f32.mrf.mxu0
      %v559 = vadd.f32 0.0, %v558
      %560 = vdwg.mxu0
      %561 = vmatpush.bf16.msra.mxu0 0
      %562 = vmatpush.bf16.msra.mxu0 0
      %563 = vmatpush.bf16.msra.mxu0 0
      %564 = vmatpush.bf16.msra.mxu0 0
      %565 = vmatpush.bf16.msra.mxu0 0
      %566 = vmatpush.bf16.msra.mxu0 0
      %567 = vmatpush.bf16.msra.mxu0 0
      %568 = vmatpush.bf16.msra.mxu0 %v518
      %569 = vmatmul.bf16.gmra.mxu0 %v537
      %v570 = vpop.f32.mrf.mxu0
      %v571 = vadd.f32 0.0, %v570
      %v572 = vpop.f32.mrf.mxu0
      %v573 = vadd.f32 0.0, %v572
      %574 = vmatmul.bf16.gmra.mxu0 %v540
      %v575 = vpop.f32.mrf.mxu0
      %v576 = vadd.f32 0.0, %v575
      %v577 = vpop.f32.mrf.mxu0
      %v578 = vadd.f32 0.0, %v577
      %579 = vdwg.mxu0
      %580 = vmatpush.bf16.msra.mxu0 0
      %581 = vmatpush.bf16.msra.mxu0 0
      %582 = vmatpush.bf16.msra.mxu0 0
      %583 = vmatpush.bf16.msra.mxu0 0
      %584 = vmatpush.bf16.msra.mxu0 0
      %585 = vmatpush.bf16.msra.mxu0 0
      %586 = vmatpush.bf16.msra.mxu0 0
      %587 = vmatpush.bf16.msra.mxu0 %v519
      %588 = vmatmul.bf16.gmra.mxu0 %v537
      %v589 = vpop.f32.mrf.mxu0
      %v590 = vadd.f32 0.0, %v589
      %v591 = vpop.f32.mrf.mxu0
      %v592 = vadd.f32 0.0, %v591
      %593 = vmatmul.bf16.gmra.mxu0 %v540
      %v594 = vpop.f32.mrf.mxu0
      %v595 = vadd.f32 0.0, %v594
      %v596 = vpop.f32.mrf.mxu0
      %v597 = vadd.f32 0.0, %v596
      %598 = vdwg.mxu0
      %599 = vmatpush.bf16.msra.mxu0 0
      %600 = vmatpush.bf16.msra.mxu0 0
      %601 = vmatpush.bf16.msra.mxu0 0
      %602 = vmatpush.bf16.msra.mxu0 0
      %603 = vmatpush.bf16.msra.mxu0 0
      %604 = vmatpush.bf16.msra.mxu0 0
      %605 = vmatpush.bf16.msra.mxu0 0
      %606 = vmatpush.bf16.msra.mxu0 %v520
      %607 = vmatmul.bf16.gmra.mxu0 %v537
      %v608 = vpop.f32.mrf.mxu0
      %v609 = vadd.f32 0.0, %v608
      %v610 = vpop.f32.mrf.mxu0
      %v611 = vadd.f32 0.0, %v610
      %612 = vmatmul.bf16.gmra.mxu0 %v540
      %v613 = vpop.f32.mrf.mxu0
      %v614 = vadd.f32 0.0, %v613
      %v615 = vpop.f32.mrf.mxu0
      %v616 = vadd.f32 0.0, %v615
      %617 = vdwg.mxu0
      %618 = vmatpush.bf16.msra.mxu0 0
      %619 = vmatpush.bf16.msra.mxu0 0
      %620 = vmatpush.bf16.msra.mxu0 0
      %621 = vmatpush.bf16.msra.mxu0 0
      %622 = vmatpush.bf16.msra.mxu0 0
      %623 = vmatpush.bf16.msra.mxu0 0
      %624 = vmatpush.bf16.msra.mxu0 0
      %625 = vmatpush.bf16.msra.mxu0 %v521
      %626 = vmatmul.bf16.gmra.mxu0 %v537
      %v627 = vpop.f32.mrf.mxu0
      %v628 = vadd.f32 0.0, %v627
      %v629 = vpop.f32.mrf.mxu0
      %v630 = vadd.f32 0.0, %v629
      %631 = vmatmul.bf16.gmra.mxu0 %v540
      %v632 = vpop.f32.mrf.mxu0
      %v633 = vadd.f32 0.0, %v632
      %v634 = vpop.f32.mrf.mxu0
      %v635 = vadd.f32 0.0, %v634
      %636 = vdwg.mxu0
      %637 = vmatpush.bf16.msra.mxu0 0
      %638 = vmatpush.bf16.msra.mxu0 0
      %639 = vmatpush.bf16.msra.mxu0 0
      %640 = vmatpush.bf16.msra.mxu0 0
      %641 = vmatpush.bf16.msra.mxu0 0
      %642 = vmatpush.bf16.msra.mxu0 0
      %643 = vmatpush.bf16.msra.mxu0 0
      %644 = vmatpush.bf16.msra.mxu0 %v522
      %645 = vmatmul.bf16.gmra.mxu0 %v537
      %v646 = vpop.f32.mrf.mxu0
      %v647 = vadd.f32 0.0, %v646
      %v648 = vpop.f32.mrf.mxu0
      %v649 = vadd.f32 0.0, %v648
      %650 = vmatmul.bf16.gmra.mxu0 %v540
      %v651 = vpop.f32.mrf.mxu0
      %v652 = vadd.f32 0.0, %v651
      %v653 = vpop.f32.mrf.mxu0
      %v654 = vadd.f32 0.0, %v653
      %655 = vdwg.mxu0
      %656 = vmatpush.bf16.msra.mxu0 0
      %657 = vmatpush.bf16.msra.mxu0 0
      %658 = vmatpush.bf16.msra.mxu0 0
      %659 = vmatpush.bf16.msra.mxu0 0
      %660 = vmatpush.bf16.msra.mxu0 0
      %661 = vmatpush.bf16.msra.mxu0 0
      %662 = vmatpush.bf16.msra.mxu0 0
      %663 = vmatpush.bf16.msra.mxu0 %v523
      %664 = vmatmul.bf16.gmra.mxu0 %v537
      %v665 = vpop.f32.mrf.mxu0
      %v666 = vadd.f32 0.0, %v665
      %v667 = vpop.f32.mrf.mxu0
      %v668 = vadd.f32 0.0, %v667
      %669 = vmatmul.bf16.gmra.mxu0 %v540
      %v670 = vpop.f32.mrf.mxu0
      %v671 = vadd.f32 0.0, %v670
      %v672 = vpop.f32.mrf.mxu0
      %v673 = vadd.f32 0.0, %v672
      %674 = vdwg.mxu0
      %675 = vmatpush.bf16.msra.mxu0 0
      %676 = vmatpush.bf16.msra.mxu0 0
      %677 = vmatpush.bf16.msra.mxu0 0
      %678 = vmatpush.bf16.msra.mxu0 0
      %679 = vmatpush.bf16.msra.mxu0 0
      %680 = vmatpush.bf16.msra.mxu0 0
      %681 = vmatpush.bf16.msra.mxu0 0
      %682 = vmatpush.bf16.msra.mxu0 %v524
      %683 = vmatmul.bf16.gmra.mxu0 %v537
      %v684 = vpop.f32.mrf.mxu0
      %v685 = vadd.f32 0.0, %v684
      %v686 = vpop.f32.mrf.mxu0
      %v687 = vadd.f32 0.0, %v686
      %688 = vmatmul.bf16.gmra.mxu0 %v540
      %v689 = vpop.f32.mrf.mxu0
      %v690 = vadd.f32 0.0, %v689
      %v691 = vpop.f32.mrf.mxu0
      %v692 = vadd.f32 0.0, %v691
      %693 = vdwg.mxu0
      %v694 = vadd.f32 %v552, %v571
      %v695 = vadd.f32 %v694, %v590
      %v696 = vadd.f32 %v695, %v609
      %v697 = vadd.f32 %v696, %v628
      %v698 = vadd.f32 %v697, %v647
      %v699 = vadd.f32 %v698, %v666
      %v700 = vadd.f32 %v699, %v685
      %701 = vadd.xlane.f32.xlu0 %v700
      %v702 = vpop.xlane.xlu0 %701
      %v703 = vadd.f32 %v554, %v573
      %v704 = vadd.f32 %v703, %v592
      %v705 = vadd.f32 %v704, %v611
      %v706 = vadd.f32 %v705, %v630
      %v707 = vadd.f32 %v706, %v649
      %v708 = vadd.f32 %v707, %v668
      %v709 = vadd.f32 %v708, %v687
      %710 = vadd.xlane.f32.xlu0 %v709
      %v711 = vpop.xlane.xlu0 %710
      %v712 = vadd.f32 %v557, %v576
      %v713 = vadd.f32 %v712, %v595
      %v714 = vadd.f32 %v713, %v614
      %v715 = vadd.f32 %v714, %v633
      %v716 = vadd.f32 %v715, %v652
      %v717 = vadd.f32 %v716, %v671
      %v718 = vadd.f32 %v717, %v690
      %719 = vadd.xlane.f32.xlu0 %v718
      %v720 = vpop.xlane.xlu0 %719
      %v721 = vadd.f32 %v559, %v578
      %v722 = vadd.f32 %v721, %v597
      %v723 = vadd.f32 %v722, %v616
      %v724 = vadd.f32 %v723, %v635
      %v725 = vadd.f32 %v724, %v654
      %v726 = vadd.f32 %v725, %v673
      %v727 = vadd.f32 %v726, %v692
      %728 = vadd.xlane.f32.xlu0 %v727
      %v729 = vpop.xlane.xlu0 %728
      %v730 = vmul.f32 %v702, 0.0009765625
      %v731 = vmul.f32 %v711, 0.0009765625
      %v732 = vmul.f32 %v720, 0.0009765625
      %v733 = vmul.f32 %v729, 0.0009765625
      %v734 = vsub.f32 %v552, %v730
      %v735 = vsub.f32 %v571, %v730
      %v736 = vsub.f32 %v590, %v730
      %v737 = vsub.f32 %v609, %v730
      %v738 = vsub.f32 %v628, %v730
      %v739 = vsub.f32 %v647, %v730
      %v740 = vsub.f32 %v666, %v730
      %v741 = vsub.f32 %v685, %v730
      %v742 = vsub.f32 %v554, %v731
      %v743 = vsub.f32 %v573, %v731
      %v744 = vsub.f32 %v592, %v731
      %v745 = vsub.f32 %v611, %v731
      %v746 = vsub.f32 %v630, %v731
      %v747 = vsub.f32 %v649, %v731
      %v748 = vsub.f32 %v668, %v731
      %v749 = vsub.f32 %v687, %v731
      %v750 = vsub.f32 %v557, %v732
      %v751 = vsub.f32 %v576, %v732
      %v752 = vsub.f32 %v595, %v732
      %v753 = vsub.f32 %v614, %v732
      %v754 = vsub.f32 %v633, %v732
      %v755 = vsub.f32 %v652, %v732
      %v756 = vsub.f32 %v671, %v732
      %v757 = vsub.f32 %v690, %v732
      %v758 = vsub.f32 %v559, %v733
      %v759 = vsub.f32 %v578, %v733
      %v760 = vsub.f32 %v597, %v733
      %v761 = vsub.f32 %v616, %v733
      %v762 = vsub.f32 %v635, %v733
      %v763 = vsub.f32 %v654, %v733
      %v764 = vsub.f32 %v673, %v733
      %v765 = vsub.f32 %v692, %v733
      %v766 = vmul.f32 %v734, %v734
      %v767 = vmul.f32 %v735, %v735
      %v768 = vmul.f32 %v736, %v736
      %v769 = vmul.f32 %v737, %v737
      %v770 = vmul.f32 %v738, %v738
      %v771 = vmul.f32 %v739, %v739
      %v772 = vmul.f32 %v740, %v740
      %v773 = vmul.f32 %v741, %v741
      %v774 = vmul.f32 %v742, %v742
      %v775 = vmul.f32 %v743, %v743
      %v776 = vmul.f32 %v744, %v744
      %v777 = vmul.f32 %v745, %v745
      %v778 = vmul.f32 %v746, %v746
      %v779 = vmul.f32 %v747, %v747
      %v780 = vmul.f32 %v748, %v748
      %v781 = vmul.f32 %v749, %v749
      %v782 = vmul.f32 %v750, %v750
      %v783 = vmul.f32 %v751, %v751
      %v784 = vmul.f32 %v752, %v752
      %v785 = vmul.f32 %v753, %v753
      %v786 = vmul.f32 %v754, %v754
      %v787 = vmul.f32 %v755, %v755
      %v788 = vmul.f32 %v756, %v756
      %v789 = vmul.f32 %v757, %v757
      %v790 = vmul.f32 %v758, %v758
      %v791 = vmul.f32 %v759, %v759
      %v792 = vmul.f32 %v760, %v760
      %v793 = vmul.f32 %v761, %v761
      %v794 = vmul.f32 %v762, %v762
      %v795 = vmul.f32 %v763, %v763
      %v796 = vmul.f32 %v764, %v764
      %v797 = vmul.f32 %v765, %v765
      %v798 = vadd.f32 %v766, %v767
      %v799 = vadd.f32 %v798, %v768
      %v800 = vadd.f32 %v799, %v769
      %v801 = vadd.f32 %v800, %v770
      %v802 = vadd.f32 %v801, %v771
      %v803 = vadd.f32 %v802, %v772
      %v804 = vadd.f32 %v803, %v773
      %805 = vadd.xlane.f32.xlu0 %v804
      %v806 = vpop.xlane.xlu0 %805
      %v807 = vadd.f32 %v774, %v775
      %v808 = vadd.f32 %v807, %v776
      %v809 = vadd.f32 %v808, %v777
      %v810 = vadd.f32 %v809, %v778
      %v811 = vadd.f32 %v810, %v779
      %v812 = vadd.f32 %v811, %v780
      %v813 = vadd.f32 %v812, %v781
      %814 = vadd.xlane.f32.xlu0 %v813
      %v815 = vpop.xlane.xlu0 %814
      %v816 = vadd.f32 %v782, %v783
      %v817 = vadd.f32 %v816, %v784
      %v818 = vadd.f32 %v817, %v785
      %v819 = vadd.f32 %v818, %v786
      %v820 = vadd.f32 %v819, %v787
      %v821 = vadd.f32 %v820, %v788
      %v822 = vadd.f32 %v821, %v789
      %823 = vadd.xlane.f32.xlu0 %v822
      %v824 = vpop.xlane.xlu0 %823
      %v825 = vadd.f32 %v790, %v791
      %v826 = vadd.f32 %v825, %v792
      %v827 = vadd.f32 %v826, %v793
      %v828 = vadd.f32 %v827, %v794
      %v829 = vadd.f32 %v828, %v795
      %v830 = vadd.f32 %v829, %v796
      %v831 = vadd.f32 %v830, %v797
      %832 = vadd.xlane.f32.xlu0 %v831
      %v833 = vpop.xlane.xlu0 %832
      %v834 = vmul.f32 %v806, 0.0009765625
      %v835 = vmul.f32 %v815, 0.0009765625
      %v836 = vmul.f32 %v824, 0.0009765625
      %v837 = vmul.f32 %v833, 0.0009765625
      %v838 = vadd.f32 %v834, 1e-05
      %v839 = vadd.f32 %v835, 1e-05
      %v840 = vadd.f32 %v836, 1e-05
      %v841 = vadd.f32 %v837, 1e-05
      %v842 = vrsqrt.pop %v838
      %v843 = vmul.f32 %v842, %v838
      %v844 = vmul.f32 %v843, %v842
      %v845 = vmul.f32 0.5, %v844
      %v846 = vsub.f32 1.5, %v845
      %v847 = vmul.f32 %v842, %v846
      %vm848 = vweird.f32 %v838
      %vm849 = vweird.f32 %v842
      %vm850 = vmor %vm848, %vm849
      %v851 = vsel %vm850, %v842, %v847
      %v852 = vrsqrt.pop %v839
      %v853 = vmul.f32 %v852, %v839
      %v854 = vmul.f32 %v853, %v852
      %v855 = vmul.f32 0.5, %v854
      %v856 = vsub.f32 1.5, %v855
      %v857 = vmul.f32 %v852, %v856
      %vm858 = vweird.f32 %v839
      %vm859 = vweird.f32 %v852
      %vm860 = vmor %vm858, %vm859
      %v861 = vsel %vm860, %v852, %v857
      %v862 = vrsqrt.pop %v840
      %v863 = vmul.f32 %v862, %v840
      %v864 = vmul.f32 %v863, %v862
      %v865 = vmul.f32 0.5, %v864
      %v866 = vsub.f32 1.5, %v865
      %v867 = vmul.f32 %v862, %v866
      %vm868 = vweird.f32 %v840
      %vm869 = vweird.f32 %v862
      %vm870 = vmor %vm868, %vm869
      %v871 = vsel %vm870, %v862, %v867
      %v872 = vrsqrt.pop %v841
      %v873 = vmul.f32 %v872, %v841
      %v874 = vmul.f32 %v873, %v872
      %v875 = vmul.f32 0.5, %v874
      %v876 = vsub.f32 1.5, %v875
      %v877 = vmul.f32 %v872, %v876
      %vm878 = vweird.f32 %v841
      %vm879 = vweird.f32 %v872
      %vm880 = vmor %vm878, %vm879
      %v881 = vsel %vm880, %v872, %v877
      %v882 = vmul.f32 %v734, %v851
      %v883 = vmul.f32 %v735, %v851
      %v884 = vmul.f32 %v736, %v851
      %v885 = vmul.f32 %v737, %v851
      %v886 = vmul.f32 %v738, %v851
      %v887 = vmul.f32 %v739, %v851
      %v888 = vmul.f32 %v740, %v851
      %v889 = vmul.f32 %v741, %v851
      %v890 = vmul.f32 %v742, %v861
      %v891 = vmul.f32 %v743, %v861
      %v892 = vmul.f32 %v744, %v861
      %v893 = vmul.f32 %v745, %v861
      %v894 = vmul.f32 %v746, %v861
      %v895 = vmul.f32 %v747, %v861
      %v896 = vmul.f32 %v748, %v861
      %v897 = vmul.f32 %v749, %v861
      %v898 = vmul.f32 %v750, %v871
      %v899 = vmul.f32 %v751, %v871
      %v900 = vmul.f32 %v752, %v871
      %v901 = vmul.f32 %v753, %v871
      %v902 = vmul.f32 %v754, %v871
      %v903 = vmul.f32 %v755, %v871
      %v904 = vmul.f32 %v756, %v871
      %v905 = vmul.f32 %v757, %v871
      %v906 = vmul.f32 %v758, %v881
      %v907 = vmul.f32 %v759, %v881
      %v908 = vmul.f32 %v760, %v881
      %v909 = vmul.f32 %v761, %v881
      %v910 = vmul.f32 %v762, %v881
      %v911 = vmul.f32 %v763, %v881
      %v912 = vmul.f32 %v764, %v881
      %v913 = vmul.f32 %v765, %v881
      %v914 = vmax.f32 %v882, 0.0
      %v915 = vmax.f32 %v883, 0.0
      %v916 = vmax.f32 %v884, 0.0
      %v917 = vmax.f32 %v885, 0.0
      %v918 = vmax.f32 %v886, 0.0
      %v919 = vmax.f32 %v887, 0.0
      %v920 = vmax.f32 %v888, 0.0
      %v921 = vmax.f32 %v889, 0.0
      %v922 = vmax.f32 %v890, 0.0
      %v923 = vmax.f32 %v891, 0.0
      %v924 = vmax.f32 %v892, 0.0
      %v925 = vmax.f32 %v893, 0.0
      %v926 = vmax.f32 %v894, 0.0
      %v927 = vmax.f32 %v895, 0.0
      %v928 = vmax.f32 %v896, 0.0
      %v929 = vmax.f32 %v897, 0.0
      %v930 = vmax.f32 %v898, 0.0
      %v931 = vmax.f32 %v899, 0.0
      %v932 = vmax.f32 %v900, 0.0
      %v933 = vmax.f32 %v901, 0.0
      %v934 = vmax.f32 %v902, 0.0
      %v935 = vmax.f32 %v903, 0.0
      %v936 = vmax.f32 %v904, 0.0
      %v937 = vmax.f32 %v905, 0.0
      %v938 = vmax.f32 %v906, 0.0
      %v939 = vmax.f32 %v907, 0.0
      %v940 = vmax.f32 %v908, 0.0
      %v941 = vmax.f32 %v909, 0.0
      %v942 = vmax.f32 %v910, 0.0
      %v943 = vmax.f32 %v911, 0.0
      %v944 = vmax.f32 %v912, 0.0
      %v945 = vmax.f32 %v913, 0.0
      %v946 = vld [vmem:[%s3] sm:$0xf]
      %v947 = vld [vmem:[%s3 + $0x4] sm:$0xf]
      %v948 = vpack.c.bf16 %v922, %v914
      %v949 = vpack.c.bf16 %v923, %v915
      %v950 = vpack.c.bf16 %v924, %v916
      %v951 = vpack.c.bf16 %v925, %v917
      %v952 = vpack.c.bf16 %v926, %v918
      %v953 = vpack.c.bf16 %v927, %v919
      %v954 = vpack.c.bf16 %v928, %v920
      %v955 = vpack.c.bf16 %v929, %v921
      %v956 = vpack.c.bf16 %v938, %v930
      %v957 = vpack.c.bf16 %v939, %v931
      %v958 = vpack.c.bf16 %v940, %v932
      %v959 = vpack.c.bf16 %v941, %v933
      %v960 = vpack.c.bf16 %v942, %v934
      %v961 = vpack.c.bf16 %v943, %v935
      %v962 = vpack.c.bf16 %v944, %v936
      %v963 = vpack.c.bf16 %v945, %v937
      %v966 = vunpack.c.l.b16 %v946
      %v967 = vunpack.c.l.b16 %v947
      %v968 = vpack.c.b16 %v967, %v966
      %vm969 = vcmask 261120
      %v971 = vsel %vm969, %v968, 0
      %973 = vmatpush.bf16.msra.mxu0 0
      %974 = vmatpush.bf16.msra.mxu0 0
      %975 = vmatpush.bf16.msra.mxu0 0
      %976 = vmatpush.bf16.msra.mxu0 0
      %977 = vmatpush.bf16.msra.mxu0 0
      %978 = vmatpush.bf16.msra.mxu0 0
      %979 = vmatpush.bf16.msra.mxu0 %v956
      %980 = vmatpush.bf16.msra.mxu0 %v948
      %981 = vmatmul.bf16.gmra.mxu0 %v971
      %v982 = vpop.f32.mrf.mxu0
      %v983 = vadd.f32 0.0, %v982
      %v984 = vpop.f32.mrf.mxu0
      %v985 = vadd.f32 0.0, %v984
      %986 = vdwg.mxu0
      %987 = vmatpush.bf16.msra.mxu0 0
      %988 = vmatpush.bf16.msra.mxu0 0
      %989 = vmatpush.bf16.msra.mxu0 0
      %990 = vmatpush.bf16.msra.mxu0 0
      %991 = vmatpush.bf16.msra.mxu0 0
      %992 = vmatpush.bf16.msra.mxu0 0
      %993 = vmatpush.bf16.msra.mxu0 %v957
      %994 = vmatpush.bf16.msra.mxu0 %v949
      %995 = vmatmul.bf16.gmra.mxu0 %v971
      %v996 = vpop.f32.mrf.mxu0
      %v997 = vadd.f32 0.0, %v996
      %v998 = vpop.f32.mrf.mxu0
      %v999 = vadd.f32 0.0, %v998
      %1000 = vdwg.mxu0
      %1001 = vmatpush.bf16.msra.mxu0 0
      %1002 = vmatpush.bf16.msra.mxu0 0
      %1003 = vmatpush.bf16.msra.mxu0 0
      %1004 = vmatpush.bf16.msra.mxu0 0
      %1005 = vmatpush.bf16.msra.mxu0 0
      %1006 = vmatpush.bf16.msra.mxu0 0
      %1007 = vmatpush.bf16.msra.mxu0 %v958
      %1008 = vmatpush.bf16.msra.mxu0 %v950
      %1009 = vmatmul.bf16.gmra.mxu0 %v971
      %v1010 = vpop.f32.mrf.mxu0
      %v1011 = vadd.f32 0.0, %v1010
      %v1012 = vpop.f32.mrf.mxu0
      %v1013 = vadd.f32 0.0, %v1012
      %1014 = vdwg.mxu0
      %1015 = vmatpush.bf16.msra.mxu0 0
      %1016 = vmatpush.bf16.msra.mxu0 0
      %1017 = vmatpush.bf16.msra.mxu0 0
      %1018 = vmatpush.bf16.msra.mxu0 0
      %1019 = vmatpush.bf16.msra.mxu0 0
      %1020 = vmatpush.bf16.msra.mxu0 0
      %1021 = vmatpush.bf16.msra.mxu0 %v959
      %1022 = vmatpush.bf16.msra.mxu0 %v951
      %1023 = vmatmul.bf16.gmra.mxu0 %v971
      %v1024 = vpop.f32.mrf.mxu0
      %v1025 = vadd.f32 0.0, %v1024
      %v1026 = vpop.f32.mrf.mxu0
      %v1027 = vadd.f32 0.0, %v1026
      %1028 = vdwg.mxu0
      %1029 = vmatpush.bf16.msra.mxu0 0
      %1030 = vmatpush.bf16.msra.mxu0 0
      %1031 = vmatpush.bf16.msra.mxu0 0
      %1032 = vmatpush.bf16.msra.mxu0 0
      %1033 = vmatpush.bf16.msra.mxu0 0
      %1034 = vmatpush.bf16.msra.mxu0 0
      %1035 = vmatpush.bf16.msra.mxu0 %v960
      %1036 = vmatpush.bf16.msra.mxu0 %v952
      %1037 = vmatmul.bf16.gmra.mxu0 %v971
      %v1038 = vpop.f32.mrf.mxu0
      %v1039 = vadd.f32 0.0, %v1038
      %v1040 = vpop.f32.mrf.mxu0
      %v1041 = vadd.f32 0.0, %v1040
      %1042 = vdwg.mxu0
      %1043 = vmatpush.bf16.msra.mxu0 0
      %1044 = vmatpush.bf16.msra.mxu0 0
      %1045 = vmatpush.bf16.msra.mxu0 0
      %1046 = vmatpush.bf16.msra.mxu0 0
      %1047 = vmatpush.bf16.msra.mxu0 0
      %1048 = vmatpush.bf16.msra.mxu0 0
      %1049 = vmatpush.bf16.msra.mxu0 %v961
      %1050 = vmatpush.bf16.msra.mxu0 %v953
      %1051 = vmatmul.bf16.gmra.mxu0 %v971
      %v1052 = vpop.f32.mrf.mxu0
      %v1053 = vadd.f32 0.0, %v1052
      %v1054 = vpop.f32.mrf.mxu0
      %v1055 = vadd.f32 0.0, %v1054
      %1056 = vdwg.mxu0
      %1057 = vmatpush.bf16.msra.mxu0 0
      %1058 = vmatpush.bf16.msra.mxu0 0
      %1059 = vmatpush.bf16.msra.mxu0 0
      %1060 = vmatpush.bf16.msra.mxu0 0
      %1061 = vmatpush.bf16.msra.mxu0 0
      %1062 = vmatpush.bf16.msra.mxu0 0
      %1063 = vmatpush.bf16.msra.mxu0 %v962
      %1064 = vmatpush.bf16.msra.mxu0 %v954
      %1065 = vmatmul.bf16.gmra.mxu0 %v971
      %v1066 = vpop.f32.mrf.mxu0
      %v1067 = vadd.f32 0.0, %v1066
      %v1068 = vpop.f32.mrf.mxu0
      %v1069 = vadd.f32 0.0, %v1068
      %1070 = vdwg.mxu0
      %1071 = vmatpush.bf16.msra.mxu0 0
      %1072 = vmatpush.bf16.msra.mxu0 0
      %1073 = vmatpush.bf16.msra.mxu0 0
      %1074 = vmatpush.bf16.msra.mxu0 0
      %1075 = vmatpush.bf16.msra.mxu0 0
      %1076 = vmatpush.bf16.msra.mxu0 0
      %1077 = vmatpush.bf16.msra.mxu0 %v963
      %1078 = vmatpush.bf16.msra.mxu0 %v955
      %1079 = vmatmul.bf16.gmra.mxu0 %v971
      %v1080 = vpop.f32.mrf.mxu0
      %v1081 = vadd.f32 0.0, %v1080
      %v1082 = vpop.f32.mrf.mxu0
      %v1083 = vadd.f32 0.0, %v1082
      %1084 = vdwg.mxu0
      %v1085 = vadd.f32 %v983, %v997
      %v1086 = vadd.f32 %v1085, %v1011
      %v1087 = vadd.f32 %v1086, %v1025
      %v1088 = vadd.f32 %v1087, %v1039
      %v1089 = vadd.f32 %v1088, %v1053
      %v1090 = vadd.f32 %v1089, %v1067
      %v1091 = vadd.f32 %v1090, %v1081
      %1092 = vadd.xlane.f32.xlu0 %v1091
      %v1093 = vpop.xlane.xlu0 %1092
      %v1094 = vadd.f32 %v985, %v999
      %v1095 = vadd.f32 %v1094, %v1013
      %v1096 = vadd.f32 %v1095, %v1027
      %v1097 = vadd.f32 %v1096, %v1041
      %v1098 = vadd.f32 %v1097, %v1055
      %v1099 = vadd.f32 %v1098, %v1069
      %v1100 = vadd.f32 %v1099, %v1083
      %1101 = vadd.xlane.f32.xlu0 %v1100
      %v1102 = vpop.xlane.xlu0 %1101
      %v1103 = vmul.f32 %v1093, 0.0009765625
      %v1104 = vmul.f32 %v1102, 0.0009765625
      %v1105 = vsub.f32 %v983, %v1103
      %v1106 = vsub.f32 %v997, %v1103
      %v1107 = vsub.f32 %v1011, %v1103
      %v1108 = vsub.f32 %v1025, %v1103
      %v1109 = vsub.f32 %v1039, %v1103
      %v1110 = vsub.f32 %v1053, %v1103
      %v1111 = vsub.f32 %v1067, %v1103
      %v1112 = vsub.f32 %v1081, %v1103
      %v1113 = vsub.f32 %v985, %v1104
      %v1114 = vsub.f32 %v999, %v1104
      %v1115 = vsub.f32 %v1013, %v1104
      %v1116 = vsub.f32 %v1027, %v1104
      %v1117 = vsub.f32 %v1041, %v1104
      %v1118 = vsub.f32 %v1055, %v1104
      %v1119 = vsub.f32 %v1069, %v1104
      %v1120 = vsub.f32 %v1083, %v1104
      %v1121 = vmul.f32 %v1105, %v1105
      %v1122 = vmul.f32 %v1106, %v1106
      %v1123 = vmul.f32 %v1107, %v1107
      %v1124 = vmul.f32 %v1108, %v1108
      %v1125 = vmul.f32 %v1109, %v1109
      %v1126 = vmul.f32 %v1110, %v1110
      %v1127 = vmul.f32 %v1111, %v1111
      %v1128 = vmul.f32 %v1112, %v1112
      %v1129 = vmul.f32 %v1113, %v1113
      %v1130 = vmul.f32 %v1114, %v1114
      %v1131 = vmul.f32 %v1115, %v1115
      %v1132 = vmul.f32 %v1116, %v1116
      %v1133 = vmul.f32 %v1117, %v1117
      %v1134 = vmul.f32 %v1118, %v1118
      %v1135 = vmul.f32 %v1119, %v1119
      %v1136 = vmul.f32 %v1120, %v1120
      %v1137 = vadd.f32 %v1121, %v1122
      %v1138 = vadd.f32 %v1137, %v1123
      %v1139 = vadd.f32 %v1138, %v1124
      %v1140 = vadd.f32 %v1139, %v1125
      %v1141 = vadd.f32 %v1140, %v1126
      %v1142 = vadd.f32 %v1141, %v1127
      %v1143 = vadd.f32 %v1142, %v1128
      %1144 = vadd.xlane.f32.xlu0 %v1143
      %v1145 = vpop.xlane.xlu0 %1144
      %v1146 = vadd.f32 %v1129, %v1130
      %v1147 = vadd.f32 %v1146, %v1131
      %v1148 = vadd.f32 %v1147, %v1132
      %v1149 = vadd.f32 %v1148, %v1133
      %v1150 = vadd.f32 %v1149, %v1134
      %v1151 = vadd.f32 %v1150, %v1135
      %v1152 = vadd.f32 %v1151, %v1136
      %1153 = vadd.xlane.f32.xlu0 %v1152
      %v1154 = vpop.xlane.xlu0 %1153
      %v1155 = vmul.f32 %v1145, 0.0009765625
      %v1156 = vmul.f32 %v1154, 0.0009765625
      %v1157 = vadd.f32 %v1155, 1e-05
      %v1158 = vadd.f32 %v1156, 1e-05
      %v1159 = vrsqrt.pop %v1157
      %v1160 = vmul.f32 %v1159, %v1157
      %v1161 = vmul.f32 %v1160, %v1159
      %v1162 = vmul.f32 0.5, %v1161
      %v1163 = vsub.f32 1.5, %v1162
      %v1164 = vmul.f32 %v1159, %v1163
      %vm1165 = vweird.f32 %v1157
      %vm1166 = vweird.f32 %v1159
      %vm1167 = vmor %vm1165, %vm1166
      %v1168 = vsel %vm1167, %v1159, %v1164
      %v1169 = vrsqrt.pop %v1158
      %v1170 = vmul.f32 %v1169, %v1158
      %v1171 = vmul.f32 %v1170, %v1169
      %v1172 = vmul.f32 0.5, %v1171
      %v1173 = vsub.f32 1.5, %v1172
      %v1174 = vmul.f32 %v1169, %v1173
      %vm1175 = vweird.f32 %v1158
      %vm1176 = vweird.f32 %v1169
      %vm1177 = vmor %vm1175, %vm1176
      %v1178 = vsel %vm1177, %v1169, %v1174
      %v1179 = vmul.f32 %v1105, %v1168
      %v1180 = vmul.f32 %v1106, %v1168
      %v1181 = vmul.f32 %v1107, %v1168
      %v1182 = vmul.f32 %v1108, %v1168
      %v1183 = vmul.f32 %v1109, %v1168
      %v1184 = vmul.f32 %v1110, %v1168
      %v1185 = vmul.f32 %v1111, %v1168
      %v1186 = vmul.f32 %v1112, %v1168
      %v1187 = vmul.f32 %v1113, %v1178
      %v1188 = vmul.f32 %v1114, %v1178
      %v1189 = vmul.f32 %v1115, %v1178
      %v1190 = vmul.f32 %v1116, %v1178
      %v1191 = vmul.f32 %v1117, %v1178
      %v1192 = vmul.f32 %v1118, %v1178
      %v1193 = vmul.f32 %v1119, %v1178
      %v1194 = vmul.f32 %v1120, %v1178
      %v1195 = vmax.f32 %v1179, 0.0
      %v1196 = vmax.f32 %v1180, 0.0
      %v1197 = vmax.f32 %v1181, 0.0
      %v1198 = vmax.f32 %v1182, 0.0
      %v1199 = vmax.f32 %v1183, 0.0
      %v1200 = vmax.f32 %v1184, 0.0
      %v1201 = vmax.f32 %v1185, 0.0
      %v1202 = vmax.f32 %v1186, 0.0
      %v1203 = vmax.f32 %v1187, 0.0
      %v1204 = vmax.f32 %v1188, 0.0
      %v1205 = vmax.f32 %v1189, 0.0
      %v1206 = vmax.f32 %v1190, 0.0
      %v1207 = vmax.f32 %v1191, 0.0
      %v1208 = vmax.f32 %v1192, 0.0
      %v1209 = vmax.f32 %v1193, 0.0
      %v1210 = vmax.f32 %v1194, 0.0
      %v1211 = vmax.f32 %v1195, %v1196
      %v1212 = vmax.f32 %v1203, %v1204
      %v1213 = vmax.f32 %v1211, %v1197
      %v1214 = vmax.f32 %v1212, %v1205
      %v1215 = vmax.f32 %v1213, %v1198
      %v1216 = vmax.f32 %v1214, %v1206
      %v1217 = vmax.f32 %v1215, %v1199
      %v1218 = vmax.f32 %v1216, %v1207
      %v1219 = vmax.f32 %v1217, %v1200
      %v1220 = vmax.f32 %v1218, %v1208
      %v1221 = vmax.f32 %v1219, %v1201
      %v1222 = vmax.f32 %v1220, %v1209
      %v1223 = vmax.f32 %v1221, %v1202
      %v1224 = vmax.f32 %v1222, %v1210
      %v1225 = vpack.c.bf16 %v1223, %v1223
      %v1226 = vpack.c.bf16 %v1224, %v1224
      %1227 = vst [vmem:[%s197] sm:$0xf] %v1225
      %1228 = vst [vmem:[%s197 + $0x4] sm:$0xf] %v1226
      %p1229 = scmp.lt.s32.totalorder %s15, 1
      %s1230 = scalar_select %p1229, %s15, 1
      %s1231 = smul.addr %s1230, 2
      %s1232 = smul.addr %s1231, 4
      %s1233 = scalar_lea.vmem %s4, %s1232
      // Predicated region
      $region37: #{gge_forward.6} parent=35 // pred_check
        %p1234 = pneg %p122
      $region38: #{gge_forward.6} parent=35 // pred_check_branch
        %1236 = sbr.rel (%p1234) target = $region40
      $region39: #{gge_forward.6} parent=35 // pred_region
        _
      $region40: #{gge_forward.6} parent=35 // pred_fallthru
        _
    $region36: #{gge_forward.6} parent=5 // pred_fallthru
      _
    %p1237 = scmp.le.s32.totalorder 2, %s10
    // Predicated region
    $region41: #{gge_forward.6} parent=5 // pred_check
      %p1238 = pneg %p1237
    $region42: #{gge_forward.6} parent=5 // pred_check_branch
      %1240 = sbr.rel (%p1238) target = $region44
    $region43: #{gge_forward.6} parent=5 // pred_region
      %s1241 = ssub.s32 %s10, 2
      // Predicated region
      $region45: #{gge_forward.6} parent=43 // pred_check
        %p1242 = pneg %p128
      $region46: #{gge_forward.6} parent=43 // pred_check_branch
        %1244 = sbr.rel (%p1242) target = $region48
      $region47: #{gge_forward.6} parent=43 // pred_region
        %p1245 = scmp.lt.s32.totalorder %s16, 1
        %s1246 = scalar_select %p1245, %s16, 1
        %s1247 = smul.addr %s1246, 2
        %s1248 = smul.addr %s1247, 4
        %s1249 = scalar_lea.vmem %s4, %s1248
      $region48: #{gge_forward.6} parent=43 // pred_fallthru
        _
    $region44: #{gge_forward.6} parent=5 // pred_fallthru
      _
  $region6: #{gge_forward.6} parent=0 // loop_footer
    %s14 = sadd.s32 1, %s10
  $region7: #{gge_forward.6} parent=0 // loop_footer_branch
    %9 = sbr.rel target = $region3
  $region8: #{gge_forward.6} parent=0 // loop_exit
    _

// kernel: gge_forward.11
$region0: #{gge_forward.11}
  #allocation0 [shape = 'u32[]', space=smem, size = 0x4, offset = 0x4, fixed_abs, tag = 'smem constant byte address 0x4 - core index']
  #allocation1 [shape = 'u32[72,128]{1,0:T(1,128)}', space=vmem, size = 0x9000, scoped, tag = 'internal scratch']
  %s0 = inlined_call_operand.vmem [shape: bf16[2,48,128], index: 0, kind: input, shape index: {}]
  %s1 = inlined_call_operand.vmem [shape: bf16[32,48], index: 1, kind: input, shape index: {}]
  %s2 = inlined_call_operand.hbm [shape: f32[2,32,128], index: 2, kind: output, shape index: {}]
  %s3 = sld [smem:[#allocation0]]
  $region41: #{gge_forward.11} parent=0
    _
  %s5 = ssub.s32 1, %s3
  %s6 = scalar_select 0, %s5, %s3
  $region1: #{gge_forward.11} parent=0
    #allocation2 [shape = 'u8[32768]{0}', space=vmem, size = 0x8000, scoped, tag = 'output window, operand 0']
    #allocation3 [shape = 's32[2]{0}', space=sflag, size = 0x8, scoped, tag = 'scoped memory for gge_forward.11']
    %7 = vsyncpa [#allocation3], 0
    %s8 = scalar_lea.sflag [#allocation3], 1
    %9 = vsyncpa %s8, 0
    loop: start=0, step=1, limit=4
    $region2: #{gge_forward.11} parent=1 // loop_pre_header
      _
    $region3: #{gge_forward.11} parent=1 // loop_header
      %s11 = sphi 0, %s15
      %p12 = scmp.ge.s32.totalorder %s11, 4
      %s21 = sphi 0, %s23
      %s24 = sphi 0, %s21
      %s25 = sphi 0, %s24
      %s41 = sphi 0, %s25
      %s45 = sphi 0, %s45
      %s47 = sphi 0, %s45
      %s48 = sphi 0, %s47
      %s62 = sphi 0, %s48
      %s68 = sphi 0, %s70
      %s71 = sphi 0, %s68
      %s72 = sphi 0, %s71
      %s88 = sphi 0, %s72
    $region4: #{gge_forward.11} parent=1 // loop_header_branch
      %14 = sbr.rel (%p12) target = $region8
    $region5: #{gge_forward.11} parent=1 // loop_body
      %s16 = ssub.s32 %s11, 1
      %s17 = ssub.s32 %s11, 2
      %s18 = sadd.s32 %s11, 1
      %s19 = ssub.s32 %s11, %s18
      %p20 = scmp.eq.s32.totalorder %s19, 0
      %s22 = sadd.s32 %s21, 1
      %s23 = scalar_select %p20, %s21, %s22
      %p26 = pneg %p20
      %p27 = scmp.eq.s32.totalorder %s11, 1
      %p28 = por %p26, %p27
      %p29 = scmp.ne.s32.totalorder %s21, %s24
      %p30 = scmp.eq.s32.totalorder %s11, 0
      %p31 = por %p29, %p30
      %p32 = scmp.ne.s32.totalorder %s21, %s24
      %p33 = scmp.eq.s32.totalorder %s16, 1
      %p34 = por %p32, %p33
      %p35 = scmp.ne.s32.totalorder %s24, %s25
      %p36 = scmp.eq.s32.totalorder %s16, 0
      %p37 = por %p35, %p36
      %p38 = scmp.ne.s32.totalorder %s24, %s25
      %p39 = scmp.eq.s32.totalorder %s17, 1
      %p40 = por %p38, %p39
      %p42 = scmp.ne.s32.totalorder %s25, %s41
      %p43 = scmp.eq.s32.totalorder %s17, 0
      %p44 = por %p42, %p43
      %s46 = sadd.s32 %s45, 1
      %p49 = scmp.eq.s32.totalorder %s11, 1
      %p50 = scmp.ne.s32.totalorder %s45, %s47
      %p51 = scmp.eq.s32.totalorder %s11, 0
      %p52 = por %p50, %p51
      %p53 = scmp.ne.s32.totalorder %s45, %s47
      %p54 = scmp.eq.s32.totalorder %s16, 1
      %p55 = por %p53, %p54
      %p56 = scmp.ne.s32.totalorder %s47, %s48
      %p57 = scmp.eq.s32.totalorder %s16, 0
      %p58 = por %p56, %p57
      %p59 = scmp.ne.s32.totalorder %s47, %s48
      %p60 = scmp.eq.s32.totalorder %s17, 1
      %p61 = por %p59, %p60
      %p63 = scmp.ne.s32.totalorder %s48, %s62
      %p64 = scmp.eq.s32.totalorder %s17, 0
      %p65 = por %p63, %p64
      %s66 = ssub.s32 %s11, %s18
      %p67 = scmp.eq.s32.totalorder %s66, 0
      %s69 = sadd.s32 %s68, 1
      %s70 = scalar_select %p67, %s68, %s69
      %p73 = pneg %p67
      %p74 = scmp.eq.s32.totalorder %s11, 1
      %p75 = por %p73, %p74
      %p76 = scmp.ne.s32.totalorder %s68, %s71
      %p77 = scmp.eq.s32.totalorder %s11, 0
      %p78 = por %p76, %p77
      %p79 = scmp.ne.s32.totalorder %s68, %s71
      %p80 = scmp.eq.s32.totalorder %s16, 1
      %p81 = por %p79, %p80
      %p82 = scmp.ne.s32.totalorder %s71, %s72
      %p83 = scmp.eq.s32.totalorder %s16, 0
      %p84 = por %p82, %p83
      %p85 = scmp.ne.s32.totalorder %s71, %s72
      %p86 = scmp.eq.s32.totalorder %s17, 1
      %p87 = por %p85, %p86
      %p89 = scmp.ne.s32.totalorder %s72, %s88
      %p90 = scmp.eq.s32.totalorder %s17, 0
      %p91 = por %p89, %p90
      %p92 = scmp.le.s32.totalorder 1, %s11
      %p93 = scmp.lt.s32.totalorder %s11, 3
      %p94 = pnand %p92, %p93
      %p95 = pneg %p94
      // Predicated region
      $region9: #{gge_forward.11} parent=5 // pred_check
        _
      $region10: #{gge_forward.11} parent=5 // pred_check_branch
        %97 = sbr.rel (%p94) target = $region12
      $region11: #{gge_forward.11} parent=5 // pred_region
        %s98 = ssub.s32 %s11, 1
        // Predicated region
        $region13: #{gge_forward.11} parent=11 // pred_check
          %p99 = pneg %p58
        $region14: #{gge_forward.11} parent=11 // pred_check_branch
          %101 = sbr.rel (%p99) target = $region16
        $region15: #{gge_forward.11} parent=11 // pred_region
          _
        $region16: #{gge_forward.11} parent=11 // pred_fallthru
          _
      $region12: #{gge_forward.11} parent=5 // pred_fallthru
        _
      %p102 = scmp.lt.s32.totalorder %s11, 2
      // Predicated region
      $region17: #{gge_forward.11} parent=5 // pred_check
        %p103 = pneg %p102
      $region18: #{gge_forward.11} parent=5 // pred_check_branch
        %105 = sbr.rel (%p103) target = $region20
      $region19: #{gge_forward.11} parent=5 // pred_region
        // Predicated region
        $region21: #{gge_forward.11} parent=19 // pred_check
          %p106 = pneg %p31
        $region22: #{gge_forward.11} parent=19 // pred_check_branch
          %108 = sbr.rel (%p106) target = $region24
        $region23: #{gge_forward.11} parent=19 // pred_region
          %p109 = scmp.lt.s32.totalorder %s11, 1
          %s110 = scalar_select %p109, %s11, 1
          %s111 = smul.addr %s110, 6
          %s112 = smul.addr %s111, 4
          %s113 = scalar_lea.vmem %s0, %s112
        $region24: #{gge_forward.11} parent=19 // pred_fallthru
          _
      $region20: #{gge_forward.11} parent=5 // pred_fallthru
        _
      %p114 = scmp.le.s32.totalorder 1, %s11
      %p115 = scmp.lt.s32.totalorder %s11, 3
      %p116 = pnand %p114, %p115
      %p117 = pneg %p116
      // Predicated region
      $region25: #{gge_forward.11} parent=5 // pred_check
        _
      $region26: #{gge_forward.11} parent=5 // pred_check_branch
        %119 = sbr.rel (%p116) target = $region28
      $region27: #{gge_forward.11} parent=5 // pred_region
        %s120 = ssub.s32 %s11, 1
        %p121 = scmp.lt.s32.totalorder %s16, 1
        %s122 = scalar_select %p121, %s16, 1
        %s123 = smul.addr %s122, 6
        %s124 = smul.addr %s123, 4
        %s125 = scalar_lea.vmem %s0, %s124
        %p126 = pneg %p37
        %p127 = pneg %p34
        %p128 = pneg %p58
        %p129 = pneg %p55
        %p130 = pneg %p84
        %p131 = pneg %p81
        %s132 = sand.u32 %s71, 1
        %s133 = scalar_lea.sflag [#allocation3], %s132
        %s134 = sand.u32 %s71, 1
        %s135 = smul.addr %s134, 32
        %s136 = scalar_lea.vmem [#allocation2], %s135
        %p137 = scmp.lt.s32.totalorder %s16, 1
        %s138 = scalar_select %p137, %s16, 1
        %s139 = smul.addr %s138, 6
        %s140 = smul.addr %s139, 4
        %s141 = scalar_lea.vmem %s0, %s140
        %v143 = vld [vmem:[%s1] sm:$0xf]
        %v144 = vld [vmem:[%s1 + $0x4] sm:$0xf]
        %v145 = vld [vmem:[%s1 + $0x8] sm:$0xf]
        %v146 = vld [vmem:[%s1 + $0xc] sm:$0xf]
        %v147 = vld [vmem:[%s141] sm:$0xf]
        %v148 = vld [vmem:[%s141 + $0x4] sm:$0xf]
        %v149 = vld [vmem:[%s141 + $0x8] sm:$0xf]
        %v150 = vld [vmem:[%s141 + $0xc] sm:$0xf]
        %v151 = vld [vmem:[%s141 + $0x10] sm:$0xf]
        %v152 = vld [vmem:[%s141 + $0x14] sm:$0xf]
        %v157 = vunpack.c.l.b16 %v143
        %v158 = vunpack.c.l.b16 %v144
        %v159 = vunpack.c.l.b16 %v145
        %v160 = vunpack.c.l.b16 %v146
        %v161 = vpack.c.b16 %v158, %v157
        %v162 = vpack.c.b16 %v160, %v159
        %v169 = vunpack.c.l.b16 %v147
        %v170 = vunpack.c.l.b16 %v148
        %v171 = vunpack.c.l.b16 %v149
        %v172 = vunpack.c.l.b16 %v150
        %v173 = vunpack.c.l.b16 %v151
        %v174 = vunpack.c.l.b16 %v152
        %v175 = vpack.c.b16 %v170, %v169
        %v176 = vpack.c.b16 %v172, %v171
        %v177 = vpack.c.b16 %v174, %v173
        %vm181 = vcmask 392192
        %v183 = vsel %vm181, %v161, 0
        %v186 = vsel %vm181, %v162, 0
        %188 = vmatpush.bf16.msra.mxu0 0
        %189 = vmatpush.bf16.msra.mxu0 0
        %190 = vmatpush.bf16.msra.mxu0 0
        %191 = vmatpush.bf16.msra.mxu0 0
        %192 = vmatpush.bf16.msra.mxu0 0
        %193 = vmatpush.bf16.msra.mxu0 %v177
        %194 = vmatpush.bf16.msra.mxu0 %v176
        %195 = vmatpush.bf16.msra.mxu0 %v175
        %196 = vmatmul.bf16.gmra.mxu0 %v183
        %v197 = vpop.f32.mrf.mxu0
        %v198 = vadd.f32 0.0, %v197
        %v199 = vpop.f32.mrf.mxu0
        %v200 = vadd.f32 0.0, %v199
        %201 = vmatmul.bf16.gmra.mxu0 %v186
        %v202 = vpop.f32.mrf.mxu0
        %v203 = vadd.f32 0.0, %v202
        %v204 = vpop.f32.mrf.mxu0
        %v205 = vadd.f32 0.0, %v204
        %206 = vdwg.mxu0
        %207 = vadd.xlane.f32.xlu0 %v198
        %v208 = vpop.xlane.xlu0 %207
        %209 = vadd.xlane.f32.xlu0 %v200
        %v210 = vpop.xlane.xlu0 %209
        %211 = vadd.xlane.f32.xlu0 %v203
        %v212 = vpop.xlane.xlu0 %211
        %213 = vadd.xlane.f32.xlu0 %v205
        %v214 = vpop.xlane.xlu0 %213
        %v215 = vmul.f32 %v208, 0.0078125
        %v216 = vmul.f32 %v210, 0.0078125
        %v217 = vmul.f32 %v212, 0.0078125
        %v218 = vmul.f32 %v214, 0.0078125
        %v219 = vsub.f32 %v198, %v215
        %v220 = vsub.f32 %v200, %v216
        %v221 = vsub.f32 %v203, %v217
        %v222 = vsub.f32 %v205, %v218
        %v223 = vmul.f32 %v219, %v219
        %v224 = vmul.f32 %v220, %v220
        %v225 = vmul.f32 %v221, %v221
        %v226 = vmul.f32 %v222, %v222
        %227 = vadd.xlane.f32.xlu0 %v223
        %v228 = vpop.xlane.xlu0 %227
        %229 = vadd.xlane.f32.xlu0 %v224
        %v230 = vpop.xlane.xlu0 %229
        %231 = vadd.xlane.f32.xlu0 %v225
        %v232 = vpop.xlane.xlu0 %231
        %233 = vadd.xlane.f32.xlu0 %v226
        %v234 = vpop.xlane.xlu0 %233
        %v235 = vmul.f32 %v228, 0.0078125
        %v236 = vmul.f32 %v230, 0.0078125
        %v237 = vmul.f32 %v232, 0.0078125
        %v238 = vmul.f32 %v234, 0.0078125
        %v239 = vadd.f32 %v235, 1e-05
        %v240 = vadd.f32 %v236, 1e-05
        %v241 = vadd.f32 %v237, 1e-05
        %v242 = vadd.f32 %v238, 1e-05
        %v243 = vrsqrt.pop %v239
        %v244 = vmul.f32 %v243, %v239
        %v245 = vmul.f32 %v244, %v243
        %v246 = vmul.f32 0.5, %v245
        %v247 = vsub.f32 1.5, %v246
        %v248 = vmul.f32 %v243, %v247
        %vm249 = vweird.f32 %v239
        %vm250 = vweird.f32 %v243
        %vm251 = vmor %vm249, %vm250
        %v252 = vsel %vm251, %v243, %v248
        %v253 = vrsqrt.pop %v240
        %v254 = vmul.f32 %v253, %v240
        %v255 = vmul.f32 %v254, %v253
        %v256 = vmul.f32 0.5, %v255
        %v257 = vsub.f32 1.5, %v256
        %v258 = vmul.f32 %v253, %v257
        %vm259 = vweird.f32 %v240
        %vm260 = vweird.f32 %v253
        %vm261 = vmor %vm259, %vm260
        %v262 = vsel %vm261, %v253, %v258
        %v263 = vrsqrt.pop %v241
        %v264 = vmul.f32 %v263, %v241
        %v265 = vmul.f32 %v264, %v263
        %v266 = vmul.f32 0.5, %v265
        %v267 = vsub.f32 1.5, %v266
        %v268 = vmul.f32 %v263, %v267
        %vm269 = vweird.f32 %v241
        %vm270 = vweird.f32 %v263
        %vm271 = vmor %vm269, %vm270
        %v272 = vsel %vm271, %v263, %v268
        %v273 = vrsqrt.pop %v242
        %v274 = vmul.f32 %v273, %v242
        %v275 = vmul.f32 %v274, %v273
        %v276 = vmul.f32 0.5, %v275
        %v277 = vsub.f32 1.5, %v276
        %v278 = vmul.f32 %v273, %v277
        %vm279 = vweird.f32 %v242
        %vm280 = vweird.f32 %v273
        %vm281 = vmor %vm279, %vm280
        %v282 = vsel %vm281, %v273, %v278
        %v283 = vmul.f32 %v219, %v252
        %v284 = vmul.f32 %v220, %v262
        %v285 = vmul.f32 %v221, %v272
        %v286 = vmul.f32 %v222, %v282
        %vm287 = vcmp.ge.f32.partialorder %v283, 0.0
        %vm288 = vcmp.ge.f32.partialorder %v284, 0.0
        %vm289 = vcmp.ge.f32.partialorder %v285, 0.0
        %vm290 = vcmp.ge.f32.partialorder %v286, 0.0
        %v291 = vmul.f32 %v283, 0.2
        %v292 = vmul.f32 %v284, 0.2
        %v293 = vmul.f32 %v285, 0.2
        %v294 = vmul.f32 %v286, 0.2
        %v295 = vsel %vm287, %v283, %v291
        %v296 = vsel %vm288, %v284, %v292
        %v297 = vsel %vm289, %v285, %v293
        %v298 = vsel %vm290, %v286, %v294
        %299 = vst [vmem:[%s136] sm:$0xff] %v295
        %300 = vst [vmem:[%s136 + $0x8] sm:$0xff] %v296
        %301 = vst [vmem:[%s136 + $0x10] sm:$0xff] %v297
        %302 = vst [vmem:[%s136 + $0x18] sm:$0xff] %v298
        %s303 = sand.u32 %s71, 1
        %s304 = scalar_lea.sflag [#allocation3], %s303
        %s305 = sand.u32 %s71, 1
        %s306 = smul.addr %s305, 32
        %s307 = scalar_lea.vmem [#allocation2], %s306
        // Predicated region
        $region29: #{gge_forward.11} parent=27 // pred_check
          %p308 = pneg %p81
        $region30: #{gge_forward.11} parent=27 // pred_check_branch
          %310 = sbr.rel (%p308) target = $region32
        $region31: #{gge_forward.11} parent=27 // pred_region
          %312 = vsyncadd %s304, 0
          %s313 = smul.addr %s16, 4
          %s314 = smul.addr %s313, 8
          %s315 = scalar_lea.hbm %s2, %s314
          %s316 = sshll.u32 %s307, 4
          %s317 = int_to_ptr.vmem [resolvable:$true] %s316
          %s318 = sshll.u32 %s315, 4
          %s319 = int_to_ptr.hbm [resolvable:$true] %s318
          %324 = dma.vmem_to_hbm [thread:$0]  %s317, 512, %s319, %s304, 128, 128, 8
        $region32: #{gge_forward.11} parent=27 // pred_fallthru
          _
      $region28: #{gge_forward.11} parent=5 // pred_fallthru
        _
      %p325 = scmp.le.s32.totalorder 2, %s11
      // Predicated region
      $region33: #{gge_forward.11} parent=5 // pred_check
        %p326 = pneg %p325
      $region34: #{gge_forward.11} parent=5 // pred_check_branch
        %328 = sbr.rel (%p326) target = $region36
      $region35: #{gge_forward.11} parent=5 // pred_region
        %s329 = ssub.s32 %s11, 2
        // Predicated region
        $region37: #{gge_forward.11} parent=35 // pred_check
          %p330 = pneg %p87
        $region38: #{gge_forward.11} parent=35 // pred_check_branch
          %332 = sbr.rel (%p330) target = $region40
        $region39: #{gge_forward.11} parent=35 // pred_region
          %s333 = sand.u32 %s72, 1
          %s334 = scalar_lea.sflag [#allocation3], %s333
          %s335 = sand.u32 %s72, 1
          %s336 = smul.addr %s335, 32
          %s337 = scalar_lea.vmem [#allocation2], %s336
          %339 = dma.done %s334, 512
        $region40: #{gge_forward.11} parent=35 // pred_fallthru
          _
      $region36: #{gge_forward.11} parent=5 // pred_fallthru
        _
    $region6: #{gge_forward.11} parent=1 // loop_footer
      %s15 = sadd.s32 1, %s11
    $region7: #{gge_forward.11} parent=1 // loop_footer_branch
      %10 = sbr.rel target = $region3
    $region8: #{gge_forward.11} parent=1 // loop_exit
      _
    %340 = vsyncpa [#allocation3], 1
    %s341 = scalar_lea.sflag [#allocation3], 1
    %342 = vsyncpa %s341, 1

</llo_original>
